<compile_context>
chip_gen: v7x
topology: tpu7x:2x2x1
jax: 0.10.0
libtpu: 0.0.40
codegen_flags: <defaults>
</compile_context>

<pallas_src>
import functools

import jax
import jax.numpy as jnp
from jax import lax
from jax.experimental import pallas as pl
from jax.experimental.pallas import tpu as pltpu

_NEG_SLOPE = 0.2


def _leaky_relu(v):
    # max(v, a*v) == leaky_relu(v, a) for 0 < a < 1.
    return jnp.maximum(v, _NEG_SLOPE * v)


def _vmem_limit_bytes():
    """Per-generation scoped-VMEM limit: big tiles, but double-buffer headroom."""
    try:
        cap = pltpu.get_tpu_info().vmem_capacity_bytes
    except Exception:  # conservative fallback if the query is unavailable
        cap = 64 << 20
    return int(min(cap - (12 << 20), 100 << 20))


# -----------------------------------------------------------------------------
# Pallas kernel: `B` images per grid step, fully fused in VMEM.
# -----------------------------------------------------------------------------
def _bottleneck_kernel(x_ref, wr_ref, wt_ref, we_ref, y_ref, *, B, H, W):
    # x_ref : (B, H*W, C)   bf16  channels-last rows (lane-dense)
    # wr_ref: (C, D)        bf16  1x1 reduce weight
    # wt_ref: (9, D, D)     bf16  per-tap block-diagonal 3x3 weights (kh-major)
    # we_ref: (D, C)        bf16  1x1 expand weight
    # y_ref : (B, H*W, C)   bf16
    C = x_ref.shape[-1]
    D = wr_ref.shape[1]
    HW = H * W
    M = B * HW

    # ---- conv_reduce (1x1) + leaky_relu : bf16 MXU matmul, f32 accumulation --
    xb = x_ref[...].astype(jnp.bfloat16).reshape(M, C)        # no long live range
    h = jnp.dot(xb, wr_ref[...], preferred_element_type=jnp.float32)   # (M, D)
    h = _leaky_relu(h).astype(jnp.bfloat16)
    del xb

    # ---- 1-pixel halo, built in bf16 (half the copy bytes of f32) ------------
    h4 = h.reshape(B, H, W, D)                                # D stays on lanes
    zrow = jnp.zeros((B, 1, W, D), jnp.bfloat16)
    zcol = jnp.zeros((B, H + 2, 1, D), jnp.bfloat16)
    hp = jnp.concatenate([zrow, h4, zrow], axis=1)            # (B, H+2, W,   D)
    hp = jnp.concatenate([zcol, hp, zcol], axis=2)            # (B, H+2, W+2, D)

    # ---- grouped conv3x3 (padding=1): 9 per-tap block-diagonal matmuls -------
    # No (M, 9*D) im2col slab is ever materialized; f32 accumulator adds ride on
    # otherwise-idle VALU slots while the MXU streams the 9 taps.
    g = jnp.zeros((M, D), jnp.float32)
    for kh in range(3):
        for kw in range(3):
            patch = hp[:, kh:kh + H, kw:kw + W, :].reshape(M, D)
            g = g + jnp.dot(patch, wt_ref[kh * 3 + kw],
                            preferred_element_type=jnp.float32)
    g = _leaky_relu(g).astype(jnp.bfloat16)

    # ---- conv_expand (1x1) + identity shortcut (re-read x from VMEM) ---------
    b = jnp.dot(g, we_ref[...], preferred_element_type=jnp.float32)    # (M, C)
    y = x_ref[...].astype(jnp.float32) + b.reshape(B, HW, C)
    y_ref[...] = y.astype(y_ref.dtype)


def _bottleneck_pallas(x_rows, w_reduce, w_taps, w_expand, H, W, images_per_step):
    """x_rows: (N, H*W, C) bf16  ->  (N, H*W, C) bf16."""
    N, HW, Cin = x_rows.shape
    D = w_reduce.shape[1]
    Cout = w_expand.shape[1]
    assert Cin == Cout, "identity shortcut requires in_channels == out_channels"
    assert N % images_per_step == 0
    bpg = images_per_step

    kernel = functools.partial(_bottleneck_kernel, B=bpg, H=H, W=W)
    grid_spec = pltpu.PrefetchScalarGridSpec(
        num_scalar_prefetch=0,
        grid=(N // bpg,),
        in_specs=[
            pl.BlockSpec((bpg, HW, Cin), lambda n: (n, 0, 0)),
            pl.BlockSpec((Cin, D), lambda n: (0, 0)),        # resident weights
            pl.BlockSpec((9, D, D), lambda n: (0, 0, 0)),
            pl.BlockSpec((D, Cout), lambda n: (0, 0)),
        ],
        out_specs=pl.BlockSpec((bpg, HW, Cout), lambda n: (n, 0, 0)),
    )
    return pl.pallas_call(
        kernel,
        out_shape=jax.ShapeDtypeStruct((N, HW, Cout), x_rows.dtype),
        grid_spec=grid_spec,
        compiler_params=pltpu.CompilerParams(
            dimension_semantics=("parallel",),
            vmem_limit_bytes=_vmem_limit_bytes()),
    )(x_rows, w_reduce, w_taps, w_expand)


# -----------------------------------------------------------------------------
# One-time weight packing (hoisted out of the per-forward path).
# -----------------------------------------------------------------------------
def pack_weights(torch_weights, cardinality):
    """PyTorch OIHW conv weights -> matmul-shaped bf16 kernel weights."""
    w_red_t, w_grp_t, w_exp_t = torch_weights
    D = w_red_t.shape[0]
    dpg = D // cardinality

    w_reduce = jnp.transpose(w_red_t[:, :, 0, 0], (1, 0)).astype(jnp.bfloat16)  # (Cin, D)
    w_expand = jnp.transpose(w_exp_t[:, :, 0, 0], (1, 0)).astype(jnp.bfloat16)  # (D, Cout)

    # Per-tap dense block-diagonal weights, (3,3,D_in,D_out) -> (9, D, D).
    taps = jnp.zeros((3, 3, D, D), jnp.float32)
    for g in range(cardinality):
        blk = w_grp_t[g * dpg:(g + 1) * dpg]                 # (dpg_out, dpg_in, 3, 3)
        blk_hwio = jnp.transpose(blk, (2, 3, 1, 0))          # (3, 3, in, out)
        taps = taps.at[:, :, g * dpg:(g + 1) * dpg,
                       g * dpg:(g + 1) * dpg].set(blk_hwio)
    w_taps = taps.reshape(9, D, D).astype(jnp.bfloat16)
    return w_reduce, w_taps, w_expand


# -----------------------------------------------------------------------------
# Forward: NHWC activations end-to-end, no transposes, bf16 in / bf16 out.
# -----------------------------------------------------------------------------
def dresnext_bottleneck_nhwc(x_nhwc, packed_weights, images_per_step=None):
    """x_nhwc: (N, H, W, C) bf16/f32 -> (N, H, W, C) same dtype."""
    w_reduce, w_taps, w_expand = packed_weights
    N, H, W, Cin = x_nhwc.shape
    HW = H * W
    Cout = w_expand.shape[1]

    if images_per_step is None:
        # Keep M = images_per_step * HW >= 512 rows per matmul when possible.
        images_per_step = max(1, min(N, max(1, 512 // HW)))
        while N % images_per_step:
            images_per_step -= 1

    x_rows = x_nhwc.reshape(N, HW, Cin)          # contiguous collapse, no relayout
    y_rows = _bottleneck_pallas(x_rows, w_reduce, w_taps, w_expand,
                                H, W, images_per_step)
    return y_rows.reshape(N, H, W, Cout)


# -----------------------------------------------------------------------------
# Deterministic params + pure-JAX reference (matches the PyTorch module, NCHW/f32).
# -----------------------------------------------------------------------------
def make_torch_params(key, in_channels, out_channels, cardinality):
    D = out_channels // 2
    dpg = D // cardinality
    k1, k2, k3 = jax.random.split(key, 3)
    w_red_t = jax.random.normal(k1, (D, in_channels, 1, 1), jnp.float32) * 0.05
    w_grp_t = jax.random.normal(k2, (D, dpg, 3, 3), jnp.float32) * 0.05
    w_exp_t = jax.random.normal(k3, (out_channels, D, 1, 1), jnp.float32) * 0.05
    return (w_red_t, w_grp_t, w_exp_t)


def reference_forward(x_nchw, torch_weights, cardinality):
    w_red_t, w_grp_t, w_exp_t = torch_weights

    def conv(x, w, groups=1, padding=0):
        return lax.conv_general_dilated(
            x, w, window_strides=(1, 1),
            padding=[(padding, padding), (padding, padding)],
            dimension_numbers=("NCHW", "OIHW", "NCHW"),
            feature_group_count=groups)

    def lrelu(v):
        return jnp.where(v > 0, v, _NEG_SLOPE * v)

    b = lrelu(conv(x_nchw, w_red_t))
    b = lrelu(conv(b, w_grp_t, groups=cardinality, padding=1))
    b = conv(b, w_exp_t)
    return x_nchw + b                      # identity shortcut (in == out channels)


# -----------------------------------------------------------------------------
if __name__ == "__main__":
    # Module-default channel/cardinality config at a small spatial/batch size:
    # C = 256, cardinality = 32  ->  D = 128 (4 channels per group).
    N, C, H, W = 2, 256, 16, 16
    cardinality = 32

    key = jax.random.PRNGKey(0)
    kx, kw = jax.random.split(key)
    x_nhwc_f32 = jax.random.normal(kx, (N, H, W, C), jnp.float32)
    torch_w = make_torch_params(kw, C, C, cardinality)

    packed = pack_weights(torch_w, cardinality)            # one-time, at "init"
    x_nhwc = x_nhwc_f32.astype(jnp.bfloat16)               # bf16 activations in

    y_nhwc = dresnext_bottleneck_nhwc(x_nhwc, packed)
    y_nhwc = jax.block_until_ready(y_nhwc)

    # Reference in f32 / NCHW, directly mirroring the PyTorch module.
    x_nchw = jnp.transpose(x_nhwc_f32, (0, 3, 1, 2))
    y_ref_nchw = jax.block_until_ready(
        reference_forward(x_nchw, torch_w, cardinality))
    y_ref_nhwc = jnp.transpose(y_ref_nchw, (0, 2, 3, 1))

    assert y_nhwc.shape == (N, H, W, C)
    y_f32 = y_nhwc.astype(jnp.float32)
    max_err = float(jnp.max(jnp.abs(y_f32 - y_ref_nhwc)))
    # bf16 activations/weights with f32 accumulation -> loose-but-safe tolerance.
    assert jnp.allclose(y_f32, y_ref_nhwc, atol=5e-2, rtol=5e-2), max_err
    print("KERNEL_OK")
</pallas_src>

<mosaic_0001>
module attributes {stable_mosaic.version = 11 : i64} {
  func.func @_bottleneck_kernel(%arg0: i32, %arg1: memref<2x256x256xbf16, #tpu.memory_space<vmem>>, %arg2: memref<256x128xbf16, #tpu.memory_space<vmem>>, %arg3: memref<9x128x128xbf16, #tpu.memory_space<vmem>>, %arg4: memref<128x256xbf16, #tpu.memory_space<vmem>>, %arg5: memref<2x256x256xbf16, #tpu.memory_space<vmem>>) attributes {dimension_semantics = [#tpu.dimension_semantics<parallel>], iteration_bounds = array<i64: 1>, scalar_prefetch = 0 : i64, scratch_operands = 0 : i64, tpu.core_type = #tpu.core_type<tc>, window_params = [{transform_indices = @transform_0, window_bounds = array<i64: 2, 256, 256>}, {pipeline_mode = #tpu.pipeline_mode<synchronous>, transform_indices = @transform_1, window_bounds = array<i64: 256, 128>}, {pipeline_mode = #tpu.pipeline_mode<synchronous>, transform_indices = @transform_2, window_bounds = array<i64: 9, 128, 128>}, {pipeline_mode = #tpu.pipeline_mode<synchronous>, transform_indices = @transform_3, window_bounds = array<i64: 128, 256>}, {transform_indices = @transform_4, window_bounds = array<i64: 2, 256, 256>}]} {
    %c0 = arith.constant 0 : index
    %c0_0 = arith.constant 0 : index
    %c0_1 = arith.constant 0 : index
    %0 = vector.load %arg1[%c0, %c0_0, %c0_1] : memref<2x256x256xbf16, #tpu.memory_space<vmem>>, vector<2x256x256xbf16>
    %1 = vector.shape_cast %0 : vector<2x256x256xbf16> to vector<512x256xbf16>
    %c0_2 = arith.constant 0 : index
    %c0_3 = arith.constant 0 : index
    %2 = vector.load %arg2[%c0_2, %c0_3] : memref<256x128xbf16, #tpu.memory_space<vmem>>, vector<256x128xbf16>
    %cst = arith.constant dense<0.000000e+00> : vector<512x128xf32>
    %3 = tpu.matmul %1, %2, %cst {dimension_numbers = #tpu.dot_dimension_numbers<[1], [0], [0], [1], [0, 0, 1, 1], [], []>} : vector<512x256xbf16>, vector<256x128xbf16>, vector<512x128xf32> -> vector<512x128xf32>
    %cst_4 = arith.constant 2.000000e-01 : f32
    %4 = vector.broadcast %cst_4 : f32 to vector<512x128xf32>
    %5 = arith.mulf %4, %3 : vector<512x128xf32>
    %6 = arith.maximumf %3, %5 : vector<512x128xf32>
    %7 = arith.truncf %6 : vector<512x128xf32> to vector<512x128xbf16>
    %8 = vector.shape_cast %7 : vector<512x128xbf16> to vector<2x16x16x128xbf16>
    %cst_5 = arith.constant 0.000000e+00 : bf16
    %9 = vector.broadcast %cst_5 : bf16 to vector<2x1x16x128xbf16>
    %cst_6 = arith.constant 0.000000e+00 : bf16
    %10 = vector.broadcast %cst_6 : bf16 to vector<2x18x1x128xbf16>
    %11 = tpu.concatenate %9, %8, %9 in 1 : vector<2x1x16x128xbf16>, vector<2x16x16x128xbf16>, vector<2x1x16x128xbf16> -> vector<2x18x16x128xbf16>
    %12 = tpu.concatenate %10, %11, %10 in 2 : vector<2x18x1x128xbf16>, vector<2x18x16x128xbf16>, vector<2x18x1x128xbf16> -> vector<2x18x18x128xbf16>
    %cst_7 = arith.constant 0.000000e+00 : f32
    %13 = vector.broadcast %cst_7 : f32 to vector<512x128xf32>
    %14 = vector.extract_strided_slice %12 {offsets = [0, 0, 0, 0], sizes = [2, 16, 16, 128], strides = [1, 1, 1, 1]} : vector<2x18x18x128xbf16> to vector<2x16x16x128xbf16>
    %15 = vector.shape_cast %14 : vector<2x16x16x128xbf16> to vector<512x128xbf16>
    %c0_8 = arith.constant 0 : index
    %c0_9 = arith.constant 0 : index
    %c0_10 = arith.constant 0 : index
    %16 = vector.load %arg3[%c0_8, %c0_9, %c0_10] : memref<9x128x128xbf16, #tpu.memory_space<vmem>>, vector<1x128x128xbf16>
    %17 = vector.shape_cast %16 : vector<1x128x128xbf16> to vector<128x128xbf16>
    %cst_11 = arith.constant dense<0.000000e+00> : vector<512x128xf32>
    %18 = tpu.matmul %15, %17, %cst_11 {dimension_numbers = #tpu.dot_dimension_numbers<[1], [0], [0], [1], [0, 0, 1, 1], [], []>} : vector<512x128xbf16>, vector<128x128xbf16>, vector<512x128xf32> -> vector<512x128xf32>
    %19 = arith.addf %13, %18 : vector<512x128xf32>
    %20 = vector.extract_strided_slice %12 {offsets = [0, 0, 1, 0], sizes = [2, 16, 16, 128], strides = [1, 1, 1, 1]} : vector<2x18x18x128xbf16> to vector<2x16x16x128xbf16>
    %21 = vector.shape_cast %20 : vector<2x16x16x128xbf16> to vector<512x128xbf16>
    %c1 = arith.constant 1 : index
    %c0_12 = arith.constant 0 : index
    %c0_13 = arith.constant 0 : index
    %22 = vector.load %arg3[%c1, %c0_12, %c0_13] : memref<9x128x128xbf16, #tpu.memory_space<vmem>>, vector<1x128x128xbf16>
    %23 = vector.shape_cast %22 : vector<1x128x128xbf16> to vector<128x128xbf16>
    %cst_14 = arith.constant dense<0.000000e+00> : vector<512x128xf32>
    %24 = tpu.matmul %21, %23, %cst_14 {dimension_numbers = #tpu.dot_dimension_numbers<[1], [0], [0], [1], [0, 0, 1, 1], [], []>} : vector<512x128xbf16>, vector<128x128xbf16>, vector<512x128xf32> -> vector<512x128xf32>
    %25 = arith.addf %19, %24 : vector<512x128xf32>
    %26 = vector.extract_strided_slice %12 {offsets = [0, 0, 2, 0], sizes = [2, 16, 16, 128], strides = [1, 1, 1, 1]} : vector<2x18x18x128xbf16> to vector<2x16x16x128xbf16>
    %27 = vector.shape_cast %26 : vector<2x16x16x128xbf16> to vector<512x128xbf16>
    %c2 = arith.constant 2 : index
    %c0_15 = arith.constant 0 : index
    %c0_16 = arith.constant 0 : index
    %28 = vector.load %arg3[%c2, %c0_15, %c0_16] : memref<9x128x128xbf16, #tpu.memory_space<vmem>>, vector<1x128x128xbf16>
    %29 = vector.shape_cast %28 : vector<1x128x128xbf16> to vector<128x128xbf16>
    %cst_17 = arith.constant dense<0.000000e+00> : vector<512x128xf32>
    %30 = tpu.matmul %27, %29, %cst_17 {dimension_numbers = #tpu.dot_dimension_numbers<[1], [0], [0], [1], [0, 0, 1, 1], [], []>} : vector<512x128xbf16>, vector<128x128xbf16>, vector<512x128xf32> -> vector<512x128xf32>
    %31 = arith.addf %25, %30 : vector<512x128xf32>
    %32 = vector.extract_strided_slice %12 {offsets = [0, 1, 0, 0], sizes = [2, 16, 16, 128], strides = [1, 1, 1, 1]} : vector<2x18x18x128xbf16> to vector<2x16x16x128xbf16>
    %33 = vector.shape_cast %32 : vector<2x16x16x128xbf16> to vector<512x128xbf16>
    %c3 = arith.constant 3 : index
    %c0_18 = arith.constant 0 : index
    %c0_19 = arith.constant 0 : index
    %34 = vector.load %arg3[%c3, %c0_18, %c0_19] : memref<9x128x128xbf16, #tpu.memory_space<vmem>>, vector<1x128x128xbf16>
    %35 = vector.shape_cast %34 : vector<1x128x128xbf16> to vector<128x128xbf16>
    %cst_20 = arith.constant dense<0.000000e+00> : vector<512x128xf32>
    %36 = tpu.matmul %33, %35, %cst_20 {dimension_numbers = #tpu.dot_dimension_numbers<[1], [0], [0], [1], [0, 0, 1, 1], [], []>} : vector<512x128xbf16>, vector<128x128xbf16>, vector<512x128xf32> -> vector<512x128xf32>
    %37 = arith.addf %31, %36 : vector<512x128xf32>
    %38 = vector.extract_strided_slice %12 {offsets = [0, 1, 1, 0], sizes = [2, 16, 16, 128], strides = [1, 1, 1, 1]} : vector<2x18x18x128xbf16> to vector<2x16x16x128xbf16>
    %39 = vector.shape_cast %38 : vector<2x16x16x128xbf16> to vector<512x128xbf16>
    %c4 = arith.constant 4 : index
    %c0_21 = arith.constant 0 : index
    %c0_22 = arith.constant 0 : index
    %40 = vector.load %arg3[%c4, %c0_21, %c0_22] : memref<9x128x128xbf16, #tpu.memory_space<vmem>>, vector<1x128x128xbf16>
    %41 = vector.shape_cast %40 : vector<1x128x128xbf16> to vector<128x128xbf16>
    %cst_23 = arith.constant dense<0.000000e+00> : vector<512x128xf32>
    %42 = tpu.matmul %39, %41, %cst_23 {dimension_numbers = #tpu.dot_dimension_numbers<[1], [0], [0], [1], [0, 0, 1, 1], [], []>} : vector<512x128xbf16>, vector<128x128xbf16>, vector<512x128xf32> -> vector<512x128xf32>
    %43 = arith.addf %37, %42 : vector<512x128xf32>
    %44 = vector.extract_strided_slice %12 {offsets = [0, 1, 2, 0], sizes = [2, 16, 16, 128], strides = [1, 1, 1, 1]} : vector<2x18x18x128xbf16> to vector<2x16x16x128xbf16>
    %45 = vector.shape_cast %44 : vector<2x16x16x128xbf16> to vector<512x128xbf16>
    %c5 = arith.constant 5 : index
    %c0_24 = arith.constant 0 : index
    %c0_25 = arith.constant 0 : index
    %46 = vector.load %arg3[%c5, %c0_24, %c0_25] : memref<9x128x128xbf16, #tpu.memory_space<vmem>>, vector<1x128x128xbf16>
    %47 = vector.shape_cast %46 : vector<1x128x128xbf16> to vector<128x128xbf16>
    %cst_26 = arith.constant dense<0.000000e+00> : vector<512x128xf32>
    %48 = tpu.matmul %45, %47, %cst_26 {dimension_numbers = #tpu.dot_dimension_numbers<[1], [0], [0], [1], [0, 0, 1, 1], [], []>} : vector<512x128xbf16>, vector<128x128xbf16>, vector<512x128xf32> -> vector<512x128xf32>
    %49 = arith.addf %43, %48 : vector<512x128xf32>
    %50 = vector.extract_strided_slice %12 {offsets = [0, 2, 0, 0], sizes = [2, 16, 16, 128], strides = [1, 1, 1, 1]} : vector<2x18x18x128xbf16> to vector<2x16x16x128xbf16>
    %51 = vector.shape_cast %50 : vector<2x16x16x128xbf16> to vector<512x128xbf16>
    %c6 = arith.constant 6 : index
    %c0_27 = arith.constant 0 : index
    %c0_28 = arith.constant 0 : index
    %52 = vector.load %arg3[%c6, %c0_27, %c0_28] : memref<9x128x128xbf16, #tpu.memory_space<vmem>>, vector<1x128x128xbf16>
    %53 = vector.shape_cast %52 : vector<1x128x128xbf16> to vector<128x128xbf16>
    %cst_29 = arith.constant dense<0.000000e+00> : vector<512x128xf32>
    %54 = tpu.matmul %51, %53, %cst_29 {dimension_numbers = #tpu.dot_dimension_numbers<[1], [0], [0], [1], [0, 0, 1, 1], [], []>} : vector<512x128xbf16>, vector<128x128xbf16>, vector<512x128xf32> -> vector<512x128xf32>
    %55 = arith.addf %49, %54 : vector<512x128xf32>
    %56 = vector.extract_strided_slice %12 {offsets = [0, 2, 1, 0], sizes = [2, 16, 16, 128], strides = [1, 1, 1, 1]} : vector<2x18x18x128xbf16> to vector<2x16x16x128xbf16>
    %57 = vector.shape_cast %56 : vector<2x16x16x128xbf16> to vector<512x128xbf16>
    %c7 = arith.constant 7 : index
    %c0_30 = arith.constant 0 : index
    %c0_31 = arith.constant 0 : index
    %58 = vector.load %arg3[%c7, %c0_30, %c0_31] : memref<9x128x128xbf16, #tpu.memory_space<vmem>>, vector<1x128x128xbf16>
    %59 = vector.shape_cast %58 : vector<1x128x128xbf16> to vector<128x128xbf16>
    %cst_32 = arith.constant dense<0.000000e+00> : vector<512x128xf32>
    %60 = tpu.matmul %57, %59, %cst_32 {dimension_numbers = #tpu.dot_dimension_numbers<[1], [0], [0], [1], [0, 0, 1, 1], [], []>} : vector<512x128xbf16>, vector<128x128xbf16>, vector<512x128xf32> -> vector<512x128xf32>
    %61 = arith.addf %55, %60 : vector<512x128xf32>
    %62 = vector.extract_strided_slice %12 {offsets = [0, 2, 2, 0], sizes = [2, 16, 16, 128], strides = [1, 1, 1, 1]} : vector<2x18x18x128xbf16> to vector<2x16x16x128xbf16>
    %63 = vector.shape_cast %62 : vector<2x16x16x128xbf16> to vector<512x128xbf16>
    %c8 = arith.constant 8 : index
    %c0_33 = arith.constant 0 : index
    %c0_34 = arith.constant 0 : index
    %64 = vector.load %arg3[%c8, %c0_33, %c0_34] : memref<9x128x128xbf16, #tpu.memory_space<vmem>>, vector<1x128x128xbf16>
    %65 = vector.shape_cast %64 : vector<1x128x128xbf16> to vector<128x128xbf16>
    %cst_35 = arith.constant dense<0.000000e+00> : vector<512x128xf32>
    %66 = tpu.matmul %63, %65, %cst_35 {dimension_numbers = #tpu.dot_dimension_numbers<[1], [0], [0], [1], [0, 0, 1, 1], [], []>} : vector<512x128xbf16>, vector<128x128xbf16>, vector<512x128xf32> -> vector<512x128xf32>
    %67 = arith.addf %61, %66 : vector<512x128xf32>
    %cst_36 = arith.constant 2.000000e-01 : f32
    %68 = vector.broadcast %cst_36 : f32 to vector<512x128xf32>
    %69 = arith.mulf %68, %67 : vector<512x128xf32>
    %70 = arith.maximumf %67, %69 : vector<512x128xf32>
    %71 = arith.truncf %70 : vector<512x128xf32> to vector<512x128xbf16>
    %c0_37 = arith.constant 0 : index
    %c0_38 = arith.constant 0 : index
    %72 = vector.load %arg4[%c0_37, %c0_38] : memref<128x256xbf16, #tpu.memory_space<vmem>>, vector<128x256xbf16>
    %cst_39 = arith.constant dense<0.000000e+00> : vector<512x256xf32>
    %73 = tpu.matmul %71, %72, %cst_39 {dimension_numbers = #tpu.dot_dimension_numbers<[1], [0], [0], [1], [0, 0, 1, 1], [], []>} : vector<512x128xbf16>, vector<128x256xbf16>, vector<512x256xf32> -> vector<512x256xf32>
    %c0_40 = arith.constant 0 : index
    %c0_41 = arith.constant 0 : index
    %c0_42 = arith.constant 0 : index
    %74 = vector.load %arg1[%c0_40, %c0_41, %c0_42] : memref<2x256x256xbf16, #tpu.memory_space<vmem>>, vector<2x256x256xbf16>
    %75 = arith.extf %74 : vector<2x256x256xbf16> to vector<2x256x256xf32>
    %76 = vector.shape_cast %73 : vector<512x256xf32> to vector<2x256x256xf32>
    %77 = arith.addf %75, %76 : vector<2x256x256xf32>
    %78 = arith.truncf %77 : vector<2x256x256xf32> to vector<2x256x256xbf16>
    %c0_43 = arith.constant 0 : index
    %c0_44 = arith.constant 0 : index
    %c0_45 = arith.constant 0 : index
    %79 = vector.load %arg5[%c0_43, %c0_44, %c0_45] : memref<2x256x256xbf16, #tpu.memory_space<vmem>>, vector<2x256x256xbf16>
    tpu.vector_store %arg5[%c0_43, %c0_44, %c0_45], %78 {strides = array<i32>} : memref<2x256x256xbf16, #tpu.memory_space<vmem>>, vector<2x256x256xbf16>,
    return
  }
  func.func @transform_0(%arg0: i32) -> (i32, i32, i32) {
    %c0_i32 = arith.constant 0 : i32
    %c0_i32_0 = arith.constant 0 : i32
    %c0_i32_1 = arith.constant 0 : i32
    return %arg0, %c0_i32, %c0_i32_0 : i32, i32, i32
  }
  func.func @transform_1(%arg0: i32) -> (i32, i32) {
    %c0_i32 = arith.constant 0 : i32
    %c0_i32_0 = arith.constant 0 : i32
    %c0_i32_1 = arith.constant 0 : i32
    return %c0_i32, %c0_i32_0 : i32, i32
  }
  func.func @transform_2(%arg0: i32) -> (i32, i32, i32) {
    %c0_i32 = arith.constant 0 : i32
    %c0_i32_0 = arith.constant 0 : i32
    %c0_i32_1 = arith.constant 0 : i32
    %c0_i32_2 = arith.constant 0 : i32
    return %c0_i32, %c0_i32_0, %c0_i32_1 : i32, i32, i32
  }
  func.func @transform_3(%arg0: i32) -> (i32, i32) {
    %c0_i32 = arith.constant 0 : i32
    %c0_i32_0 = arith.constant 0 : i32
    %c0_i32_1 = arith.constant 0 : i32
    return %c0_i32, %c0_i32_0 : i32, i32
  }
  func.func @transform_4(%arg0: i32) -> (i32, i32, i32) {
    %c0_i32 = arith.constant 0 : i32
    %c0_i32_0 = arith.constant 0 : i32
    %c0_i32_1 = arith.constant 0 : i32
    return %arg0, %c0_i32, %c0_i32_0 : i32, i32, i32
  }
}

</mosaic_0001>

<llo_original>
// kernel: tpu_custom_call.1
$region0: #{tpu_custom_call.1}
  #allocation0 [shape = 'u32[]', space=smem, size = 0x4, offset = 0x4, fixed_abs, tag = 'smem constant byte address 0x4 - core index']
  #allocation1 [shape = 'u32[144,128]{1,0:T(1,128)}', space=vmem, size = 0x12000, scoped, tag = 'internal scratch']
  %s0 = inlined_call_operand.hbm [shape: bf16[2,256,256], index: 0, kind: input, shape index: {}]
  %s1 = inlined_call_operand.hbm [shape: bf16[256,128], index: 1, kind: input, shape index: {}]
  %s2 = inlined_call_operand.hbm [shape: bf16[9,128,128], index: 2, kind: input, shape index: {}]
  %s3 = inlined_call_operand.hbm [shape: bf16[128,256], index: 3, kind: input, shape index: {}]
  %s4 = inlined_call_operand.hbm [shape: bf16[2,256,256], index: 4, kind: output, shape index: {}]
  %s5 = sld [smem:[#allocation0]]
  $region42: #{tpu_custom_call.1} parent=0
    _
  %s7 = ssub.s32 1, %s5
  %s8 = scalar_select 0, %s7, %s5
  $region1: #{tpu_custom_call.1} parent=0
    #allocation2 [shape = 'u8[262144]{0}', space=vmem, size = 0x40000, scoped, tag = 'input window, operand 0, single buffered']
    #allocation3 [shape = 's32[1]{0}', space=sflag, size = 0x4, scoped, tag = 'scoped memory for tpu_custom_call.1']
    #allocation4 [shape = 's32[1]{0}', space=sflag, size = 0x4, scoped, tag = 'scoped memory for tpu_custom_call.1']
    #allocation5 [shape = 'u8[65536]{0}', space=vmem, size = 0x10000, scoped, tag = 'input window, operand 1, single buffered']
    #allocation6 [shape = 's32[1]{0}', space=sflag, size = 0x4, scoped, tag = 'scoped memory for tpu_custom_call.1']
    #allocation7 [shape = 'u8[294912]{0}', space=vmem, size = 0x48000, scoped, tag = 'input window, operand 2, single buffered']
    #allocation8 [shape = 'u8[65536]{0}', space=vmem, size = 0x10000, scoped, tag = 'input window, operand 3, single buffered']
    #allocation9 [shape = 's32[1]{0}', space=sflag, size = 0x4, scoped, tag = 'scoped memory for tpu_custom_call.1']
    #allocation10 [shape = 'u8[262144]{0}', space=vmem, size = 0x40000, scoped, tag = 'output window, operand 0, single buffered']
    %9 = vsyncpa [#allocation3], 0
    %10 = vsyncpa [#allocation6], 0
    %11 = vsyncpa [#allocation9], 0
    %12 = vsyncpa [#allocation4], 0
    // Predicated region
    $region2: #{tpu_custom_call.1} parent=1 // pred_check
      _
    $region3: #{tpu_custom_call.1} parent=1 // pred_check_branch
      %14 = sbr.rel (0) target = $region5
    $region4: #{tpu_custom_call.1} parent=1 // pred_region
      %s16 = ssub.s32 8192, 8192
      %17 = vsyncadd [#allocation3], %s16
      %s18 = sshll.u32 [#allocation2], 4
      %s19 = int_to_ptr.vmem [resolvable:$true] %s18
      %24 = dma.hbm_to_vmem [thread:$0]  %s0, 8192, %s19, [#allocation3], 128, 128, 8
    $region5: #{tpu_custom_call.1} parent=1 // pred_fallthru
      _
    // Predicated region
    $region6: #{tpu_custom_call.1} parent=1 // pred_check
      _
    $region7: #{tpu_custom_call.1} parent=1 // pred_check_branch
      %26 = sbr.rel (0) target = $region9
    $region8: #{tpu_custom_call.1} parent=1 // pred_region
      %s28 = ssub.s32 2048, 2048
      %29 = vsyncadd [#allocation6], %s28
      %s30 = sshll.u32 [#allocation5], 4
      %s31 = int_to_ptr.vmem [resolvable:$true] %s30
      %36 = dma.hbm_to_vmem [thread:$0]  %s1, 2048, %s31, [#allocation6], 64, 64, 4
    $region9: #{tpu_custom_call.1} parent=1 // pred_fallthru
      _
    // Predicated region
    $region10: #{tpu_custom_call.1} parent=1 // pred_check
      _
    $region11: #{tpu_custom_call.1} parent=1 // pred_check_branch
      %38 = sbr.rel (0) target = $region13
    $region12: #{tpu_custom_call.1} parent=1 // pred_region
      %s40 = ssub.s32 9216, 9216
      %41 = vsyncadd [#allocation6], %s40
      %s42 = sshll.u32 [#allocation7], 4
      %s43 = int_to_ptr.vmem [resolvable:$true] %s42
      %48 = dma.hbm_to_vmem [thread:$0]  %s2, 9216, %s43, [#allocation6], 64, 64, 4
    $region13: #{tpu_custom_call.1} parent=1 // pred_fallthru
      _
    // Predicated region
    $region14: #{tpu_custom_call.1} parent=1 // pred_check
      _
    $region15: #{tpu_custom_call.1} parent=1 // pred_check_branch
      %50 = sbr.rel (0) target = $region17
    $region16: #{tpu_custom_call.1} parent=1 // pred_region
      %s52 = ssub.s32 2048, 2048
      %53 = vsyncadd [#allocation9], %s52
      %s54 = sshll.u32 [#allocation8], 4
      %s55 = int_to_ptr.vmem [resolvable:$true] %s54
      %60 = dma.hbm_to_vmem [thread:$0]  %s3, 2048, %s55, [#allocation9], 128, 128, 8
    $region17: #{tpu_custom_call.1} parent=1 // pred_fallthru
      _
    // Predicated region
    $region18: #{tpu_custom_call.1} parent=1 // pred_check
      _
    $region19: #{tpu_custom_call.1} parent=1 // pred_check_branch
      %62 = sbr.rel (0) target = $region21
    $region20: #{tpu_custom_call.1} parent=1 // pred_region
      %63 = dma.done [#allocation3], 8192
    $region21: #{tpu_custom_call.1} parent=1 // pred_fallthru
      _
    // Predicated region
    $region22: #{tpu_custom_call.1} parent=1 // pred_check
      _
    $region23: #{tpu_custom_call.1} parent=1 // pred_check_branch
      %65 = sbr.rel (0) target = $region25
    $region24: #{tpu_custom_call.1} parent=1 // pred_region
      %66 = dma.done [#allocation6], 2048
    $region25: #{tpu_custom_call.1} parent=1 // pred_fallthru
      _
    // Predicated region
    $region26: #{tpu_custom_call.1} parent=1 // pred_check
      _
    $region27: #{tpu_custom_call.1} parent=1 // pred_check_branch
      %68 = sbr.rel (0) target = $region29
    $region28: #{tpu_custom_call.1} parent=1 // pred_region
      %69 = dma.done [#allocation6], 9216
    $region29: #{tpu_custom_call.1} parent=1 // pred_fallthru
      _
    // Predicated region
    $region30: #{tpu_custom_call.1} parent=1 // pred_check
      _
    $region31: #{tpu_custom_call.1} parent=1 // pred_check_branch
      %71 = sbr.rel (0) target = $region33
    $region32: #{tpu_custom_call.1} parent=1 // pred_region
      %72 = dma.done [#allocation9], 2048
    $region33: #{tpu_custom_call.1} parent=1 // pred_fallthru
      _
    %v74 = vld [vmem:[#allocation2] sm:$0xff]
    %v75 = vld [vmem:[#allocation2 + $0x8] sm:$0xff]
    %v76 = vld [vmem:[#allocation2 + $0x10] sm:$0xff]
    %v77 = vld [vmem:[#allocation2 + $0x18] sm:$0xff]
    %v78 = vld [vmem:[#allocation2 + $0x20] sm:$0xff]
    %v79 = vld [vmem:[#allocation2 + $0x28] sm:$0xff]
    %v80 = vld [vmem:[#allocation2 + $0x30] sm:$0xff]
    %v81 = vld [vmem:[#allocation2 + $0x38] sm:$0xff]
    %v82 = vld [vmem:[#allocation2 + $0x40] sm:$0xff]
    %v83 = vld [vmem:[#allocation2 + $0x48] sm:$0xff]
    %v84 = vld [vmem:[#allocation2 + $0x50] sm:$0xff]
    %v85 = vld [vmem:[#allocation2 + $0x58] sm:$0xff]
    %v86 = vld [vmem:[#allocation2 + $0x60] sm:$0xff]
    %v87 = vld [vmem:[#allocation2 + $0x68] sm:$0xff]
    %v88 = vld [vmem:[#allocation2 + $0x70] sm:$0xff]
    %v89 = vld [vmem:[#allocation2 + $0x78] sm:$0xff]
    %v90 = vld [vmem:[#allocation2 + $0x80] sm:$0xff]
    %v91 = vld [vmem:[#allocation2 + $0x88] sm:$0xff]
    %v92 = vld [vmem:[#allocation2 + $0x90] sm:$0xff]
    %v93 = vld [vmem:[#allocation2 + $0x98] sm:$0xff]
    %v94 = vld [vmem:[#allocation2 + $0xa0] sm:$0xff]
    %v95 = vld [vmem:[#allocation2 + $0xa8] sm:$0xff]
    %v96 = vld [vmem:[#allocation2 + $0xb0] sm:$0xff]
    %v97 = vld [vmem:[#allocation2 + $0xb8] sm:$0xff]
    %v98 = vld [vmem:[#allocation2 + $0xc0] sm:$0xff]
    %v99 = vld [vmem:[#allocation2 + $0xc8] sm:$0xff]
    %v100 = vld [vmem:[#allocation2 + $0xd0] sm:$0xff]
    %v101 = vld [vmem:[#allocation2 + $0xd8] sm:$0xff]
    %v102 = vld [vmem:[#allocation2 + $0xe0] sm:$0xff]
    %v103 = vld [vmem:[#allocation2 + $0xe8] sm:$0xff]
    %v104 = vld [vmem:[#allocation2 + $0xf0] sm:$0xff]
    %v105 = vld [vmem:[#allocation2 + $0xf8] sm:$0xff]
    %v106 = vld [vmem:[#allocation2 + $0x100] sm:$0xff]
    %v107 = vld [vmem:[#allocation2 + $0x108] sm:$0xff]
    %v108 = vld [vmem:[#allocation2 + $0x110] sm:$0xff]
    %v109 = vld [vmem:[#allocation2 + $0x118] sm:$0xff]
    %v110 = vld [vmem:[#allocation2 + $0x120] sm:$0xff]
    %v111 = vld [vmem:[#allocation2 + $0x128] sm:$0xff]
    %v112 = vld [vmem:[#allocation2 + $0x130] sm:$0xff]
    %v113 = vld [vmem:[#allocation2 + $0x138] sm:$0xff]
    %v114 = vld [vmem:[#allocation2 + $0x140] sm:$0xff]
    %v115 = vld [vmem:[#allocation2 + $0x148] sm:$0xff]
    %v116 = vld [vmem:[#allocation2 + $0x150] sm:$0xff]
    %v117 = vld [vmem:[#allocation2 + $0x158] sm:$0xff]
    %v118 = vld [vmem:[#allocation2 + $0x160] sm:$0xff]
    %v119 = vld [vmem:[#allocation2 + $0x168] sm:$0xff]
    %v120 = vld [vmem:[#allocation2 + $0x170] sm:$0xff]
    %v121 = vld [vmem:[#allocation2 + $0x178] sm:$0xff]
    %v122 = vld [vmem:[#allocation2 + $0x180] sm:$0xff]
    %v123 = vld [vmem:[#allocation2 + $0x188] sm:$0xff]
    %v124 = vld [vmem:[#allocation2 + $0x190] sm:$0xff]
    %v125 = vld [vmem:[#allocation2 + $0x198] sm:$0xff]
    %v126 = vld [vmem:[#allocation2 + $0x1a0] sm:$0xff]
    %v127 = vld [vmem:[#allocation2 + $0x1a8] sm:$0xff]
    %v128 = vld [vmem:[#allocation2 + $0x1b0] sm:$0xff]
    %v129 = vld [vmem:[#allocation2 + $0x1b8] sm:$0xff]
    %v130 = vld [vmem:[#allocation2 + $0x1c0] sm:$0xff]
    %v131 = vld [vmem:[#allocation2 + $0x1c8] sm:$0xff]
    %v132 = vld [vmem:[#allocation2 + $0x1d0] sm:$0xff]
    %v133 = vld [vmem:[#allocation2 + $0x1d8] sm:$0xff]
    %v134 = vld [vmem:[#allocation2 + $0x1e0] sm:$0xff]
    %v135 = vld [vmem:[#allocation2 + $0x1e8] sm:$0xff]
    %v136 = vld [vmem:[#allocation2 + $0x1f0] sm:$0xff]
    %v137 = vld [vmem:[#allocation2 + $0x1f8] sm:$0xff]
    %v138 = vld [vmem:[#allocation5] sm:$0xf]
    %v139 = vld [vmem:[#allocation5 + $0x4] sm:$0xf]
    %v140 = vld [vmem:[#allocation5 + $0x8] sm:$0xf]
    %v141 = vld [vmem:[#allocation5 + $0xc] sm:$0xf]
    %v142 = vld [vmem:[#allocation5 + $0x10] sm:$0xf]
    %v143 = vld [vmem:[#allocation5 + $0x14] sm:$0xf]
    %v144 = vld [vmem:[#allocation5 + $0x18] sm:$0xf]
    %v145 = vld [vmem:[#allocation5 + $0x1c] sm:$0xf]
    %v146 = vld [vmem:[#allocation5 + $0x20] sm:$0xf]
    %v147 = vld [vmem:[#allocation5 + $0x24] sm:$0xf]
    %v148 = vld [vmem:[#allocation5 + $0x28] sm:$0xf]
    %v149 = vld [vmem:[#allocation5 + $0x2c] sm:$0xf]
    %v150 = vld [vmem:[#allocation5 + $0x30] sm:$0xf]
    %v151 = vld [vmem:[#allocation5 + $0x34] sm:$0xf]
    %v152 = vld [vmem:[#allocation5 + $0x38] sm:$0xf]
    %v153 = vld [vmem:[#allocation5 + $0x3c] sm:$0xf]
    %v154 = vld [vmem:[#allocation5 + $0x40] sm:$0xf]
    %v155 = vld [vmem:[#allocation5 + $0x44] sm:$0xf]
    %v156 = vld [vmem:[#allocation5 + $0x48] sm:$0xf]
    %v157 = vld [vmem:[#allocation5 + $0x4c] sm:$0xf]
    %v158 = vld [vmem:[#allocation5 + $0x50] sm:$0xf]
    %v159 = vld [vmem:[#allocation5 + $0x54] sm:$0xf]
    %v160 = vld [vmem:[#allocation5 + $0x58] sm:$0xf]
    %v161 = vld [vmem:[#allocation5 + $0x5c] sm:$0xf]
    %v162 = vld [vmem:[#allocation5 + $0x60] sm:$0xf]
    %v163 = vld [vmem:[#allocation5 + $0x64] sm:$0xf]
    %v164 = vld [vmem:[#allocation5 + $0x68] sm:$0xf]
    %v165 = vld [vmem:[#allocation5 + $0x6c] sm:$0xf]
    %v166 = vld [vmem:[#allocation5 + $0x70] sm:$0xf]
    %v167 = vld [vmem:[#allocation5 + $0x74] sm:$0xf]
    %v168 = vld [vmem:[#allocation5 + $0x78] sm:$0xf]
    %v169 = vld [vmem:[#allocation5 + $0x7c] sm:$0xf]
    %v234 = vunpack.c.l.b16 %v74
    %v235 = vunpack.c.h.b16 %v74
    %v236 = vunpack.c.l.b16 %v75
    %v237 = vunpack.c.h.b16 %v75
    %v238 = vunpack.c.l.b16 %v76
    %v239 = vunpack.c.h.b16 %v76
    %v240 = vunpack.c.l.b16 %v77
    %v241 = vunpack.c.h.b16 %v77
    %v242 = vunpack.c.l.b16 %v78
    %v243 = vunpack.c.h.b16 %v78
    %v244 = vunpack.c.l.b16 %v79
    %v245 = vunpack.c.h.b16 %v79
    %v246 = vunpack.c.l.b16 %v80
    %v247 = vunpack.c.h.b16 %v80
    %v248 = vunpack.c.l.b16 %v81
    %v249 = vunpack.c.h.b16 %v81
    %v250 = vunpack.c.l.b16 %v82
    %v251 = vunpack.c.h.b16 %v82
    %v252 = vunpack.c.l.b16 %v83
    %v253 = vunpack.c.h.b16 %v83
    %v254 = vunpack.c.l.b16 %v84
    %v255 = vunpack.c.h.b16 %v84
    %v256 = vunpack.c.l.b16 %v85
    %v257 = vunpack.c.h.b16 %v85
    %v258 = vunpack.c.l.b16 %v86
    %v259 = vunpack.c.h.b16 %v86
    %v260 = vunpack.c.l.b16 %v87
    %v261 = vunpack.c.h.b16 %v87
    %v262 = vunpack.c.l.b16 %v88
    %v263 = vunpack.c.h.b16 %v88
    %v264 = vunpack.c.l.b16 %v89
    %v265 = vunpack.c.h.b16 %v89
    %v266 = vunpack.c.l.b16 %v90
    %v267 = vunpack.c.h.b16 %v90
    %v268 = vunpack.c.l.b16 %v91
    %v269 = vunpack.c.h.b16 %v91
    %v270 = vunpack.c.l.b16 %v92
    %v271 = vunpack.c.h.b16 %v92
    %v272 = vunpack.c.l.b16 %v93
    %v273 = vunpack.c.h.b16 %v93
    %v274 = vunpack.c.l.b16 %v94
    %v275 = vunpack.c.h.b16 %v94
    %v276 = vunpack.c.l.b16 %v95
    %v277 = vunpack.c.h.b16 %v95
    %v278 = vunpack.c.l.b16 %v96
    %v279 = vunpack.c.h.b16 %v96
    %v280 = vunpack.c.l.b16 %v97
    %v281 = vunpack.c.h.b16 %v97
    %v282 = vunpack.c.l.b16 %v98
    %v283 = vunpack.c.h.b16 %v98
    %v284 = vunpack.c.l.b16 %v99
    %v285 = vunpack.c.h.b16 %v99
    %v286 = vunpack.c.l.b16 %v100
    %v287 = vunpack.c.h.b16 %v100
    %v288 = vunpack.c.l.b16 %v101
    %v289 = vunpack.c.h.b16 %v101
    %v290 = vunpack.c.l.b16 %v102
    %v291 = vunpack.c.h.b16 %v102
    %v292 = vunpack.c.l.b16 %v103
    %v293 = vunpack.c.h.b16 %v103
    %v294 = vunpack.c.l.b16 %v104
    %v295 = vunpack.c.h.b16 %v104
    %v296 = vunpack.c.l.b16 %v105
    %v297 = vunpack.c.h.b16 %v105
    %v298 = vunpack.c.l.b16 %v106
    %v299 = vunpack.c.h.b16 %v106
    %v300 = vunpack.c.l.b16 %v107
    %v301 = vunpack.c.h.b16 %v107
    %v302 = vunpack.c.l.b16 %v108
    %v303 = vunpack.c.h.b16 %v108
    %v304 = vunpack.c.l.b16 %v109
    %v305 = vunpack.c.h.b16 %v109
    %v306 = vunpack.c.l.b16 %v110
    %v307 = vunpack.c.h.b16 %v110
    %v308 = vunpack.c.l.b16 %v111
    %v309 = vunpack.c.h.b16 %v111
    %v310 = vunpack.c.l.b16 %v112
    %v311 = vunpack.c.h.b16 %v112
    %v312 = vunpack.c.l.b16 %v113
    %v313 = vunpack.c.h.b16 %v113
    %v314 = vunpack.c.l.b16 %v114
    %v315 = vunpack.c.h.b16 %v114
    %v316 = vunpack.c.l.b16 %v115
    %v317 = vunpack.c.h.b16 %v115
    %v318 = vunpack.c.l.b16 %v116
    %v319 = vunpack.c.h.b16 %v116
    %v320 = vunpack.c.l.b16 %v117
    %v321 = vunpack.c.h.b16 %v117
    %v322 = vunpack.c.l.b16 %v118
    %v323 = vunpack.c.h.b16 %v118
    %v324 = vunpack.c.l.b16 %v119
    %v325 = vunpack.c.h.b16 %v119
    %v326 = vunpack.c.l.b16 %v120
    %v327 = vunpack.c.h.b16 %v120
    %v328 = vunpack.c.l.b16 %v121
    %v329 = vunpack.c.h.b16 %v121
    %v330 = vunpack.c.l.b16 %v122
    %v331 = vunpack.c.h.b16 %v122
    %v332 = vunpack.c.l.b16 %v123
    %v333 = vunpack.c.h.b16 %v123
    %v334 = vunpack.c.l.b16 %v124
    %v335 = vunpack.c.h.b16 %v124
    %v336 = vunpack.c.l.b16 %v125
    %v337 = vunpack.c.h.b16 %v125
    %v338 = vunpack.c.l.b16 %v126
    %v339 = vunpack.c.h.b16 %v126
    %v340 = vunpack.c.l.b16 %v127
    %v341 = vunpack.c.h.b16 %v127
    %v342 = vunpack.c.l.b16 %v128
    %v343 = vunpack.c.h.b16 %v128
    %v344 = vunpack.c.l.b16 %v129
    %v345 = vunpack.c.h.b16 %v129
    %v346 = vunpack.c.l.b16 %v130
    %v347 = vunpack.c.h.b16 %v130
    %v348 = vunpack.c.l.b16 %v131
    %v349 = vunpack.c.h.b16 %v131
    %v350 = vunpack.c.l.b16 %v132
    %v351 = vunpack.c.h.b16 %v132
    %v352 = vunpack.c.l.b16 %v133
    %v353 = vunpack.c.h.b16 %v133
    %v354 = vunpack.c.l.b16 %v134
    %v355 = vunpack.c.h.b16 %v134
    %v356 = vunpack.c.l.b16 %v135
    %v357 = vunpack.c.h.b16 %v135
    %v358 = vunpack.c.l.b16 %v136
    %v359 = vunpack.c.h.b16 %v136
    %v360 = vunpack.c.l.b16 %v137
    %v361 = vunpack.c.h.b16 %v137
    %v362 = vpack.c.b16 %v236, %v234
    %v363 = vpack.c.b16 %v237, %v235
    %v364 = vpack.c.b16 %v240, %v238
    %v365 = vpack.c.b16 %v241, %v239
    %v366 = vpack.c.b16 %v244, %v242
    %v367 = vpack.c.b16 %v245, %v243
    %v368 = vpack.c.b16 %v248, %v246
    %v369 = vpack.c.b16 %v249, %v247
    %v370 = vpack.c.b16 %v252, %v250
    %v371 = vpack.c.b16 %v253, %v251
    %v372 = vpack.c.b16 %v256, %v254
    %v373 = vpack.c.b16 %v257, %v255
    %v374 = vpack.c.b16 %v260, %v258
    %v375 = vpack.c.b16 %v261, %v259
    %v376 = vpack.c.b16 %v264, %v262
    %v377 = vpack.c.b16 %v265, %v263
    %v378 = vpack.c.b16 %v268, %v266
    %v379 = vpack.c.b16 %v269, %v267
    %v380 = vpack.c.b16 %v272, %v270
    %v381 = vpack.c.b16 %v273, %v271
    %v382 = vpack.c.b16 %v276, %v274
    %v383 = vpack.c.b16 %v277, %v275
    %v384 = vpack.c.b16 %v280, %v278
    %v385 = vpack.c.b16 %v281, %v279
    %v386 = vpack.c.b16 %v284, %v282
    %v387 = vpack.c.b16 %v285, %v283
    %v388 = vpack.c.b16 %v288, %v286
    %v389 = vpack.c.b16 %v289, %v287
    %v390 = vpack.c.b16 %v292, %v290
    %v391 = vpack.c.b16 %v293, %v291
    %v392 = vpack.c.b16 %v296, %v294
    %v393 = vpack.c.b16 %v297, %v295
    %v394 = vpack.c.b16 %v300, %v298
    %v395 = vpack.c.b16 %v301, %v299
    %v396 = vpack.c.b16 %v304, %v302
    %v397 = vpack.c.b16 %v305, %v303
    %v398 = vpack.c.b16 %v308, %v306
    %v399 = vpack.c.b16 %v309, %v307
    %v400 = vpack.c.b16 %v312, %v310
    %v401 = vpack.c.b16 %v313, %v311
    %v402 = vpack.c.b16 %v316, %v314
    %v403 = vpack.c.b16 %v317, %v315
    %v404 = vpack.c.b16 %v320, %v318
    %v405 = vpack.c.b16 %v321, %v319
    %v406 = vpack.c.b16 %v324, %v322
    %v407 = vpack.c.b16 %v325, %v323
    %v408 = vpack.c.b16 %v328, %v326
    %v409 = vpack.c.b16 %v329, %v327
    %v410 = vpack.c.b16 %v332, %v330
    %v411 = vpack.c.b16 %v333, %v331
    %v412 = vpack.c.b16 %v336, %v334
    %v413 = vpack.c.b16 %v337, %v335
    %v414 = vpack.c.b16 %v340, %v338
    %v415 = vpack.c.b16 %v341, %v339
    %v416 = vpack.c.b16 %v344, %v342
    %v417 = vpack.c.b16 %v345, %v343
    %v418 = vpack.c.b16 %v348, %v346
    %v419 = vpack.c.b16 %v349, %v347
    %v420 = vpack.c.b16 %v352, %v350
    %v421 = vpack.c.b16 %v353, %v351
    %v422 = vpack.c.b16 %v356, %v354
    %v423 = vpack.c.b16 %v357, %v355
    %v424 = vpack.c.b16 %v360, %v358
    %v425 = vpack.c.b16 %v361, %v359
    %v522 = vunpack.c.l.b16 %v138
    %v523 = vunpack.c.l.b16 %v139
    %v524 = vunpack.c.l.b16 %v140
    %v525 = vunpack.c.l.b16 %v141
    %v526 = vunpack.c.l.b16 %v142
    %v527 = vunpack.c.l.b16 %v143
    %v528 = vunpack.c.l.b16 %v144
    %v529 = vunpack.c.l.b16 %v145
    %v530 = vunpack.c.l.b16 %v146
    %v531 = vunpack.c.l.b16 %v147
    %v532 = vunpack.c.l.b16 %v148
    %v533 = vunpack.c.l.b16 %v149
    %v534 = vunpack.c.l.b16 %v150
    %v535 = vunpack.c.l.b16 %v151
    %v536 = vunpack.c.l.b16 %v152
    %v537 = vunpack.c.l.b16 %v153
    %v538 = vunpack.c.l.b16 %v154
    %v539 = vunpack.c.l.b16 %v155
    %v540 = vunpack.c.l.b16 %v156
    %v541 = vunpack.c.l.b16 %v157
    %v542 = vunpack.c.l.b16 %v158
    %v543 = vunpack.c.l.b16 %v159
    %v544 = vunpack.c.l.b16 %v160
    %v545 = vunpack.c.l.b16 %v161
    %v546 = vunpack.c.l.b16 %v162
    %v547 = vunpack.c.l.b16 %v163
    %v548 = vunpack.c.l.b16 %v164
    %v549 = vunpack.c.l.b16 %v165
    %v550 = vunpack.c.l.b16 %v166
    %v551 = vunpack.c.l.b16 %v167
    %v552 = vunpack.c.l.b16 %v168
    %v553 = vunpack.c.l.b16 %v169
    %v554 = vpack.c.b16 %v523, %v522
    %v555 = vpack.c.b16 %v525, %v524
    %v556 = vpack.c.b16 %v527, %v526
    %v557 = vpack.c.b16 %v529, %v528
    %v558 = vpack.c.b16 %v531, %v530
    %v559 = vpack.c.b16 %v533, %v532
    %v560 = vpack.c.b16 %v535, %v534
    %v561 = vpack.c.b16 %v537, %v536
    %v562 = vpack.c.b16 %v539, %v538
    %v563 = vpack.c.b16 %v541, %v540
    %v564 = vpack.c.b16 %v543, %v542
    %v565 = vpack.c.b16 %v545, %v544
    %v566 = vpack.c.b16 %v547, %v546
    %v567 = vpack.c.b16 %v549, %v548
    %v568 = vpack.c.b16 %v551, %v550
    %v569 = vpack.c.b16 %v553, %v552
    %586 = vmatprep.subr.bf16.mxu0 0
    %587 = vmatpush1.bf16.msra.mxu0 %v554
    %588 = vmatprep.subr.bf16.mxu0 0
    %589 = vmatpush1.bf16.msra.mxu0 %v555
    %590 = vmatprep.subr.bf16.mxu0 0
    %591 = vmatpush1.bf16.msra.mxu0 %v556
    %592 = vmatprep.subr.bf16.mxu0 0
    %593 = vmatpush1.bf16.msra.mxu0 %v557
    %594 = vmatprep.subr.bf16.mxu0 0
    %595 = vmatpush1.bf16.msra.mxu0 %v558
    %596 = vmatprep.subr.bf16.mxu0 0
    %597 = vmatpush1.bf16.msra.mxu0 %v559
    %598 = vmatprep.subr.bf16.mxu0 0
    %599 = vmatpush1.bf16.msra.mxu0 %v560
    %600 = vmatprep.subr.bf16.mxu0 0
    %601 = vmatpush1.bf16.msra.mxu0 %v561
    %602 = vmatprep.subr.bf16.mxu0 0
    %603 = vmatpush1.bf16.msra.mxu0 %v562
    %604 = vmatprep.subr.bf16.mxu0 0
    %605 = vmatpush1.bf16.msra.mxu0 %v563
    %606 = vmatprep.subr.bf16.mxu0 0
    %607 = vmatpush1.bf16.msra.mxu0 %v564
    %608 = vmatprep.subr.bf16.mxu0 0
    %609 = vmatpush1.bf16.msra.mxu0 %v565
    %610 = vmatprep.subr.bf16.mxu0 0
    %611 = vmatpush1.bf16.msra.mxu0 %v566
    %612 = vmatprep.subr.bf16.mxu0 0
    %613 = vmatpush1.bf16.msra.mxu0 %v567
    %614 = vmatprep.subr.bf16.mxu0 0
    %615 = vmatpush1.bf16.msra.mxu0 %v568
    %616 = vmatprep.subr.bf16.mxu0 0
    %617 = vmatpush1.bf16.msra.mxu0 %v569
    %618 = vmatprep.mubr.bf16.mxu0 %v363
    %619 = vmatmul.mubr.bf16.gmra.mrb[0].mxu0 %v362
    %v620 = vpop.f32.mrb[0].mxu0
    %v621 = vadd.f32 0.0, %v620
    %v622 = vpop.f32.mrb[0].mxu0
    %v623 = vpop.f32.mrb[0].mxu0
    %v624 = vadd.f32 0.0, %v623
    %v625 = vpop.f32.mrb[0].mxu0
    %626 = vmatprep.mubr.bf16.mxu0 %v365
    %627 = vmatmul.mubr.bf16.gmra.mrb[0].mxu0 %v364
    %v628 = vpop.f32.mrb[0].mxu0
    %v629 = vadd.f32 0.0, %v628
    %v630 = vpop.f32.mrb[0].mxu0
    %v631 = vpop.f32.mrb[0].mxu0
    %v632 = vadd.f32 0.0, %v631
    %v633 = vpop.f32.mrb[0].mxu0
    %634 = vmatprep.mubr.bf16.mxu0 %v367
    %635 = vmatmul.mubr.bf16.gmra.mrb[0].mxu0 %v366
    %v636 = vpop.f32.mrb[0].mxu0
    %v637 = vadd.f32 0.0, %v636
    %v638 = vpop.f32.mrb[0].mxu0
    %v639 = vpop.f32.mrb[0].mxu0
    %v640 = vadd.f32 0.0, %v639
    %v641 = vpop.f32.mrb[0].mxu0
    %642 = vmatprep.mubr.bf16.mxu0 %v369
    %643 = vmatmul.mubr.bf16.gmra.mrb[0].mxu0 %v368
    %v644 = vpop.f32.mrb[0].mxu0
    %v645 = vadd.f32 0.0, %v644
    %v646 = vpop.f32.mrb[0].mxu0
    %v647 = vpop.f32.mrb[0].mxu0
    %v648 = vadd.f32 0.0, %v647
    %v649 = vpop.f32.mrb[0].mxu0
    %650 = vmatprep.mubr.bf16.mxu0 %v371
    %651 = vmatmul.mubr.bf16.gmra.mrb[0].mxu0 %v370
    %v652 = vpop.f32.mrb[0].mxu0
    %v653 = vadd.f32 0.0, %v652
    %v654 = vpop.f32.mrb[0].mxu0
    %v655 = vpop.f32.mrb[0].mxu0
    %v656 = vadd.f32 0.0, %v655
    %v657 = vpop.f32.mrb[0].mxu0
    %658 = vmatprep.mubr.bf16.mxu0 %v373
    %659 = vmatmul.mubr.bf16.gmra.mrb[0].mxu0 %v372
    %v660 = vpop.f32.mrb[0].mxu0
    %v661 = vadd.f32 0.0, %v660
    %v662 = vpop.f32.mrb[0].mxu0
    %v663 = vpop.f32.mrb[0].mxu0
    %v664 = vadd.f32 0.0, %v663
    %v665 = vpop.f32.mrb[0].mxu0
    %666 = vmatprep.mubr.bf16.mxu0 %v375
    %667 = vmatmul.mubr.bf16.gmra.mrb[0].mxu0 %v374
    %v668 = vpop.f32.mrb[0].mxu0
    %v669 = vadd.f32 0.0, %v668
    %v670 = vpop.f32.mrb[0].mxu0
    %v671 = vpop.f32.mrb[0].mxu0
    %v672 = vadd.f32 0.0, %v671
    %v673 = vpop.f32.mrb[0].mxu0
    %674 = vmatprep.mubr.bf16.mxu0 %v377
    %675 = vmatmul.mubr.bf16.gmra.mrb[0].mxu0 %v376
    %v676 = vpop.f32.mrb[0].mxu0
    %v677 = vadd.f32 0.0, %v676
    %v678 = vpop.f32.mrb[0].mxu0
    %v679 = vpop.f32.mrb[0].mxu0
    %v680 = vadd.f32 0.0, %v679
    %v681 = vpop.f32.mrb[0].mxu0
    %682 = vmatprep.mubr.bf16.mxu0 %v379
    %683 = vmatmul.mubr.bf16.gmra.mrb[0].mxu0 %v378
    %v684 = vpop.f32.mrb[0].mxu0
    %v685 = vadd.f32 0.0, %v684
    %v686 = vpop.f32.mrb[0].mxu0
    %v687 = vpop.f32.mrb[0].mxu0
    %v688 = vadd.f32 0.0, %v687
    %v689 = vpop.f32.mrb[0].mxu0
    %690 = vmatprep.mubr.bf16.mxu0 %v381
    %691 = vmatmul.mubr.bf16.gmra.mrb[0].mxu0 %v380
    %v692 = vpop.f32.mrb[0].mxu0
    %v693 = vadd.f32 0.0, %v692
    %v694 = vpop.f32.mrb[0].mxu0
    %v695 = vpop.f32.mrb[0].mxu0
    %v696 = vadd.f32 0.0, %v695
    %v697 = vpop.f32.mrb[0].mxu0
    %698 = vmatprep.mubr.bf16.mxu0 %v383
    %699 = vmatmul.mubr.bf16.gmra.mrb[0].mxu0 %v382
    %v700 = vpop.f32.mrb[0].mxu0
    %v701 = vadd.f32 0.0, %v700
    %v702 = vpop.f32.mrb[0].mxu0
    %v703 = vpop.f32.mrb[0].mxu0
    %v704 = vadd.f32 0.0, %v703
    %v705 = vpop.f32.mrb[0].mxu0
    %706 = vmatprep.mubr.bf16.mxu0 %v385
    %707 = vmatmul.mubr.bf16.gmra.mrb[0].mxu0 %v384
    %v708 = vpop.f32.mrb[0].mxu0
    %v709 = vadd.f32 0.0, %v708
    %v710 = vpop.f32.mrb[0].mxu0
    %v711 = vpop.f32.mrb[0].mxu0
    %v712 = vadd.f32 0.0, %v711
    %v713 = vpop.f32.mrb[0].mxu0
    %714 = vmatprep.mubr.bf16.mxu0 %v387
    %715 = vmatmul.mubr.bf16.gmra.mrb[0].mxu0 %v386
    %v716 = vpop.f32.mrb[0].mxu0
    %v717 = vadd.f32 0.0, %v716
    %v718 = vpop.f32.mrb[0].mxu0
    %v719 = vpop.f32.mrb[0].mxu0
    %v720 = vadd.f32 0.0, %v719
    %v721 = vpop.f32.mrb[0].mxu0
    %722 = vmatprep.mubr.bf16.mxu0 %v389
    %723 = vmatmul.mubr.bf16.gmra.mrb[0].mxu0 %v388
    %v724 = vpop.f32.mrb[0].mxu0
    %v725 = vadd.f32 0.0, %v724
    %v726 = vpop.f32.mrb[0].mxu0
    %v727 = vpop.f32.mrb[0].mxu0
    %v728 = vadd.f32 0.0, %v727
    %v729 = vpop.f32.mrb[0].mxu0
    %730 = vmatprep.mubr.bf16.mxu0 %v391
    %731 = vmatmul.mubr.bf16.gmra.mrb[0].mxu0 %v390
    %v732 = vpop.f32.mrb[0].mxu0
    %v733 = vadd.f32 0.0, %v732
    %v734 = vpop.f32.mrb[0].mxu0
    %v735 = vpop.f32.mrb[0].mxu0
    %v736 = vadd.f32 0.0, %v735
    %v737 = vpop.f32.mrb[0].mxu0
    %738 = vmatprep.mubr.bf16.mxu0 %v393
    %739 = vmatmul.mubr.bf16.gmra.mrb[0].mxu0 %v392
    %v740 = vpop.f32.mrb[0].mxu0
    %v741 = vadd.f32 0.0, %v740
    %v742 = vpop.f32.mrb[0].mxu0
    %v743 = vpop.f32.mrb[0].mxu0
    %v744 = vadd.f32 0.0, %v743
    %v745 = vpop.f32.mrb[0].mxu0
    %746 = vmatprep.mubr.bf16.mxu0 %v395
    %747 = vmatmul.mubr.bf16.gmra.mrb[0].mxu0 %v394
    %v748 = vpop.f32.mrb[0].mxu0
    %v749 = vadd.f32 0.0, %v748
    %v750 = vpop.f32.mrb[0].mxu0
    %v751 = vpop.f32.mrb[0].mxu0
    %v752 = vadd.f32 0.0, %v751
    %v753 = vpop.f32.mrb[0].mxu0
    %754 = vmatprep.mubr.bf16.mxu0 %v397
    %755 = vmatmul.mubr.bf16.gmra.mrb[0].mxu0 %v396
    %v756 = vpop.f32.mrb[0].mxu0
    %v757 = vadd.f32 0.0, %v756
    %v758 = vpop.f32.mrb[0].mxu0
    %v759 = vpop.f32.mrb[0].mxu0
    %v760 = vadd.f32 0.0, %v759
    %v761 = vpop.f32.mrb[0].mxu0
    %762 = vmatprep.mubr.bf16.mxu0 %v399
    %763 = vmatmul.mubr.bf16.gmra.mrb[0].mxu0 %v398
    %v764 = vpop.f32.mrb[0].mxu0
    %v765 = vadd.f32 0.0, %v764
    %v766 = vpop.f32.mrb[0].mxu0
    %v767 = vpop.f32.mrb[0].mxu0
    %v768 = vadd.f32 0.0, %v767
    %v769 = vpop.f32.mrb[0].mxu0
    %770 = vmatprep.mubr.bf16.mxu0 %v401
    %771 = vmatmul.mubr.bf16.gmra.mrb[0].mxu0 %v400
    %v772 = vpop.f32.mrb[0].mxu0
    %v773 = vadd.f32 0.0, %v772
    %v774 = vpop.f32.mrb[0].mxu0
    %v775 = vpop.f32.mrb[0].mxu0
    %v776 = vadd.f32 0.0, %v775
    %v777 = vpop.f32.mrb[0].mxu0
    %778 = vmatprep.mubr.bf16.mxu0 %v403
    %779 = vmatmul.mubr.bf16.gmra.mrb[0].mxu0 %v402
    %v780 = vpop.f32.mrb[0].mxu0
    %v781 = vadd.f32 0.0, %v780
    %v782 = vpop.f32.mrb[0].mxu0
    %v783 = vpop.f32.mrb[0].mxu0
    %v784 = vadd.f32 0.0, %v783
    %v785 = vpop.f32.mrb[0].mxu0
    %786 = vmatprep.mubr.bf16.mxu0 %v405
    %787 = vmatmul.mubr.bf16.gmra.mrb[0].mxu0 %v404
    %v788 = vpop.f32.mrb[0].mxu0
    %v789 = vadd.f32 0.0, %v788
    %v790 = vpop.f32.mrb[0].mxu0
    %v791 = vpop.f32.mrb[0].mxu0
    %v792 = vadd.f32 0.0, %v791
    %v793 = vpop.f32.mrb[0].mxu0
    %794 = vmatprep.mubr.bf16.mxu0 %v407
    %795 = vmatmul.mubr.bf16.gmra.mrb[0].mxu0 %v406
    %v796 = vpop.f32.mrb[0].mxu0
    %v797 = vadd.f32 0.0, %v796
    %v798 = vpop.f32.mrb[0].mxu0
    %v799 = vpop.f32.mrb[0].mxu0
    %v800 = vadd.f32 0.0, %v799
    %v801 = vpop.f32.mrb[0].mxu0
    %802 = vmatprep.mubr.bf16.mxu0 %v409
    %803 = vmatmul.mubr.bf16.gmra.mrb[0].mxu0 %v408
    %v804 = vpop.f32.mrb[0].mxu0
    %v805 = vadd.f32 0.0, %v804
    %v806 = vpop.f32.mrb[0].mxu0
    %v807 = vpop.f32.mrb[0].mxu0
    %v808 = vadd.f32 0.0, %v807
    %v809 = vpop.f32.mrb[0].mxu0
    %810 = vmatprep.mubr.bf16.mxu0 %v411
    %811 = vmatmul.mubr.bf16.gmra.mrb[0].mxu0 %v410
    %v812 = vpop.f32.mrb[0].mxu0
    %v813 = vadd.f32 0.0, %v812
    %v814 = vpop.f32.mrb[0].mxu0
    %v815 = vpop.f32.mrb[0].mxu0
    %v816 = vadd.f32 0.0, %v815
    %v817 = vpop.f32.mrb[0].mxu0
    %818 = vmatprep.mubr.bf16.mxu0 %v413
    %819 = vmatmul.mubr.bf16.gmra.mrb[0].mxu0 %v412
    %v820 = vpop.f32.mrb[0].mxu0
    %v821 = vadd.f32 0.0, %v820
    %v822 = vpop.f32.mrb[0].mxu0
    %v823 = vpop.f32.mrb[0].mxu0
    %v824 = vadd.f32 0.0, %v823
    %v825 = vpop.f32.mrb[0].mxu0
    %826 = vmatprep.mubr.bf16.mxu0 %v415
    %827 = vmatmul.mubr.bf16.gmra.mrb[0].mxu0 %v414
    %v828 = vpop.f32.mrb[0].mxu0
    %v829 = vadd.f32 0.0, %v828
    %v830 = vpop.f32.mrb[0].mxu0
    %v831 = vpop.f32.mrb[0].mxu0
    %v832 = vadd.f32 0.0, %v831
    %v833 = vpop.f32.mrb[0].mxu0
    %834 = vmatprep.mubr.bf16.mxu0 %v417
    %835 = vmatmul.mubr.bf16.gmra.mrb[0].mxu0 %v416
    %v836 = vpop.f32.mrb[0].mxu0
    %v837 = vadd.f32 0.0, %v836
    %v838 = vpop.f32.mrb[0].mxu0
    %v839 = vpop.f32.mrb[0].mxu0
    %v840 = vadd.f32 0.0, %v839
    %v841 = vpop.f32.mrb[0].mxu0
    %842 = vmatprep.mubr.bf16.mxu0 %v419
    %843 = vmatmul.mubr.bf16.gmra.mrb[0].mxu0 %v418
    %v844 = vpop.f32.mrb[0].mxu0
    %v845 = vadd.f32 0.0, %v844
    %v846 = vpop.f32.mrb[0].mxu0
    %v847 = vpop.f32.mrb[0].mxu0
    %v848 = vadd.f32 0.0, %v847
    %v849 = vpop.f32.mrb[0].mxu0
    %850 = vmatprep.mubr.bf16.mxu0 %v421
    %851 = vmatmul.mubr.bf16.gmra.mrb[0].mxu0 %v420
    %v852 = vpop.f32.mrb[0].mxu0
    %v853 = vadd.f32 0.0, %v852
    %v854 = vpop.f32.mrb[0].mxu0
    %v855 = vpop.f32.mrb[0].mxu0
    %v856 = vadd.f32 0.0, %v855
    %v857 = vpop.f32.mrb[0].mxu0
    %858 = vmatprep.mubr.bf16.mxu0 %v423
    %859 = vmatmul.mubr.bf16.gmra.mrb[0].mxu0 %v422
    %v860 = vpop.f32.mrb[0].mxu0
    %v861 = vadd.f32 0.0, %v860
    %v862 = vpop.f32.mrb[0].mxu0
    %v863 = vpop.f32.mrb[0].mxu0
    %v864 = vadd.f32 0.0, %v863
    %v865 = vpop.f32.mrb[0].mxu0
    %866 = vmatprep.mubr.bf16.mxu0 %v425
    %867 = vmatmul.mubr.bf16.gmra.mrb[0].mxu0 %v424
    %v868 = vpop.f32.mrb[0].mxu0
    %v869 = vadd.f32 0.0, %v868
    %v870 = vpop.f32.mrb[0].mxu0
    %v871 = vpop.f32.mrb[0].mxu0
    %v872 = vadd.f32 0.0, %v871
    %v873 = vpop.f32.mrb[0].mxu0
    %874 = vdwg.mxu0
    %v875 = vmul.f32 %v621, 0.2
    %v876 = vmul.f32 %v624, 0.2
    %v877 = vmul.f32 %v629, 0.2
    %v878 = vmul.f32 %v632, 0.2
    %v879 = vmul.f32 %v637, 0.2
    %v880 = vmul.f32 %v640, 0.2
    %v881 = vmul.f32 %v645, 0.2
    %v882 = vmul.f32 %v648, 0.2
    %v883 = vmul.f32 %v653, 0.2
    %v884 = vmul.f32 %v656, 0.2
    %v885 = vmul.f32 %v661, 0.2
    %v886 = vmul.f32 %v664, 0.2
    %v887 = vmul.f32 %v669, 0.2
    %v888 = vmul.f32 %v672, 0.2
    %v889 = vmul.f32 %v677, 0.2
    %v890 = vmul.f32 %v680, 0.2
    %v891 = vmul.f32 %v685, 0.2
    %v892 = vmul.f32 %v688, 0.2
    %v893 = vmul.f32 %v693, 0.2
    %v894 = vmul.f32 %v696, 0.2
    %v895 = vmul.f32 %v701, 0.2
    %v896 = vmul.f32 %v704, 0.2
    %v897 = vmul.f32 %v709, 0.2
    %v898 = vmul.f32 %v712, 0.2
    %v899 = vmul.f32 %v717, 0.2
    %v900 = vmul.f32 %v720, 0.2
    %v901 = vmul.f32 %v725, 0.2
    %v902 = vmul.f32 %v728, 0.2
    %v903 = vmul.f32 %v733, 0.2
    %v904 = vmul.f32 %v736, 0.2
    %v905 = vmul.f32 %v741, 0.2
    %v906 = vmul.f32 %v744, 0.2
    %v907 = vmul.f32 %v749, 0.2
    %v908 = vmul.f32 %v752, 0.2
    %v909 = vmul.f32 %v757, 0.2
    %v910 = vmul.f32 %v760, 0.2
    %v911 = vmul.f32 %v765, 0.2
    %v912 = vmul.f32 %v768, 0.2
    %v913 = vmul.f32 %v773, 0.2
    %v914 = vmul.f32 %v776, 0.2
    %v915 = vmul.f32 %v781, 0.2
    %v916 = vmul.f32 %v784, 0.2
    %v917 = vmul.f32 %v789, 0.2
    %v918 = vmul.f32 %v792, 0.2
    %v919 = vmul.f32 %v797, 0.2
    %v920 = vmul.f32 %v800, 0.2
    %v921 = vmul.f32 %v805, 0.2
    %v922 = vmul.f32 %v808, 0.2
    %v923 = vmul.f32 %v813, 0.2
    %v924 = vmul.f32 %v816, 0.2
    %v925 = vmul.f32 %v821, 0.2
    %v926 = vmul.f32 %v824, 0.2
    %v927 = vmul.f32 %v829, 0.2
    %v928 = vmul.f32 %v832, 0.2
    %v929 = vmul.f32 %v837, 0.2
    %v930 = vmul.f32 %v840, 0.2
    %v931 = vmul.f32 %v845, 0.2
    %v932 = vmul.f32 %v848, 0.2
    %v933 = vmul.f32 %v853, 0.2
    %v934 = vmul.f32 %v856, 0.2
    %v935 = vmul.f32 %v861, 0.2
    %v936 = vmul.f32 %v864, 0.2
    %v937 = vmul.f32 %v869, 0.2
    %v938 = vmul.f32 %v872, 0.2
    %v939 = vmax.f32 %v621, %v875
    %v940 = vmax.f32 %v624, %v876
    %v941 = vmax.f32 %v629, %v877
    %v942 = vmax.f32 %v632, %v878
    %v943 = vmax.f32 %v637, %v879
    %v944 = vmax.f32 %v640, %v880
    %v945 = vmax.f32 %v645, %v881
    %v946 = vmax.f32 %v648, %v882
    %v947 = vmax.f32 %v653, %v883
    %v948 = vmax.f32 %v656, %v884
    %v949 = vmax.f32 %v661, %v885
    %v950 = vmax.f32 %v664, %v886
    %v951 = vmax.f32 %v669, %v887
    %v952 = vmax.f32 %v672, %v888
    %v953 = vmax.f32 %v677, %v889
    %v954 = vmax.f32 %v680, %v890
    %v955 = vmax.f32 %v685, %v891
    %v956 = vmax.f32 %v688, %v892
    %v957 = vmax.f32 %v693, %v893
    %v958 = vmax.f32 %v696, %v894
    %v959 = vmax.f32 %v701, %v895
    %v960 = vmax.f32 %v704, %v896
    %v961 = vmax.f32 %v709, %v897
    %v962 = vmax.f32 %v712, %v898
    %v963 = vmax.f32 %v717, %v899
    %v964 = vmax.f32 %v720, %v900
    %v965 = vmax.f32 %v725, %v901
    %v966 = vmax.f32 %v728, %v902
    %v967 = vmax.f32 %v733, %v903
    %v968 = vmax.f32 %v736, %v904
    %v969 = vmax.f32 %v741, %v905
    %v970 = vmax.f32 %v744, %v906
    %v971 = vmax.f32 %v749, %v907
    %v972 = vmax.f32 %v752, %v908
    %v973 = vmax.f32 %v757, %v909
    %v974 = vmax.f32 %v760, %v910
    %v975 = vmax.f32 %v765, %v911
    %v976 = vmax.f32 %v768, %v912
    %v977 = vmax.f32 %v773, %v913
    %v978 = vmax.f32 %v776, %v914
    %v979 = vmax.f32 %v781, %v915
    %v980 = vmax.f32 %v784, %v916
    %v981 = vmax.f32 %v789, %v917
    %v982 = vmax.f32 %v792, %v918
    %v983 = vmax.f32 %v797, %v919
    %v984 = vmax.f32 %v800, %v920
    %v985 = vmax.f32 %v805, %v921
    %v986 = vmax.f32 %v808, %v922
    %v987 = vmax.f32 %v813, %v923
    %v988 = vmax.f32 %v816, %v924
    %v989 = vmax.f32 %v821, %v925
    %v990 = vmax.f32 %v824, %v926
    %v991 = vmax.f32 %v829, %v927
    %v992 = vmax.f32 %v832, %v928
    %v993 = vmax.f32 %v837, %v929
    %v994 = vmax.f32 %v840, %v930
    %v995 = vmax.f32 %v845, %v931
    %v996 = vmax.f32 %v848, %v932
    %v997 = vmax.f32 %v853, %v933
    %v998 = vmax.f32 %v856, %v934
    %v999 = vmax.f32 %v861, %v935
    %v1000 = vmax.f32 %v864, %v936
    %v1001 = vmax.f32 %v869, %v937
    %v1002 = vmax.f32 %v872, %v938
    %v1003 = vpack.c.bf16 %v940, %v939
    %v1004 = vpack.c.bf16 %v942, %v941
    %v1005 = vpack.c.bf16 %v944, %v943
    %v1006 = vpack.c.bf16 %v946, %v945
    %v1007 = vpack.c.bf16 %v948, %v947
    %v1008 = vpack.c.bf16 %v950, %v949
    %v1009 = vpack.c.bf16 %v952, %v951
    %v1010 = vpack.c.bf16 %v954, %v953
    %v1011 = vpack.c.bf16 %v956, %v955
    %v1012 = vpack.c.bf16 %v958, %v957
    %v1013 = vpack.c.bf16 %v960, %v959
    %v1014 = vpack.c.bf16 %v962, %v961
    %v1015 = vpack.c.bf16 %v964, %v963
    %v1016 = vpack.c.bf16 %v966, %v965
    %v1017 = vpack.c.bf16 %v968, %v967
    %v1018 = vpack.c.bf16 %v970, %v969
    %v1019 = vpack.c.bf16 %v972, %v971
    %v1020 = vpack.c.bf16 %v974, %v973
    %v1021 = vpack.c.bf16 %v976, %v975
    %v1022 = vpack.c.bf16 %v978, %v977
    %v1023 = vpack.c.bf16 %v980, %v979
    %v1024 = vpack.c.bf16 %v982, %v981
    %v1025 = vpack.c.bf16 %v984, %v983
    %v1026 = vpack.c.bf16 %v986, %v985
    %v1027 = vpack.c.bf16 %v988, %v987
    %v1028 = vpack.c.bf16 %v990, %v989
    %v1029 = vpack.c.bf16 %v992, %v991
    %v1030 = vpack.c.bf16 %v994, %v993
    %v1031 = vpack.c.bf16 %v996, %v995
    %v1032 = vpack.c.bf16 %v998, %v997
    %v1033 = vpack.c.bf16 %v1000, %v999
    %v1034 = vpack.c.bf16 %v1002, %v1001
    %v1036 = vshrl.u32 0, 16
    %v1038 = vrot.slane %v1036, 7
    %v1039 = vshll.u32 0, 16
    %v1041 = vor.u32 %v1038, %v1039
    %v1043 = vshrl.u32 %v1003, 16
    %v1045 = vrot.slane %v1043, 7
    %v1046 = vshll.u32 %v1003, 16
    %v1048 = vor.u32 %v1045, %v1046
    %v1050 = vshrl.u32 %v1004, 16
    %v1052 = vrot.slane %v1050, 7
    %v1053 = vshll.u32 %v1004, 16
    %v1055 = vor.u32 %v1052, %v1053
    %v1057 = vshrl.u32 %v1005, 16
    %v1059 = vrot.slane %v1057, 7
    %v1060 = vshll.u32 %v1005, 16
    %v1062 = vor.u32 %v1059, %v1060
    %v1064 = vshrl.u32 %v1006, 16
    %v1066 = vrot.slane %v1064, 7
    %v1067 = vshll.u32 %v1006, 16
    %v1069 = vor.u32 %v1066, %v1067
    %v1071 = vshrl.u32 %v1007, 16
    %v1073 = vrot.slane %v1071, 7
    %v1074 = vshll.u32 %v1007, 16
    %v1076 = vor.u32 %v1073, %v1074
    %v1078 = vshrl.u32 %v1008, 16
    %v1080 = vrot.slane %v1078, 7
    %v1081 = vshll.u32 %v1008, 16
    %v1083 = vor.u32 %v1080, %v1081
    %v1085 = vshrl.u32 %v1009, 16
    %v1087 = vrot.slane %v1085, 7
    %v1088 = vshll.u32 %v1009, 16
    %v1090 = vor.u32 %v1087, %v1088
    %v1092 = vshrl.u32 %v1010, 16
    %v1094 = vrot.slane %v1092, 7
    %v1095 = vshll.u32 %v1010, 16
    %v1097 = vor.u32 %v1094, %v1095
    %v1099 = vshrl.u32 %v1011, 16
    %v1101 = vrot.slane %v1099, 7
    %v1102 = vshll.u32 %v1011, 16
    %v1104 = vor.u32 %v1101, %v1102
    %v1106 = vshrl.u32 %v1012, 16
    %v1108 = vrot.slane %v1106, 7
    %v1109 = vshll.u32 %v1012, 16
    %v1111 = vor.u32 %v1108, %v1109
    %v1113 = vshrl.u32 %v1013, 16
    %v1115 = vrot.slane %v1113, 7
    %v1116 = vshll.u32 %v1013, 16
    %v1118 = vor.u32 %v1115, %v1116
    %v1120 = vshrl.u32 %v1014, 16
    %v1122 = vrot.slane %v1120, 7
    %v1123 = vshll.u32 %v1014, 16
    %v1125 = vor.u32 %v1122, %v1123
    %v1127 = vshrl.u32 %v1015, 16
    %v1129 = vrot.slane %v1127, 7
    %v1130 = vshll.u32 %v1015, 16
    %v1132 = vor.u32 %v1129, %v1130
    %v1134 = vshrl.u32 %v1016, 16
    %v1136 = vrot.slane %v1134, 7
    %v1137 = vshll.u32 %v1016, 16
    %v1139 = vor.u32 %v1136, %v1137
    %v1141 = vshrl.u32 %v1017, 16
    %v1143 = vrot.slane %v1141, 7
    %v1144 = vshll.u32 %v1017, 16
    %v1146 = vor.u32 %v1143, %v1144
    %v1148 = vshrl.u32 %v1018, 16
    %v1150 = vrot.slane %v1148, 7
    %v1151 = vshll.u32 %v1018, 16
    %v1153 = vor.u32 %v1150, %v1151
    %v1155 = vshrl.u32 %v1019, 16
    %v1157 = vrot.slane %v1155, 7
    %v1158 = vshll.u32 %v1019, 16
    %v1160 = vor.u32 %v1157, %v1158
    %v1162 = vshrl.u32 %v1020, 16
    %v1164 = vrot.slane %v1162, 7
    %v1165 = vshll.u32 %v1020, 16
    %v1167 = vor.u32 %v1164, %v1165
    %v1169 = vshrl.u32 %v1021, 16
    %v1171 = vrot.slane %v1169, 7
    %v1172 = vshll.u32 %v1021, 16
    %v1174 = vor.u32 %v1171, %v1172
    %v1176 = vshrl.u32 %v1022, 16
    %v1178 = vrot.slane %v1176, 7
    %v1179 = vshll.u32 %v1022, 16
    %v1181 = vor.u32 %v1178, %v1179
    %v1183 = vshrl.u32 %v1023, 16
    %v1185 = vrot.slane %v1183, 7
    %v1186 = vshll.u32 %v1023, 16
    %v1188 = vor.u32 %v1185, %v1186
    %v1190 = vshrl.u32 %v1024, 16
    %v1192 = vrot.slane %v1190, 7
    %v1193 = vshll.u32 %v1024, 16
    %v1195 = vor.u32 %v1192, %v1193
    %v1197 = vshrl.u32 %v1025, 16
    %v1199 = vrot.slane %v1197, 7
    %v1200 = vshll.u32 %v1025, 16
    %v1202 = vor.u32 %v1199, %v1200
    %v1204 = vshrl.u32 %v1026, 16
    %v1206 = vrot.slane %v1204, 7
    %v1207 = vshll.u32 %v1026, 16
    %v1209 = vor.u32 %v1206, %v1207
    %v1211 = vshrl.u32 %v1027, 16
    %v1213 = vrot.slane %v1211, 7
    %v1214 = vshll.u32 %v1027, 16
    %v1216 = vor.u32 %v1213, %v1214
    %v1218 = vshrl.u32 %v1028, 16
    %v1220 = vrot.slane %v1218, 7
    %v1221 = vshll.u32 %v1028, 16
    %v1223 = vor.u32 %v1220, %v1221
    %v1225 = vshrl.u32 %v1029, 16
    %v1227 = vrot.slane %v1225, 7
    %v1228 = vshll.u32 %v1029, 16
    %v1230 = vor.u32 %v1227, %v1228
    %v1232 = vshrl.u32 %v1030, 16
    %v1234 = vrot.slane %v1232, 7
    %v1235 = vshll.u32 %v1030, 16
    %v1237 = vor.u32 %v1234, %v1235
    %v1239 = vshrl.u32 %v1031, 16
    %v1241 = vrot.slane %v1239, 7
    %v1242 = vshll.u32 %v1031, 16
    %v1244 = vor.u32 %v1241, %v1242
    %v1246 = vshrl.u32 %v1032, 16
    %v1248 = vrot.slane %v1246, 7
    %v1249 = vshll.u32 %v1032, 16
    %v1251 = vor.u32 %v1248, %v1249
    %v1253 = vshrl.u32 %v1033, 16
    %v1255 = vrot.slane %v1253, 7
    %v1256 = vshll.u32 %v1033, 16
    %v1258 = vor.u32 %v1255, %v1256
    %v1260 = vshrl.u32 %v1034, 16
    %v1262 = vrot.slane %v1260, 7
    %v1263 = vshll.u32 %v1034, 16
    %v1265 = vor.u32 %v1262, %v1263
    %vm1332 = vcmask 1040384
    %vm1333 = vsmask.f32 256
    %vm1334 = vmand %vm1332, %vm1333
    %v1335 = vsel %vm1334, 0, %v1041
    %v1336 = vsel %vm1334, 0, %v1048
    %v1337 = vsel %vm1334, 0, %v1055
    %v1338 = vsel %vm1334, 0, %v1062
    %v1339 = vsel %vm1334, 0, %v1069
    %v1340 = vsel %vm1334, 0, %v1076
    %v1341 = vsel %vm1334, 0, %v1083
    %v1342 = vsel %vm1334, 0, %v1090
    %v1343 = vsel %vm1334, 0, %v1097
    %v1344 = vsel %vm1334, 0, %v1104
    %v1345 = vsel %vm1334, 0, %v1111
    %v1346 = vsel %vm1334, 0, %v1118
    %v1347 = vsel %vm1334, 0, %v1125
    %v1348 = vsel %vm1334, 0, %v1132
    %v1349 = vsel %vm1334, 0, %v1139
    %v1350 = vsel %vm1334, 0, %v1146
    %v1351 = vsel %vm1334, 0, %v1153
    %v1352 = vsel %vm1334, 0, %v1160
    %v1353 = vsel %vm1334, 0, %v1167
    %v1354 = vsel %vm1334, 0, %v1174
    %v1355 = vsel %vm1334, 0, %v1181
    %v1356 = vsel %vm1334, 0, %v1188
    %v1357 = vsel %vm1334, 0, %v1195
    %v1358 = vsel %vm1334, 0, %v1202
    %v1359 = vsel %vm1334, 0, %v1209
    %v1360 = vsel %vm1334, 0, %v1216
    %v1361 = vsel %vm1334, 0, %v1223
    %v1362 = vsel %vm1334, 0, %v1230
    %v1363 = vsel %vm1334, 0, %v1237
    %v1364 = vsel %vm1334, 0, %v1244
    %v1365 = vsel %vm1334, 0, %v1251
    %v1366 = vsel %vm1334, 0, %v1258
    %v1367 = vsel %vm1334, 0, %v1265
    %v1368 = vsel %vm1334, %v1038, 0
    %v1369 = vsel %vm1334, %v1045, 0
    %v1370 = vsel %vm1334, %v1052, 0
    %v1371 = vsel %vm1334, %v1059, 0
    %v1372 = vsel %vm1334, %v1066, 0
    %v1373 = vsel %vm1334, %v1073, 0
    %v1374 = vsel %vm1334, %v1080, 0
    %v1375 = vsel %vm1334, %v1087, 0
    %v1376 = vsel %vm1334, %v1094, 0
    %v1377 = vsel %vm1334, %v1101, 0
    %v1378 = vsel %vm1334, %v1108, 0
    %v1379 = vsel %vm1334, %v1115, 0
    %v1380 = vsel %vm1334, %v1122, 0
    %v1381 = vsel %vm1334, %v1129, 0
    %v1382 = vsel %vm1334, %v1136, 0
    %v1383 = vsel %vm1334, %v1143, 0
    %v1384 = vsel %vm1334, %v1150, 0
    %v1385 = vsel %vm1334, %v1157, 0
    %v1386 = vsel %vm1334, %v1164, 0
    %v1387 = vsel %vm1334, %v1171, 0
    %v1388 = vsel %vm1334, %v1178, 0
    %v1389 = vsel %vm1334, %v1185, 0
    %v1390 = vsel %vm1334, %v1192, 0
    %v1391 = vsel %vm1334, %v1199, 0
    %v1392 = vsel %vm1334, %v1206, 0
    %v1393 = vsel %vm1334, %v1213, 0
    %v1394 = vsel %vm1334, %v1220, 0
    %v1395 = vsel %vm1334, %v1227, 0
    %v1396 = vsel %vm1334, %v1234, 0
    %v1397 = vsel %vm1334, %v1241, 0
    %v1398 = vsel %vm1334, %v1248, 0
    %v1399 = vsel %vm1334, %v1255, 0
    %v1400 = vsel %vm1334, %v1262, 0
    %v1401 = vld [vmem:[#allocation7] sm:$0xf]
    %v1402 = vld [vmem:[#allocation7 + $0x4] sm:$0xf]
    %v1403 = vld [vmem:[#allocation7 + $0x8] sm:$0xf]
    %v1404 = vld [vmem:[#allocation7 + $0xc] sm:$0xf]
    %v1405 = vld [vmem:[#allocation7 + $0x10] sm:$0xf]
    %v1406 = vld [vmem:[#allocation7 + $0x14] sm:$0xf]
    %v1407 = vld [vmem:[#allocation7 + $0x18] sm:$0xf]
    %v1408 = vld [vmem:[#allocation7 + $0x1c] sm:$0xf]
    %v1409 = vld [vmem:[#allocation7 + $0x20] sm:$0xf]
    %v1410 = vld [vmem:[#allocation7 + $0x24] sm:$0xf]
    %v1411 = vld [vmem:[#allocation7 + $0x28] sm:$0xf]
    %v1412 = vld [vmem:[#allocation7 + $0x2c] sm:$0xf]
    %v1413 = vld [vmem:[#allocation7 + $0x30] sm:$0xf]
    %v1414 = vld [vmem:[#allocation7 + $0x34] sm:$0xf]
    %v1415 = vld [vmem:[#allocation7 + $0x38] sm:$0xf]
    %v1416 = vld [vmem:[#allocation7 + $0x3c] sm:$0xf]
    %vm1417 = vsmask.f32 7424
    %v1419 = vshrl.u32 %v1335, 16
    %v1421 = vshll.u32 %v1335, 16
    %v1423 = vrot.slane %v1421, 1
    %v1424 = vor.u32 %v1419, %v1423
    %v1426 = vshll.u32 %v1368, 16
    %v1428 = vrot.slane %v1426, 1
    %v1429 = vsel %vm1417, %v1424, %v1428
    %v1431 = vshrl.u32 %v1336, 16
    %v1433 = vshll.u32 %v1336, 16
    %v1435 = vrot.slane %v1433, 1
    %v1436 = vor.u32 %v1431, %v1435
    %v1438 = vshll.u32 %v1369, 16
    %v1440 = vrot.slane %v1438, 1
    %v1441 = vsel %vm1417, %v1436, %v1440
    %v1443 = vshrl.u32 %v1337, 16
    %v1445 = vshll.u32 %v1337, 16
    %v1447 = vrot.slane %v1445, 1
    %v1448 = vor.u32 %v1443, %v1447
    %v1450 = vshll.u32 %v1370, 16
    %v1452 = vrot.slane %v1450, 1
    %v1453 = vsel %vm1417, %v1448, %v1452
    %v1455 = vshrl.u32 %v1338, 16
    %v1457 = vshll.u32 %v1338, 16
    %v1459 = vrot.slane %v1457, 1
    %v1460 = vor.u32 %v1455, %v1459
    %v1462 = vshll.u32 %v1371, 16
    %v1464 = vrot.slane %v1462, 1
    %v1465 = vsel %vm1417, %v1460, %v1464
    %v1467 = vshrl.u32 %v1339, 16
    %v1469 = vshll.u32 %v1339, 16
    %v1471 = vrot.slane %v1469, 1
    %v1472 = vor.u32 %v1467, %v1471
    %v1474 = vshll.u32 %v1372, 16
    %v1476 = vrot.slane %v1474, 1
    %v1477 = vsel %vm1417, %v1472, %v1476
    %v1479 = vshrl.u32 %v1340, 16
    %v1481 = vshll.u32 %v1340, 16
    %v1483 = vrot.slane %v1481, 1
    %v1484 = vor.u32 %v1479, %v1483
    %v1486 = vshll.u32 %v1373, 16
    %v1488 = vrot.slane %v1486, 1
    %v1489 = vsel %vm1417, %v1484, %v1488
    %v1491 = vshrl.u32 %v1341, 16
    %v1493 = vshll.u32 %v1341, 16
    %v1495 = vrot.slane %v1493, 1
    %v1496 = vor.u32 %v1491, %v1495
    %v1498 = vshll.u32 %v1374, 16
    %v1500 = vrot.slane %v1498, 1
    %v1501 = vsel %vm1417, %v1496, %v1500
    %v1503 = vshrl.u32 %v1342, 16
    %v1505 = vshll.u32 %v1342, 16
    %v1507 = vrot.slane %v1505, 1
    %v1508 = vor.u32 %v1503, %v1507
    %v1510 = vshll.u32 %v1375, 16
    %v1512 = vrot.slane %v1510, 1
    %v1513 = vsel %vm1417, %v1508, %v1512
    %v1515 = vshrl.u32 %v1343, 16
    %v1517 = vshll.u32 %v1343, 16
    %v1519 = vrot.slane %v1517, 1
    %v1520 = vor.u32 %v1515, %v1519
    %v1522 = vshll.u32 %v1376, 16
    %v1524 = vrot.slane %v1522, 1
    %v1525 = vsel %vm1417, %v1520, %v1524
    %v1527 = vshrl.u32 %v1344, 16
    %v1529 = vshll.u32 %v1344, 16
    %v1531 = vrot.slane %v1529, 1
    %v1532 = vor.u32 %v1527, %v1531
    %v1534 = vshll.u32 %v1377, 16
    %v1536 = vrot.slane %v1534, 1
    %v1537 = vsel %vm1417, %v1532, %v1536
    %v1539 = vshrl.u32 %v1345, 16
    %v1541 = vshll.u32 %v1345, 16
    %v1543 = vrot.slane %v1541, 1
    %v1544 = vor.u32 %v1539, %v1543
    %v1546 = vshll.u32 %v1378, 16
    %v1548 = vrot.slane %v1546, 1
    %v1549 = vsel %vm1417, %v1544, %v1548
    %v1551 = vshrl.u32 %v1346, 16
    %v1553 = vshll.u32 %v1346, 16
    %v1555 = vrot.slane %v1553, 1
    %v1556 = vor.u32 %v1551, %v1555
    %v1558 = vshll.u32 %v1379, 16
    %v1560 = vrot.slane %v1558, 1
    %v1561 = vsel %vm1417, %v1556, %v1560
    %v1563 = vshrl.u32 %v1347, 16
    %v1565 = vshll.u32 %v1347, 16
    %v1567 = vrot.slane %v1565, 1
    %v1568 = vor.u32 %v1563, %v1567
    %v1570 = vshll.u32 %v1380, 16
    %v1572 = vrot.slane %v1570, 1
    %v1573 = vsel %vm1417, %v1568, %v1572
    %v1575 = vshrl.u32 %v1348, 16
    %v1577 = vshll.u32 %v1348, 16
    %v1579 = vrot.slane %v1577, 1
    %v1580 = vor.u32 %v1575, %v1579
    %v1582 = vshll.u32 %v1381, 16
    %v1584 = vrot.slane %v1582, 1
    %v1585 = vsel %vm1417, %v1580, %v1584
    %v1587 = vshrl.u32 %v1349, 16
    %v1589 = vshll.u32 %v1349, 16
    %v1591 = vrot.slane %v1589, 1
    %v1592 = vor.u32 %v1587, %v1591
    %v1594 = vshll.u32 %v1382, 16
    %v1596 = vrot.slane %v1594, 1
    %v1597 = vsel %vm1417, %v1592, %v1596
    %v1599 = vshrl.u32 %v1350, 16
    %v1601 = vshll.u32 %v1350, 16
    %v1603 = vrot.slane %v1601, 1
    %v1604 = vor.u32 %v1599, %v1603
    %v1606 = vshll.u32 %v1383, 16
    %v1608 = vrot.slane %v1606, 1
    %v1609 = vsel %vm1417, %v1604, %v1608
    %v1611 = vshrl.u32 %v1352, 16
    %v1613 = vshll.u32 %v1352, 16
    %v1615 = vrot.slane %v1613, 1
    %v1616 = vor.u32 %v1611, %v1615
    %v1618 = vshll.u32 %v1385, 16
    %v1620 = vrot.slane %v1618, 1
    %v1621 = vsel %vm1417, %v1616, %v1620
    %v1623 = vshrl.u32 %v1353, 16
    %v1625 = vshll.u32 %v1353, 16
    %v1627 = vrot.slane %v1625, 1
    %v1628 = vor.u32 %v1623, %v1627
    %v1630 = vshll.u32 %v1386, 16
    %v1632 = vrot.slane %v1630, 1
    %v1633 = vsel %vm1417, %v1628, %v1632
    %v1635 = vshrl.u32 %v1354, 16
    %v1637 = vshll.u32 %v1354, 16
    %v1639 = vrot.slane %v1637, 1
    %v1640 = vor.u32 %v1635, %v1639
    %v1642 = vshll.u32 %v1387, 16
    %v1644 = vrot.slane %v1642, 1
    %v1645 = vsel %vm1417, %v1640, %v1644
    %v1647 = vshrl.u32 %v1355, 16
    %v1649 = vshll.u32 %v1355, 16
    %v1651 = vrot.slane %v1649, 1
    %v1652 = vor.u32 %v1647, %v1651
    %v1654 = vshll.u32 %v1388, 16
    %v1656 = vrot.slane %v1654, 1
    %v1657 = vsel %vm1417, %v1652, %v1656
    %v1659 = vshrl.u32 %v1356, 16
    %v1661 = vshll.u32 %v1356, 16
    %v1663 = vrot.slane %v1661, 1
    %v1664 = vor.u32 %v1659, %v1663
    %v1666 = vshll.u32 %v1389, 16
    %v1668 = vrot.slane %v1666, 1
    %v1669 = vsel %vm1417, %v1664, %v1668
    %v1671 = vshrl.u32 %v1357, 16
    %v1673 = vshll.u32 %v1357, 16
    %v1675 = vrot.slane %v1673, 1
    %v1676 = vor.u32 %v1671, %v1675
    %v1678 = vshll.u32 %v1390, 16
    %v1680 = vrot.slane %v1678, 1
    %v1681 = vsel %vm1417, %v1676, %v1680
    %v1683 = vshrl.u32 %v1358, 16
    %v1685 = vshll.u32 %v1358, 16
    %v1687 = vrot.slane %v1685, 1
    %v1688 = vor.u32 %v1683, %v1687
    %v1690 = vshll.u32 %v1391, 16
    %v1692 = vrot.slane %v1690, 1
    %v1693 = vsel %vm1417, %v1688, %v1692
    %v1695 = vshrl.u32 %v1359, 16
    %v1697 = vshll.u32 %v1359, 16
    %v1699 = vrot.slane %v1697, 1
    %v1700 = vor.u32 %v1695, %v1699
    %v1702 = vshll.u32 %v1392, 16
    %v1704 = vrot.slane %v1702, 1
    %v1705 = vsel %vm1417, %v1700, %v1704
    %v1707 = vshrl.u32 %v1360, 16
    %v1709 = vshll.u32 %v1360, 16
    %v1711 = vrot.slane %v1709, 1
    %v1712 = vor.u32 %v1707, %v1711
    %v1714 = vshll.u32 %v1393, 16
    %v1716 = vrot.slane %v1714, 1
    %v1717 = vsel %vm1417, %v1712, %v1716
    %v1719 = vshrl.u32 %v1361, 16
    %v1721 = vshll.u32 %v1361, 16
    %v1723 = vrot.slane %v1721, 1
    %v1724 = vor.u32 %v1719, %v1723
    %v1726 = vshll.u32 %v1394, 16
    %v1728 = vrot.slane %v1726, 1
    %v1729 = vsel %vm1417, %v1724, %v1728
    %v1731 = vshrl.u32 %v1362, 16
    %v1733 = vshll.u32 %v1362, 16
    %v1735 = vrot.slane %v1733, 1
    %v1736 = vor.u32 %v1731, %v1735
    %v1738 = vshll.u32 %v1395, 16
    %v1740 = vrot.slane %v1738, 1
    %v1741 = vsel %vm1417, %v1736, %v1740
    %v1743 = vshrl.u32 %v1363, 16
    %v1745 = vshll.u32 %v1363, 16
    %v1747 = vrot.slane %v1745, 1
    %v1748 = vor.u32 %v1743, %v1747
    %v1750 = vshll.u32 %v1396, 16
    %v1752 = vrot.slane %v1750, 1
    %v1753 = vsel %vm1417, %v1748, %v1752
    %v1755 = vshrl.u32 %v1364, 16
    %v1757 = vshll.u32 %v1364, 16
    %v1759 = vrot.slane %v1757, 1
    %v1760 = vor.u32 %v1755, %v1759
    %v1762 = vshll.u32 %v1397, 16
    %v1764 = vrot.slane %v1762, 1
    %v1765 = vsel %vm1417, %v1760, %v1764
    %v1767 = vshrl.u32 %v1365, 16
    %v1769 = vshll.u32 %v1365, 16
    %v1771 = vrot.slane %v1769, 1
    %v1772 = vor.u32 %v1767, %v1771
    %v1774 = vshll.u32 %v1398, 16
    %v1776 = vrot.slane %v1774, 1
    %v1777 = vsel %vm1417, %v1772, %v1776
    %v1779 = vshrl.u32 %v1366, 16
    %v1781 = vshll.u32 %v1366, 16
    %v1783 = vrot.slane %v1781, 1
    %v1784 = vor.u32 %v1779, %v1783
    %v1786 = vshll.u32 %v1399, 16
    %v1788 = vrot.slane %v1786, 1
    %v1789 = vsel %vm1417, %v1784, %v1788
    %s1821 = scalar_lea.vmem [#allocation7], 64
    %v1822 = vld [vmem:[%s1821] sm:$0xf]
    %v1823 = vld [vmem:[%s1821 + $0x4] sm:$0xf]
    %v1824 = vld [vmem:[%s1821 + $0x8] sm:$0xf]
    %v1825 = vld [vmem:[%s1821 + $0xc] sm:$0xf]
    %v1826 = vld [vmem:[%s1821 + $0x10] sm:$0xf]
    %v1827 = vld [vmem:[%s1821 + $0x14] sm:$0xf]
    %v1828 = vld [vmem:[%s1821 + $0x18] sm:$0xf]
    %v1829 = vld [vmem:[%s1821 + $0x1c] sm:$0xf]
    %v1830 = vld [vmem:[%s1821 + $0x20] sm:$0xf]
    %v1831 = vld [vmem:[%s1821 + $0x24] sm:$0xf]
    %v1832 = vld [vmem:[%s1821 + $0x28] sm:$0xf]
    %v1833 = vld [vmem:[%s1821 + $0x2c] sm:$0xf]
    %v1834 = vld [vmem:[%s1821 + $0x30] sm:$0xf]
    %v1835 = vld [vmem:[%s1821 + $0x34] sm:$0xf]
    %v1836 = vld [vmem:[%s1821 + $0x38] sm:$0xf]
    %v1837 = vld [vmem:[%s1821 + $0x3c] sm:$0xf]
    %v1854 = vunpack.c.l.b16 %v1822
    %v1855 = vunpack.c.l.b16 %v1823
    %v1856 = vunpack.c.l.b16 %v1824
    %v1857 = vunpack.c.l.b16 %v1825
    %v1858 = vunpack.c.l.b16 %v1826
    %v1859 = vunpack.c.l.b16 %v1827
    %v1860 = vunpack.c.l.b16 %v1828
    %v1861 = vunpack.c.l.b16 %v1829
    %v1862 = vunpack.c.l.b16 %v1830
    %v1863 = vunpack.c.l.b16 %v1831
    %v1864 = vunpack.c.l.b16 %v1832
    %v1865 = vunpack.c.l.b16 %v1833
    %v1866 = vunpack.c.l.b16 %v1834
    %v1867 = vunpack.c.l.b16 %v1835
    %v1868 = vunpack.c.l.b16 %v1836
    %v1869 = vunpack.c.l.b16 %v1837
    %v1870 = vpack.c.b16 %v1855, %v1854
    %v1871 = vpack.c.b16 %v1857, %v1856
    %v1872 = vpack.c.b16 %v1859, %v1858
    %v1873 = vpack.c.b16 %v1861, %v1860
    %v1874 = vpack.c.b16 %v1863, %v1862
    %v1875 = vpack.c.b16 %v1865, %v1864
    %v1876 = vpack.c.b16 %v1867, %v1866
    %v1877 = vpack.c.b16 %v1869, %v1868
    %1886 = vmatprep.subr.bf16.mxu0 0
    %1887 = vmatpush1.bf16.msra.mxu0 %v1870
    %1888 = vmatprep.subr.bf16.mxu0 0
    %1889 = vmatpush1.bf16.msra.mxu0 %v1871
    %1890 = vmatprep.subr.bf16.mxu0 0
    %1891 = vmatpush1.bf16.msra.mxu0 %v1872
    %1892 = vmatprep.subr.bf16.mxu0 0
    %1893 = vmatpush1.bf16.msra.mxu0 %v1873
    %1894 = vmatprep.subr.bf16.mxu0 0
    %1895 = vmatpush1.bf16.msra.mxu0 %v1874
    %1896 = vmatprep.subr.bf16.mxu0 0
    %1897 = vmatpush1.bf16.msra.mxu0 %v1875
    %1898 = vmatprep.subr.bf16.mxu0 0
    %1899 = vmatpush1.bf16.msra.mxu0 %v1876
    %1900 = vmatprep.subr.bf16.mxu0 0
    %1901 = vmatpush1.bf16.msra.mxu0 %v1877
    %1902 = vmatprep.subr.bf16.mxu0 0
    %1903 = vmatpush1.bf16.msra.mxu0 0
    %1904 = vmatprep.subr.bf16.mxu0 0
    %1905 = vmatpush1.bf16.msra.mxu0 0
    %1906 = vmatprep.subr.bf16.mxu0 0
    %1907 = vmatpush1.bf16.msra.mxu0 0
    %1908 = vmatprep.subr.bf16.mxu0 0
    %1909 = vmatpush1.bf16.msra.mxu0 0
    %1910 = vmatprep.subr.bf16.mxu0 0
    %1911 = vmatpush1.bf16.msra.mxu0 0
    %1912 = vmatprep.subr.bf16.mxu0 0
    %1913 = vmatpush1.bf16.msra.mxu0 0
    %1914 = vmatprep.subr.bf16.mxu0 0
    %1915 = vmatpush1.bf16.msra.mxu0 0
    %1916 = vmatprep.subr.bf16.mxu0 0
    %1917 = vmatpush1.bf16.msra.mxu0 0
    %1918 = vmatprep.mubr.bf16.mxu0 0
    %1919 = vmatmul.mubr.bf16.gmra.mrb[0].mxu0 %v1429
    %v1920 = vpop.f32.mrb[0].mxu0
    %v1921 = vadd.f32 0.0, %v1920
    %v1922 = vpop.f32.mrb[0].mxu0
    %v1923 = vpop.f32.mrb[0].mxu0
    %v1924 = vadd.f32 0.0, %v1923
    %v1925 = vpop.f32.mrb[0].mxu0
    %1926 = vmatprep.mubr.bf16.mxu0 0
    %1927 = vmatmul.mubr.bf16.gmra.mrb[0].mxu0 %v1441
    %v1928 = vpop.f32.mrb[0].mxu0
    %v1929 = vadd.f32 0.0, %v1928
    %v1930 = vpop.f32.mrb[0].mxu0
    %v1931 = vpop.f32.mrb[0].mxu0
    %v1932 = vadd.f32 0.0, %v1931
    %v1933 = vpop.f32.mrb[0].mxu0
    %1934 = vmatprep.mubr.bf16.mxu0 0
    %1935 = vmatmul.mubr.bf16.gmra.mrb[0].mxu0 %v1453
    %v1936 = vpop.f32.mrb[0].mxu0
    %v1937 = vadd.f32 0.0, %v1936
    %v1938 = vpop.f32.mrb[0].mxu0
    %v1939 = vpop.f32.mrb[0].mxu0
    %v1940 = vadd.f32 0.0, %v1939
    %v1941 = vpop.f32.mrb[0].mxu0
    %1942 = vmatprep.mubr.bf16.mxu0 0
    %1943 = vmatmul.mubr.bf16.gmra.mrb[0].mxu0 %v1465
    %v1944 = vpop.f32.mrb[0].mxu0
    %v1945 = vadd.f32 0.0, %v1944
    %v1946 = vpop.f32.mrb[0].mxu0
    %v1947 = vpop.f32.mrb[0].mxu0
    %v1948 = vadd.f32 0.0, %v1947
    %v1949 = vpop.f32.mrb[0].mxu0
    %1950 = vmatprep.mubr.bf16.mxu0 0
    %1951 = vmatmul.mubr.bf16.gmra.mrb[0].mxu0 %v1477
    %v1952 = vpop.f32.mrb[0].mxu0
    %v1953 = vadd.f32 0.0, %v1952
    %v1954 = vpop.f32.mrb[0].mxu0
    %v1955 = vpop.f32.mrb[0].mxu0
    %v1956 = vadd.f32 0.0, %v1955
    %v1957 = vpop.f32.mrb[0].mxu0
    %1958 = vmatprep.mubr.bf16.mxu0 0
    %1959 = vmatmul.mubr.bf16.gmra.mrb[0].mxu0 %v1489
    %v1960 = vpop.f32.mrb[0].mxu0
    %v1961 = vadd.f32 0.0, %v1960
    %v1962 = vpop.f32.mrb[0].mxu0
    %v1963 = vpop.f32.mrb[0].mxu0
    %v1964 = vadd.f32 0.0, %v1963
    %v1965 = vpop.f32.mrb[0].mxu0
    %1966 = vmatprep.mubr.bf16.mxu0 0
    %1967 = vmatmul.mubr.bf16.gmra.mrb[0].mxu0 %v1501
    %v1968 = vpop.f32.mrb[0].mxu0
    %v1969 = vadd.f32 0.0, %v1968
    %v1970 = vpop.f32.mrb[0].mxu0
    %v1971 = vpop.f32.mrb[0].mxu0
    %v1972 = vadd.f32 0.0, %v1971
    %v1973 = vpop.f32.mrb[0].mxu0
    %1974 = vmatprep.mubr.bf16.mxu0 0
    %1975 = vmatmul.mubr.bf16.gmra.mrb[0].mxu0 %v1513
    %v1976 = vpop.f32.mrb[0].mxu0
    %v1977 = vadd.f32 0.0, %v1976
    %v1978 = vpop.f32.mrb[0].mxu0
    %v1979 = vpop.f32.mrb[0].mxu0
    %v1980 = vadd.f32 0.0, %v1979
    %v1981 = vpop.f32.mrb[0].mxu0
    %1982 = vmatprep.mubr.bf16.mxu0 0
    %1983 = vmatmul.mubr.bf16.gmra.mrb[0].mxu0 %v1525
    %v1984 = vpop.f32.mrb[0].mxu0
    %v1985 = vadd.f32 0.0, %v1984
    %v1986 = vpop.f32.mrb[0].mxu0
    %v1987 = vpop.f32.mrb[0].mxu0
    %v1988 = vadd.f32 0.0, %v1987
    %v1989 = vpop.f32.mrb[0].mxu0
    %1990 = vmatprep.mubr.bf16.mxu0 0
    %1991 = vmatmul.mubr.bf16.gmra.mrb[0].mxu0 %v1537
    %v1992 = vpop.f32.mrb[0].mxu0
    %v1993 = vadd.f32 0.0, %v1992
    %v1994 = vpop.f32.mrb[0].mxu0
    %v1995 = vpop.f32.mrb[0].mxu0
    %v1996 = vadd.f32 0.0, %v1995
    %v1997 = vpop.f32.mrb[0].mxu0
    %1998 = vmatprep.mubr.bf16.mxu0 0
    %1999 = vmatmul.mubr.bf16.gmra.mrb[0].mxu0 %v1549
    %v2000 = vpop.f32.mrb[0].mxu0
    %v2001 = vadd.f32 0.0, %v2000
    %v2002 = vpop.f32.mrb[0].mxu0
    %v2003 = vpop.f32.mrb[0].mxu0
    %v2004 = vadd.f32 0.0, %v2003
    %v2005 = vpop.f32.mrb[0].mxu0
    %2006 = vmatprep.mubr.bf16.mxu0 0
    %2007 = vmatmul.mubr.bf16.gmra.mrb[0].mxu0 %v1561
    %v2008 = vpop.f32.mrb[0].mxu0
    %v2009 = vadd.f32 0.0, %v2008
    %v2010 = vpop.f32.mrb[0].mxu0
    %v2011 = vpop.f32.mrb[0].mxu0
    %v2012 = vadd.f32 0.0, %v2011
    %v2013 = vpop.f32.mrb[0].mxu0
    %2014 = vmatprep.mubr.bf16.mxu0 0
    %2015 = vmatmul.mubr.bf16.gmra.mrb[0].mxu0 %v1573
    %v2016 = vpop.f32.mrb[0].mxu0
    %v2017 = vadd.f32 0.0, %v2016
    %v2018 = vpop.f32.mrb[0].mxu0
    %v2019 = vpop.f32.mrb[0].mxu0
    %v2020 = vadd.f32 0.0, %v2019
    %v2021 = vpop.f32.mrb[0].mxu0
    %2022 = vmatprep.mubr.bf16.mxu0 0
    %2023 = vmatmul.mubr.bf16.gmra.mrb[0].mxu0 %v1585
    %v2024 = vpop.f32.mrb[0].mxu0
    %v2025 = vadd.f32 0.0, %v2024
    %v2026 = vpop.f32.mrb[0].mxu0
    %v2027 = vpop.f32.mrb[0].mxu0
    %v2028 = vadd.f32 0.0, %v2027
    %v2029 = vpop.f32.mrb[0].mxu0
    %2030 = vmatprep.mubr.bf16.mxu0 0
    %2031 = vmatmul.mubr.bf16.gmra.mrb[0].mxu0 %v1597
    %v2032 = vpop.f32.mrb[0].mxu0
    %v2033 = vadd.f32 0.0, %v2032
    %v2034 = vpop.f32.mrb[0].mxu0
    %v2035 = vpop.f32.mrb[0].mxu0
    %v2036 = vadd.f32 0.0, %v2035
    %v2037 = vpop.f32.mrb[0].mxu0
    %2038 = vmatprep.mubr.bf16.mxu0 0
    %2039 = vmatmul.mubr.bf16.gmra.mrb[0].mxu0 %v1609
    %v2040 = vpop.f32.mrb[0].mxu0
    %v2041 = vadd.f32 0.0, %v2040
    %v2042 = vpop.f32.mrb[0].mxu0
    %v2043 = vpop.f32.mrb[0].mxu0
    %v2044 = vadd.f32 0.0, %v2043
    %v2045 = vpop.f32.mrb[0].mxu0
    %2046 = vmatprep.mubr.bf16.mxu0 0
    %2047 = vmatmul.mubr.bf16.gmra.mrb[0].mxu0 %v1429
    %v2048 = vpop.f32.mrb[0].mxu0
    %v2049 = vadd.f32 0.0, %v2048
    %v2050 = vpop.f32.mrb[0].mxu0
    %v2051 = vpop.f32.mrb[0].mxu0
    %v2052 = vadd.f32 0.0, %v2051
    %v2053 = vpop.f32.mrb[0].mxu0
    %2054 = vmatprep.mubr.bf16.mxu0 0
    %2055 = vmatmul.mubr.bf16.gmra.mrb[0].mxu0 %v1621
    %v2056 = vpop.f32.mrb[0].mxu0
    %v2057 = vadd.f32 0.0, %v2056
    %v2058 = vpop.f32.mrb[0].mxu0
    %v2059 = vpop.f32.mrb[0].mxu0
    %v2060 = vadd.f32 0.0, %v2059
    %v2061 = vpop.f32.mrb[0].mxu0
    %2062 = vmatprep.mubr.bf16.mxu0 0
    %2063 = vmatmul.mubr.bf16.gmra.mrb[0].mxu0 %v1633
    %v2064 = vpop.f32.mrb[0].mxu0
    %v2065 = vadd.f32 0.0, %v2064
    %v2066 = vpop.f32.mrb[0].mxu0
    %v2067 = vpop.f32.mrb[0].mxu0
    %v2068 = vadd.f32 0.0, %v2067
    %v2069 = vpop.f32.mrb[0].mxu0
    %2070 = vmatprep.mubr.bf16.mxu0 0
    %2071 = vmatmul.mubr.bf16.gmra.mrb[0].mxu0 %v1645
    %v2072 = vpop.f32.mrb[0].mxu0
    %v2073 = vadd.f32 0.0, %v2072
    %v2074 = vpop.f32.mrb[0].mxu0
    %v2075 = vpop.f32.mrb[0].mxu0
    %v2076 = vadd.f32 0.0, %v2075
    %v2077 = vpop.f32.mrb[0].mxu0
    %2078 = vmatprep.mubr.bf16.mxu0 0
    %2079 = vmatmul.mubr.bf16.gmra.mrb[0].mxu0 %v1657
    %v2080 = vpop.f32.mrb[0].mxu0
    %v2081 = vadd.f32 0.0, %v2080
    %v2082 = vpop.f32.mrb[0].mxu0
    %v2083 = vpop.f32.mrb[0].mxu0
    %v2084 = vadd.f32 0.0, %v2083
    %v2085 = vpop.f32.mrb[0].mxu0
    %2086 = vmatprep.mubr.bf16.mxu0 0
    %2087 = vmatmul.mubr.bf16.gmra.mrb[0].mxu0 %v1669
    %v2088 = vpop.f32.mrb[0].mxu0
    %v2089 = vadd.f32 0.0, %v2088
    %v2090 = vpop.f32.mrb[0].mxu0
    %v2091 = vpop.f32.mrb[0].mxu0
    %v2092 = vadd.f32 0.0, %v2091
    %v2093 = vpop.f32.mrb[0].mxu0
    %2094 = vmatprep.mubr.bf16.mxu0 0
    %2095 = vmatmul.mubr.bf16.gmra.mrb[0].mxu0 %v1681
    %v2096 = vpop.f32.mrb[0].mxu0
    %v2097 = vadd.f32 0.0, %v2096
    %v2098 = vpop.f32.mrb[0].mxu0
    %v2099 = vpop.f32.mrb[0].mxu0
    %v2100 = vadd.f32 0.0, %v2099
    %v2101 = vpop.f32.mrb[0].mxu0
    %2102 = vmatprep.mubr.bf16.mxu0 0
    %2103 = vmatmul.mubr.bf16.gmra.mrb[0].mxu0 %v1693
    %v2104 = vpop.f32.mrb[0].mxu0
    %v2105 = vadd.f32 0.0, %v2104
    %v2106 = vpop.f32.mrb[0].mxu0
    %v2107 = vpop.f32.mrb[0].mxu0
    %v2108 = vadd.f32 0.0, %v2107
    %v2109 = vpop.f32.mrb[0].mxu0
    %2110 = vmatprep.mubr.bf16.mxu0 0
    %2111 = vmatmul.mubr.bf16.gmra.mrb[0].mxu0 %v1705
    %v2112 = vpop.f32.mrb[0].mxu0
    %v2113 = vadd.f32 0.0, %v2112
    %v2114 = vpop.f32.mrb[0].mxu0
    %v2115 = vpop.f32.mrb[0].mxu0
    %v2116 = vadd.f32 0.0, %v2115
    %v2117 = vpop.f32.mrb[0].mxu0
    %2118 = vmatprep.mubr.bf16.mxu0 0
    %2119 = vmatmul.mubr.bf16.gmra.mrb[0].mxu0 %v1717
    %v2120 = vpop.f32.mrb[0].mxu0
    %v2121 = vadd.f32 0.0, %v2120
    %v2122 = vpop.f32.mrb[0].mxu0
    %v2123 = vpop.f32.mrb[0].mxu0
    %v2124 = vadd.f32 0.0, %v2123
    %v2125 = vpop.f32.mrb[0].mxu0
    %2126 = vmatprep.mubr.bf16.mxu0 0
    %2127 = vmatmul.mubr.bf16.gmra.mrb[0].mxu0 %v1729
    %v2128 = vpop.f32.mrb[0].mxu0
    %v2129 = vadd.f32 0.0, %v2128
    %v2130 = vpop.f32.mrb[0].mxu0
    %v2131 = vpop.f32.mrb[0].mxu0
    %v2132 = vadd.f32 0.0, %v2131
    %v2133 = vpop.f32.mrb[0].mxu0
    %2134 = vmatprep.mubr.bf16.mxu0 0
    %2135 = vmatmul.mubr.bf16.gmra.mrb[0].mxu0 %v1741
    %v2136 = vpop.f32.mrb[0].mxu0
    %v2137 = vadd.f32 0.0, %v2136
    %v2138 = vpop.f32.mrb[0].mxu0
    %v2139 = vpop.f32.mrb[0].mxu0
    %v2140 = vadd.f32 0.0, %v2139
    %v2141 = vpop.f32.mrb[0].mxu0
    %2142 = vmatprep.mubr.bf16.mxu0 0
    %2143 = vmatmul.mubr.bf16.gmra.mrb[0].mxu0 %v1753
    %v2144 = vpop.f32.mrb[0].mxu0
    %v2145 = vadd.f32 0.0, %v2144
    %v2146 = vpop.f32.mrb[0].mxu0
    %v2147 = vpop.f32.mrb[0].mxu0
    %v2148 = vadd.f32 0.0, %v2147
    %v2149 = vpop.f32.mrb[0].mxu0
    %2150 = vmatprep.mubr.bf16.mxu0 0
    %2151 = vmatmul.mubr.bf16.gmra.mrb[0].mxu0 %v1765
    %v2152 = vpop.f32.mrb[0].mxu0
    %v2153 = vadd.f32 0.0, %v2152
    %v2154 = vpop.f32.mrb[0].mxu0
    %v2155 = vpop.f32.mrb[0].mxu0
    %v2156 = vadd.f32 0.0, %v2155
    %v2157 = vpop.f32.mrb[0].mxu0
    %2158 = vmatprep.mubr.bf16.mxu0 0
    %2159 = vmatmul.mubr.bf16.gmra.mrb[0].mxu0 %v1777
    %v2160 = vpop.f32.mrb[0].mxu0
    %v2161 = vadd.f32 0.0, %v2160
    %v2162 = vpop.f32.mrb[0].mxu0
    %v2163 = vpop.f32.mrb[0].mxu0
    %v2164 = vadd.f32 0.0, %v2163
    %v2165 = vpop.f32.mrb[0].mxu0
    %2166 = vmatprep.mubr.bf16.mxu0 0
    %2167 = vmatmul.mubr.bf16.gmra.mrb[0].mxu0 %v1789
    %v2168 = vpop.f32.mrb[0].mxu0
    %v2169 = vadd.f32 0.0, %v2168
    %v2170 = vpop.f32.mrb[0].mxu0
    %v2171 = vpop.f32.mrb[0].mxu0
    %v2172 = vadd.f32 0.0, %v2171
    %v2173 = vpop.f32.mrb[0].mxu0
    %2174 = vdwg.mxu0
    %v2191 = vunpack.c.l.b16 %v1401
    %v2192 = vunpack.c.l.b16 %v1402
    %v2193 = vunpack.c.l.b16 %v1403
    %v2194 = vunpack.c.l.b16 %v1404
    %v2195 = vunpack.c.l.b16 %v1405
    %v2196 = vunpack.c.l.b16 %v1406
    %v2197 = vunpack.c.l.b16 %v1407
    %v2198 = vunpack.c.l.b16 %v1408
    %v2199 = vunpack.c.l.b16 %v1409
    %v2200 = vunpack.c.l.b16 %v1410
    %v2201 = vunpack.c.l.b16 %v1411
    %v2202 = vunpack.c.l.b16 %v1412
    %v2203 = vunpack.c.l.b16 %v1413
    %v2204 = vunpack.c.l.b16 %v1414
    %v2205 = vunpack.c.l.b16 %v1415
    %v2206 = vunpack.c.l.b16 %v1416
    %v2207 = vpack.c.b16 %v2192, %v2191
    %v2208 = vpack.c.b16 %v2194, %v2193
    %v2209 = vpack.c.b16 %v2196, %v2195
    %v2210 = vpack.c.b16 %v2198, %v2197
    %v2211 = vpack.c.b16 %v2200, %v2199
    %v2212 = vpack.c.b16 %v2202, %v2201
    %v2213 = vpack.c.b16 %v2204, %v2203
    %v2214 = vpack.c.b16 %v2206, %v2205
    %2223 = vmatprep.subr.bf16.mxu0 0
    %2224 = vmatpush1.bf16.msra.mxu0 %v2207
    %2225 = vmatprep.subr.bf16.mxu0 0
    %2226 = vmatpush1.bf16.msra.mxu0 %v2208
    %2227 = vmatprep.subr.bf16.mxu0 0
    %2228 = vmatpush1.bf16.msra.mxu0 %v2209
    %2229 = vmatprep.subr.bf16.mxu0 0
    %2230 = vmatpush1.bf16.msra.mxu0 %v2210
    %2231 = vmatprep.subr.bf16.mxu0 0
    %2232 = vmatpush1.bf16.msra.mxu0 %v2211
    %2233 = vmatprep.subr.bf16.mxu0 0
    %2234 = vmatpush1.bf16.msra.mxu0 %v2212
    %2235 = vmatprep.subr.bf16.mxu0 0
    %2236 = vmatpush1.bf16.msra.mxu0 %v2213
    %2237 = vmatprep.subr.bf16.mxu0 0
    %2238 = vmatpush1.bf16.msra.mxu0 %v2214
    %2239 = vmatprep.subr.bf16.mxu0 0
    %2240 = vmatpush1.bf16.msra.mxu0 0
    %2241 = vmatprep.subr.bf16.mxu0 0
    %2242 = vmatpush1.bf16.msra.mxu0 0
    %2243 = vmatprep.subr.bf16.mxu0 0
    %2244 = vmatpush1.bf16.msra.mxu0 0
    %2245 = vmatprep.subr.bf16.mxu0 0
    %2246 = vmatpush1.bf16.msra.mxu0 0
    %2247 = vmatprep.subr.bf16.mxu0 0
    %2248 = vmatpush1.bf16.msra.mxu0 0
    %2249 = vmatprep.subr.bf16.mxu0 0
    %2250 = vmatpush1.bf16.msra.mxu0 0
    %2251 = vmatprep.subr.bf16.mxu0 0
    %2252 = vmatpush1.bf16.msra.mxu0 0
    %2253 = vmatprep.subr.bf16.mxu0 0
    %2254 = vmatpush1.bf16.msra.mxu0 0
    %2255 = vmatprep.mubr.bf16.mxu0 0
    %2256 = vmatmul.mubr.bf16.gmra.mrb[0].mxu0 %v1335
    %v2257 = vpop.f32.mrb[0].mxu0
    %v2258 = vadd.f32 %v1921, %v2257
    %v2259 = vpop.f32.mrb[0].mxu0
    %v2260 = vpop.f32.mrb[0].mxu0
    %v2261 = vadd.f32 %v1924, %v2260
    %v2262 = vpop.f32.mrb[0].mxu0
    %2263 = vmatprep.mubr.bf16.mxu0 0
    %2264 = vmatmul.mubr.bf16.gmra.mrb[0].mxu0 %v1336
    %v2265 = vpop.f32.mrb[0].mxu0
    %v2266 = vadd.f32 %v1929, %v2265
    %v2267 = vpop.f32.mrb[0].mxu0
    %v2268 = vpop.f32.mrb[0].mxu0
    %v2269 = vadd.f32 %v1932, %v2268
    %v2270 = vpop.f32.mrb[0].mxu0
    %2271 = vmatprep.mubr.bf16.mxu0 0
    %2272 = vmatmul.mubr.bf16.gmra.mrb[0].mxu0 %v1337
    %v2273 = vpop.f32.mrb[0].mxu0
    %v2274 = vadd.f32 %v1937, %v2273
    %v2275 = vpop.f32.mrb[0].mxu0
    %v2276 = vpop.f32.mrb[0].mxu0
    %v2277 = vadd.f32 %v1940, %v2276
    %v2278 = vpop.f32.mrb[0].mxu0
    %2279 = vmatprep.mubr.bf16.mxu0 0
    %2280 = vmatmul.mubr.bf16.gmra.mrb[0].mxu0 %v1338
    %v2281 = vpop.f32.mrb[0].mxu0
    %v2282 = vadd.f32 %v1945, %v2281
    %v2283 = vpop.f32.mrb[0].mxu0
    %v2284 = vpop.f32.mrb[0].mxu0
    %v2285 = vadd.f32 %v1948, %v2284
    %v2286 = vpop.f32.mrb[0].mxu0
    %2287 = vmatprep.mubr.bf16.mxu0 0
    %2288 = vmatmul.mubr.bf16.gmra.mrb[0].mxu0 %v1339
    %v2289 = vpop.f32.mrb[0].mxu0
    %v2290 = vadd.f32 %v1953, %v2289
    %v2291 = vpop.f32.mrb[0].mxu0
    %v2292 = vpop.f32.mrb[0].mxu0
    %v2293 = vadd.f32 %v1956, %v2292
    %v2294 = vpop.f32.mrb[0].mxu0
    %2295 = vmatprep.mubr.bf16.mxu0 0
    %2296 = vmatmul.mubr.bf16.gmra.mrb[0].mxu0 %v1340
    %v2297 = vpop.f32.mrb[0].mxu0
    %v2298 = vadd.f32 %v1961, %v2297
    %v2299 = vpop.f32.mrb[0].mxu0
    %v2300 = vpop.f32.mrb[0].mxu0
    %v2301 = vadd.f32 %v1964, %v2300
    %v2302 = vpop.f32.mrb[0].mxu0
    %2303 = vmatprep.mubr.bf16.mxu0 0
    %2304 = vmatmul.mubr.bf16.gmra.mrb[0].mxu0 %v1341
    %v2305 = vpop.f32.mrb[0].mxu0
    %v2306 = vadd.f32 %v1969, %v2305
    %v2307 = vpop.f32.mrb[0].mxu0
    %v2308 = vpop.f32.mrb[0].mxu0
    %v2309 = vadd.f32 %v1972, %v2308
    %v2310 = vpop.f32.mrb[0].mxu0
    %2311 = vmatprep.mubr.bf16.mxu0 0
    %2312 = vmatmul.mubr.bf16.gmra.mrb[0].mxu0 %v1342
    %v2313 = vpop.f32.mrb[0].mxu0
    %v2314 = vadd.f32 %v1977, %v2313
    %v2315 = vpop.f32.mrb[0].mxu0
    %v2316 = vpop.f32.mrb[0].mxu0
    %v2317 = vadd.f32 %v1980, %v2316
    %v2318 = vpop.f32.mrb[0].mxu0
    %2319 = vmatprep.mubr.bf16.mxu0 0
    %2320 = vmatmul.mubr.bf16.gmra.mrb[0].mxu0 %v1343
    %v2321 = vpop.f32.mrb[0].mxu0
    %v2322 = vadd.f32 %v1985, %v2321
    %v2323 = vpop.f32.mrb[0].mxu0
    %v2324 = vpop.f32.mrb[0].mxu0
    %v2325 = vadd.f32 %v1988, %v2324
    %v2326 = vpop.f32.mrb[0].mxu0
    %2327 = vmatprep.mubr.bf16.mxu0 0
    %2328 = vmatmul.mubr.bf16.gmra.mrb[0].mxu0 %v1344
    %v2329 = vpop.f32.mrb[0].mxu0
    %v2330 = vadd.f32 %v1993, %v2329
    %v2331 = vpop.f32.mrb[0].mxu0
    %v2332 = vpop.f32.mrb[0].mxu0
    %v2333 = vadd.f32 %v1996, %v2332
    %v2334 = vpop.f32.mrb[0].mxu0
    %2335 = vmatprep.mubr.bf16.mxu0 0
    %2336 = vmatmul.mubr.bf16.gmra.mrb[0].mxu0 %v1345
    %v2337 = vpop.f32.mrb[0].mxu0
    %v2338 = vadd.f32 %v2001, %v2337
    %v2339 = vpop.f32.mrb[0].mxu0
    %v2340 = vpop.f32.mrb[0].mxu0
    %v2341 = vadd.f32 %v2004, %v2340
    %v2342 = vpop.f32.mrb[0].mxu0
    %2343 = vmatprep.mubr.bf16.mxu0 0
    %2344 = vmatmul.mubr.bf16.gmra.mrb[0].mxu0 %v1346
    %v2345 = vpop.f32.mrb[0].mxu0
    %v2346 = vadd.f32 %v2009, %v2345
    %v2347 = vpop.f32.mrb[0].mxu0
    %v2348 = vpop.f32.mrb[0].mxu0
    %v2349 = vadd.f32 %v2012, %v2348
    %v2350 = vpop.f32.mrb[0].mxu0
    %2351 = vmatprep.mubr.bf16.mxu0 0
    %2352 = vmatmul.mubr.bf16.gmra.mrb[0].mxu0 %v1347
    %v2353 = vpop.f32.mrb[0].mxu0
    %v2354 = vadd.f32 %v2017, %v2353
    %v2355 = vpop.f32.mrb[0].mxu0
    %v2356 = vpop.f32.mrb[0].mxu0
    %v2357 = vadd.f32 %v2020, %v2356
    %v2358 = vpop.f32.mrb[0].mxu0
    %2359 = vmatprep.mubr.bf16.mxu0 0
    %2360 = vmatmul.mubr.bf16.gmra.mrb[0].mxu0 %v1348
    %v2361 = vpop.f32.mrb[0].mxu0
    %v2362 = vadd.f32 %v2025, %v2361
    %v2363 = vpop.f32.mrb[0].mxu0
    %v2364 = vpop.f32.mrb[0].mxu0
    %v2365 = vadd.f32 %v2028, %v2364
    %v2366 = vpop.f32.mrb[0].mxu0
    %2367 = vmatprep.mubr.bf16.mxu0 0
    %2368 = vmatmul.mubr.bf16.gmra.mrb[0].mxu0 %v1349
    %v2369 = vpop.f32.mrb[0].mxu0
    %v2370 = vadd.f32 %v2033, %v2369
    %v2371 = vpop.f32.mrb[0].mxu0
    %v2372 = vpop.f32.mrb[0].mxu0
    %v2373 = vadd.f32 %v2036, %v2372
    %v2374 = vpop.f32.mrb[0].mxu0
    %2375 = vmatprep.mubr.bf16.mxu0 0
    %2376 = vmatmul.mubr.bf16.gmra.mrb[0].mxu0 %v1350
    %v2377 = vpop.f32.mrb[0].mxu0
    %v2378 = vadd.f32 %v2041, %v2377
    %v2379 = vpop.f32.mrb[0].mxu0
    %v2380 = vpop.f32.mrb[0].mxu0
    %v2381 = vadd.f32 %v2044, %v2380
    %v2382 = vpop.f32.mrb[0].mxu0
    %2383 = vmatprep.mubr.bf16.mxu0 0
    %2384 = vmatmul.mubr.bf16.gmra.mrb[0].mxu0 %v1335
    %v2385 = vpop.f32.mrb[0].mxu0
    %v2386 = vadd.f32 %v2049, %v2385
    %v2387 = vpop.f32.mrb[0].mxu0
    %v2388 = vpop.f32.mrb[0].mxu0
    %v2389 = vadd.f32 %v2052, %v2388
    %v2390 = vpop.f32.mrb[0].mxu0
    %2391 = vmatprep.mubr.bf16.mxu0 0
    %2392 = vmatmul.mubr.bf16.gmra.mrb[0].mxu0 %v1352
    %v2393 = vpop.f32.mrb[0].mxu0
    %v2394 = vadd.f32 %v2057, %v2393
    %v2395 = vpop.f32.mrb[0].mxu0
    %v2396 = vpop.f32.mrb[0].mxu0
    %v2397 = vadd.f32 %v2060, %v2396
    %v2398 = vpop.f32.mrb[0].mxu0
    %2399 = vmatprep.mubr.bf16.mxu0 0
    %2400 = vmatmul.mubr.bf16.gmra.mrb[0].mxu0 %v1353
    %v2401 = vpop.f32.mrb[0].mxu0
    %v2402 = vadd.f32 %v2065, %v2401
    %v2403 = vpop.f32.mrb[0].mxu0
    %v2404 = vpop.f32.mrb[0].mxu0
    %v2405 = vadd.f32 %v2068, %v2404
    %v2406 = vpop.f32.mrb[0].mxu0
    %2407 = vmatprep.mubr.bf16.mxu0 0
    %2408 = vmatmul.mubr.bf16.gmra.mrb[0].mxu0 %v1354
    %v2409 = vpop.f32.mrb[0].mxu0
    %v2410 = vadd.f32 %v2073, %v2409
    %v2411 = vpop.f32.mrb[0].mxu0
    %v2412 = vpop.f32.mrb[0].mxu0
    %v2413 = vadd.f32 %v2076, %v2412
    %v2414 = vpop.f32.mrb[0].mxu0
    %2415 = vmatprep.mubr.bf16.mxu0 0
    %2416 = vmatmul.mubr.bf16.gmra.mrb[0].mxu0 %v1355
    %v2417 = vpop.f32.mrb[0].mxu0
    %v2418 = vadd.f32 %v2081, %v2417
    %v2419 = vpop.f32.mrb[0].mxu0
    %v2420 = vpop.f32.mrb[0].mxu0
    %v2421 = vadd.f32 %v2084, %v2420
    %v2422 = vpop.f32.mrb[0].mxu0
    %2423 = vmatprep.mubr.bf16.mxu0 0
    %2424 = vmatmul.mubr.bf16.gmra.mrb[0].mxu0 %v1356
    %v2425 = vpop.f32.mrb[0].mxu0
    %v2426 = vadd.f32 %v2089, %v2425
    %v2427 = vpop.f32.mrb[0].mxu0
    %v2428 = vpop.f32.mrb[0].mxu0
    %v2429 = vadd.f32 %v2092, %v2428
    %v2430 = vpop.f32.mrb[0].mxu0
    %2431 = vmatprep.mubr.bf16.mxu0 0
    %2432 = vmatmul.mubr.bf16.gmra.mrb[0].mxu0 %v1357
    %v2433 = vpop.f32.mrb[0].mxu0
    %v2434 = vadd.f32 %v2097, %v2433
    %v2435 = vpop.f32.mrb[0].mxu0
    %v2436 = vpop.f32.mrb[0].mxu0
    %v2437 = vadd.f32 %v2100, %v2436
    %v2438 = vpop.f32.mrb[0].mxu0
    %2439 = vmatprep.mubr.bf16.mxu0 0
    %2440 = vmatmul.mubr.bf16.gmra.mrb[0].mxu0 %v1358
    %v2441 = vpop.f32.mrb[0].mxu0
    %v2442 = vadd.f32 %v2105, %v2441
    %v2443 = vpop.f32.mrb[0].mxu0
    %v2444 = vpop.f32.mrb[0].mxu0
    %v2445 = vadd.f32 %v2108, %v2444
    %v2446 = vpop.f32.mrb[0].mxu0
    %2447 = vmatprep.mubr.bf16.mxu0 0
    %2448 = vmatmul.mubr.bf16.gmra.mrb[0].mxu0 %v1359
    %v2449 = vpop.f32.mrb[0].mxu0
    %v2450 = vadd.f32 %v2113, %v2449
    %v2451 = vpop.f32.mrb[0].mxu0
    %v2452 = vpop.f32.mrb[0].mxu0
    %v2453 = vadd.f32 %v2116, %v2452
    %v2454 = vpop.f32.mrb[0].mxu0
    %2455 = vmatprep.mubr.bf16.mxu0 0
    %2456 = vmatmul.mubr.bf16.gmra.mrb[0].mxu0 %v1360
    %v2457 = vpop.f32.mrb[0].mxu0
    %v2458 = vadd.f32 %v2121, %v2457
    %v2459 = vpop.f32.mrb[0].mxu0
    %v2460 = vpop.f32.mrb[0].mxu0
    %v2461 = vadd.f32 %v2124, %v2460
    %v2462 = vpop.f32.mrb[0].mxu0
    %2463 = vmatprep.mubr.bf16.mxu0 0
    %2464 = vmatmul.mubr.bf16.gmra.mrb[0].mxu0 %v1361
    %v2465 = vpop.f32.mrb[0].mxu0
    %v2466 = vadd.f32 %v2129, %v2465
    %v2467 = vpop.f32.mrb[0].mxu0
    %v2468 = vpop.f32.mrb[0].mxu0
    %v2469 = vadd.f32 %v2132, %v2468
    %v2470 = vpop.f32.mrb[0].mxu0
    %2471 = vmatprep.mubr.bf16.mxu0 0
    %2472 = vmatmul.mubr.bf16.gmra.mrb[0].mxu0 %v1362
    %v2473 = vpop.f32.mrb[0].mxu0
    %v2474 = vadd.f32 %v2137, %v2473
    %v2475 = vpop.f32.mrb[0].mxu0
    %v2476 = vpop.f32.mrb[0].mxu0
    %v2477 = vadd.f32 %v2140, %v2476
    %v2478 = vpop.f32.mrb[0].mxu0
    %2479 = vmatprep.mubr.bf16.mxu0 0
    %2480 = vmatmul.mubr.bf16.gmra.mrb[0].mxu0 %v1363
    %v2481 = vpop.f32.mrb[0].mxu0
    %v2482 = vadd.f32 %v2145, %v2481
    %v2483 = vpop.f32.mrb[0].mxu0
    %v2484 = vpop.f32.mrb[0].mxu0
    %v2485 = vadd.f32 %v2148, %v2484
    %v2486 = vpop.f32.mrb[0].mxu0
    %2487 = vmatprep.mubr.bf16.mxu0 0
    %2488 = vmatmul.mubr.bf16.gmra.mrb[0].mxu0 %v1364
    %v2489 = vpop.f32.mrb[0].mxu0
    %v2490 = vadd.f32 %v2153, %v2489
    %v2491 = vpop.f32.mrb[0].mxu0
    %v2492 = vpop.f32.mrb[0].mxu0
    %v2493 = vadd.f32 %v2156, %v2492
    %v2494 = vpop.f32.mrb[0].mxu0
    %2495 = vmatprep.mubr.bf16.mxu0 0
    %2496 = vmatmul.mubr.bf16.gmra.mrb[0].mxu0 %v1365
    %v2497 = vpop.f32.mrb[0].mxu0
    %v2498 = vadd.f32 %v2161, %v2497
    %v2499 = vpop.f32.mrb[0].mxu0
    %v2500 = vpop.f32.mrb[0].mxu0
    %v2501 = vadd.f32 %v2164, %v2500
    %v2502 = vpop.f32.mrb[0].mxu0
    %2503 = vmatprep.mubr.bf16.mxu0 0
    %2504 = vmatmul.mubr.bf16.gmra.mrb[0].mxu0 %v1366
    %v2505 = vpop.f32.mrb[0].mxu0
    %v2506 = vadd.f32 %v2169, %v2505
    %v2507 = vpop.f32.mrb[0].mxu0
    %v2508 = vpop.f32.mrb[0].mxu0
    %v2509 = vadd.f32 %v2172, %v2508
    %v2510 = vpop.f32.mrb[0].mxu0
    %2511 = vdwg.mxu0
    %vm2574 = vcmask 1046528
    %v2575 = vrot.slane %v1335, 1
    %v2576 = vrot.slane %v1368, 1
    %v2577 = vsel %vm2574, %v2575, %v2576
    %v2578 = vrot.slane %v1336, 1
    %v2579 = vrot.slane %v1369, 1
    %v2580 = vsel %vm2574, %v2578, %v2579
    %v2581 = vrot.slane %v1337, 1
    %v2582 = vrot.slane %v1370, 1
    %v2583 = vsel %vm2574, %v2581, %v2582
    %v2584 = vrot.slane %v1338, 1
    %v2585 = vrot.slane %v1371, 1
    %v2586 = vsel %vm2574, %v2584, %v2585
    %v2587 = vrot.slane %v1339, 1
    %v2588 = vrot.slane %v1372, 1
    %v2589 = vsel %vm2574, %v2587, %v2588
    %v2590 = vrot.slane %v1340, 1
    %v2591 = vrot.slane %v1373, 1
    %v2592 = vsel %vm2574, %v2590, %v2591
    %v2593 = vrot.slane %v1341, 1
    %v2594 = vrot.slane %v1374, 1
    %v2595 = vsel %vm2574, %v2593, %v2594
    %v2596 = vrot.slane %v1342, 1
    %v2597 = vrot.slane %v1375, 1
    %v2598 = vsel %vm2574, %v2596, %v2597
    %v2599 = vrot.slane %v1343, 1
    %v2600 = vrot.slane %v1376, 1
    %v2601 = vsel %vm2574, %v2599, %v2600
    %v2602 = vrot.slane %v1344, 1
    %v2603 = vrot.slane %v1377, 1
    %v2604 = vsel %vm2574, %v2602, %v2603
    %v2605 = vrot.slane %v1345, 1
    %v2606 = vrot.slane %v1378, 1
    %v2607 = vsel %vm2574, %v2605, %v2606
    %v2608 = vrot.slane %v1346, 1
    %v2609 = vrot.slane %v1379, 1
    %v2610 = vsel %vm2574, %v2608, %v2609
    %v2611 = vrot.slane %v1347, 1
    %v2612 = vrot.slane %v1380, 1
    %v2613 = vsel %vm2574, %v2611, %v2612
    %v2614 = vrot.slane %v1348, 1
    %v2615 = vrot.slane %v1381, 1
    %v2616 = vsel %vm2574, %v2614, %v2615
    %v2617 = vrot.slane %v1349, 1
    %v2618 = vrot.slane %v1382, 1
    %v2619 = vsel %vm2574, %v2617, %v2618
    %v2620 = vrot.slane %v1350, 1
    %v2621 = vrot.slane %v1383, 1
    %v2622 = vsel %vm2574, %v2620, %v2621
    %v2623 = vrot.slane %v1352, 1
    %v2624 = vrot.slane %v1385, 1
    %v2625 = vsel %vm2574, %v2623, %v2624
    %v2626 = vrot.slane %v1353, 1
    %v2627 = vrot.slane %v1386, 1
    %v2628 = vsel %vm2574, %v2626, %v2627
    %v2629 = vrot.slane %v1354, 1
    %v2630 = vrot.slane %v1387, 1
    %v2631 = vsel %vm2574, %v2629, %v2630
    %v2632 = vrot.slane %v1355, 1
    %v2633 = vrot.slane %v1388, 1
    %v2634 = vsel %vm2574, %v2632, %v2633
    %v2635 = vrot.slane %v1356, 1
    %v2636 = vrot.slane %v1389, 1
    %v2637 = vsel %vm2574, %v2635, %v2636
    %v2638 = vrot.slane %v1357, 1
    %v2639 = vrot.slane %v1390, 1
    %v2640 = vsel %vm2574, %v2638, %v2639
    %v2641 = vrot.slane %v1358, 1
    %v2642 = vrot.slane %v1391, 1
    %v2643 = vsel %vm2574, %v2641, %v2642
    %v2644 = vrot.slane %v1359, 1
    %v2645 = vrot.slane %v1392, 1
    %v2646 = vsel %vm2574, %v2644, %v2645
    %v2647 = vrot.slane %v1360, 1
    %v2648 = vrot.slane %v1393, 1
    %v2649 = vsel %vm2574, %v2647, %v2648
    %v2650 = vrot.slane %v1361, 1
    %v2651 = vrot.slane %v1394, 1
    %v2652 = vsel %vm2574, %v2650, %v2651
    %v2653 = vrot.slane %v1362, 1
    %v2654 = vrot.slane %v1395, 1
    %v2655 = vsel %vm2574, %v2653, %v2654
    %v2656 = vrot.slane %v1363, 1
    %v2657 = vrot.slane %v1396, 1
    %v2658 = vsel %vm2574, %v2656, %v2657
    %v2659 = vrot.slane %v1364, 1
    %v2660 = vrot.slane %v1397, 1
    %v2661 = vsel %vm2574, %v2659, %v2660
    %v2662 = vrot.slane %v1365, 1
    %v2663 = vrot.slane %v1398, 1
    %v2664 = vsel %vm2574, %v2662, %v2663
    %v2665 = vrot.slane %v1366, 1
    %v2666 = vrot.slane %v1399, 1
    %v2667 = vsel %vm2574, %v2665, %v2666
    %s2699 = scalar_lea.vmem [#allocation7], 128
    %v2700 = vld [vmem:[%s2699] sm:$0xf]
    %v2701 = vld [vmem:[%s2699 + $0x4] sm:$0xf]
    %v2702 = vld [vmem:[%s2699 + $0x8] sm:$0xf]
    %v2703 = vld [vmem:[%s2699 + $0xc] sm:$0xf]
    %v2704 = vld [vmem:[%s2699 + $0x10] sm:$0xf]
    %v2705 = vld [vmem:[%s2699 + $0x14] sm:$0xf]
    %v2706 = vld [vmem:[%s2699 + $0x18] sm:$0xf]
    %v2707 = vld [vmem:[%s2699 + $0x1c] sm:$0xf]
    %v2708 = vld [vmem:[%s2699 + $0x20] sm:$0xf]
    %v2709 = vld [vmem:[%s2699 + $0x24] sm:$0xf]
    %v2710 = vld [vmem:[%s2699 + $0x28] sm:$0xf]
    %v2711 = vld [vmem:[%s2699 + $0x2c] sm:$0xf]
    %v2712 = vld [vmem:[%s2699 + $0x30] sm:$0xf]
    %v2713 = vld [vmem:[%s2699 + $0x34] sm:$0xf]
    %v2714 = vld [vmem:[%s2699 + $0x38] sm:$0xf]
    %v2715 = vld [vmem:[%s2699 + $0x3c] sm:$0xf]
    %v2732 = vunpack.c.l.b16 %v2700
    %v2733 = vunpack.c.l.b16 %v2701
    %v2734 = vunpack.c.l.b16 %v2702
    %v2735 = vunpack.c.l.b16 %v2703
    %v2736 = vunpack.c.l.b16 %v2704
    %v2737 = vunpack.c.l.b16 %v2705
    %v2738 = vunpack.c.l.b16 %v2706
    %v2739 = vunpack.c.l.b16 %v2707
    %v2740 = vunpack.c.l.b16 %v2708
    %v2741 = vunpack.c.l.b16 %v2709
    %v2742 = vunpack.c.l.b16 %v2710
    %v2743 = vunpack.c.l.b16 %v2711
    %v2744 = vunpack.c.l.b16 %v2712
    %v2745 = vunpack.c.l.b16 %v2713
    %v2746 = vunpack.c.l.b16 %v2714
    %v2747 = vunpack.c.l.b16 %v2715
    %v2748 = vpack.c.b16 %v2733, %v2732
    %v2749 = vpack.c.b16 %v2735, %v2734
    %v2750 = vpack.c.b16 %v2737, %v2736
    %v2751 = vpack.c.b16 %v2739, %v2738
    %v2752 = vpack.c.b16 %v2741, %v2740
    %v2753 = vpack.c.b16 %v2743, %v2742
    %v2754 = vpack.c.b16 %v2745, %v2744
    %v2755 = vpack.c.b16 %v2747, %v2746
    %2764 = vmatprep.subr.bf16.mxu0 0
    %2765 = vmatpush1.bf16.msra.mxu0 %v2748
    %2766 = vmatprep.subr.bf16.mxu0 0
    %2767 = vmatpush1.bf16.msra.mxu0 %v2749
    %2768 = vmatprep.subr.bf16.mxu0 0
    %2769 = vmatpush1.bf16.msra.mxu0 %v2750
    %2770 = vmatprep.subr.bf16.mxu0 0
    %2771 = vmatpush1.bf16.msra.mxu0 %v2751
    %2772 = vmatprep.subr.bf16.mxu0 0
    %2773 = vmatpush1.bf16.msra.mxu0 %v2752
    %2774 = vmatprep.subr.bf16.mxu0 0
    %2775 = vmatpush1.bf16.msra.mxu0 %v2753
    %2776 = vmatprep.subr.bf16.mxu0 0
    %2777 = vmatpush1.bf16.msra.mxu0 %v2754
    %2778 = vmatprep.subr.bf16.mxu0 0
    %2779 = vmatpush1.bf16.msra.mxu0 %v2755
    %2780 = vmatprep.subr.bf16.mxu0 0
    %2781 = vmatpush1.bf16.msra.mxu0 0
    %2782 = vmatprep.subr.bf16.mxu0 0
    %2783 = vmatpush1.bf16.msra.mxu0 0
    %2784 = vmatprep.subr.bf16.mxu0 0
    %2785 = vmatpush1.bf16.msra.mxu0 0
    %2786 = vmatprep.subr.bf16.mxu0 0
    %2787 = vmatpush1.bf16.msra.mxu0 0
    %2788 = vmatprep.subr.bf16.mxu0 0
    %2789 = vmatpush1.bf16.msra.mxu0 0
    %2790 = vmatprep.subr.bf16.mxu0 0
    %2791 = vmatpush1.bf16.msra.mxu0 0
    %2792 = vmatprep.subr.bf16.mxu0 0
    %2793 = vmatpush1.bf16.msra.mxu0 0
    %2794 = vmatprep.subr.bf16.mxu0 0
    %2795 = vmatpush1.bf16.msra.mxu0 0
    %2796 = vmatprep.mubr.bf16.mxu0 0
    %2797 = vmatmul.mubr.bf16.gmra.mrb[0].mxu0 %v2577
    %v2798 = vpop.f32.mrb[0].mxu0
    %v2799 = vadd.f32 0.0, %v2798
    %v2800 = vpop.f32.mrb[0].mxu0
    %v2801 = vpop.f32.mrb[0].mxu0
    %v2802 = vadd.f32 0.0, %v2801
    %v2803 = vpop.f32.mrb[0].mxu0
    %2804 = vmatprep.mubr.bf16.mxu0 0
    %2805 = vmatmul.mubr.bf16.gmra.mrb[0].mxu0 %v2580
    %v2806 = vpop.f32.mrb[0].mxu0
    %v2807 = vadd.f32 0.0, %v2806
    %v2808 = vpop.f32.mrb[0].mxu0
    %v2809 = vpop.f32.mrb[0].mxu0
    %v2810 = vadd.f32 0.0, %v2809
    %v2811 = vpop.f32.mrb[0].mxu0
    %2812 = vmatprep.mubr.bf16.mxu0 0
    %2813 = vmatmul.mubr.bf16.gmra.mrb[0].mxu0 %v2583
    %v2814 = vpop.f32.mrb[0].mxu0
    %v2815 = vadd.f32 0.0, %v2814
    %v2816 = vpop.f32.mrb[0].mxu0
    %v2817 = vpop.f32.mrb[0].mxu0
    %v2818 = vadd.f32 0.0, %v2817
    %v2819 = vpop.f32.mrb[0].mxu0
    %2820 = vmatprep.mubr.bf16.mxu0 0
    %2821 = vmatmul.mubr.bf16.gmra.mrb[0].mxu0 %v2586
    %v2822 = vpop.f32.mrb[0].mxu0
    %v2823 = vadd.f32 0.0, %v2822
    %v2824 = vpop.f32.mrb[0].mxu0
    %v2825 = vpop.f32.mrb[0].mxu0
    %v2826 = vadd.f32 0.0, %v2825
    %v2827 = vpop.f32.mrb[0].mxu0
    %2828 = vmatprep.mubr.bf16.mxu0 0
    %2829 = vmatmul.mubr.bf16.gmra.mrb[0].mxu0 %v2589
    %v2830 = vpop.f32.mrb[0].mxu0
    %v2831 = vadd.f32 0.0, %v2830
    %v2832 = vpop.f32.mrb[0].mxu0
    %v2833 = vpop.f32.mrb[0].mxu0
    %v2834 = vadd.f32 0.0, %v2833
    %v2835 = vpop.f32.mrb[0].mxu0
    %2836 = vmatprep.mubr.bf16.mxu0 0
    %2837 = vmatmul.mubr.bf16.gmra.mrb[0].mxu0 %v2592
    %v2838 = vpop.f32.mrb[0].mxu0
    %v2839 = vadd.f32 0.0, %v2838
    %v2840 = vpop.f32.mrb[0].mxu0
    %v2841 = vpop.f32.mrb[0].mxu0
    %v2842 = vadd.f32 0.0, %v2841
    %v2843 = vpop.f32.mrb[0].mxu0
    %2844 = vmatprep.mubr.bf16.mxu0 0
    %2845 = vmatmul.mubr.bf16.gmra.mrb[0].mxu0 %v2595
    %v2846 = vpop.f32.mrb[0].mxu0
    %v2847 = vadd.f32 0.0, %v2846
    %v2848 = vpop.f32.mrb[0].mxu0
    %v2849 = vpop.f32.mrb[0].mxu0
    %v2850 = vadd.f32 0.0, %v2849
    %v2851 = vpop.f32.mrb[0].mxu0
    %2852 = vmatprep.mubr.bf16.mxu0 0
    %2853 = vmatmul.mubr.bf16.gmra.mrb[0].mxu0 %v2598
    %v2854 = vpop.f32.mrb[0].mxu0
    %v2855 = vadd.f32 0.0, %v2854
    %v2856 = vpop.f32.mrb[0].mxu0
    %v2857 = vpop.f32.mrb[0].mxu0
    %v2858 = vadd.f32 0.0, %v2857
    %v2859 = vpop.f32.mrb[0].mxu0
    %2860 = vmatprep.mubr.bf16.mxu0 0
    %2861 = vmatmul.mubr.bf16.gmra.mrb[0].mxu0 %v2601
    %v2862 = vpop.f32.mrb[0].mxu0
    %v2863 = vadd.f32 0.0, %v2862
    %v2864 = vpop.f32.mrb[0].mxu0
    %v2865 = vpop.f32.mrb[0].mxu0
    %v2866 = vadd.f32 0.0, %v2865
    %v2867 = vpop.f32.mrb[0].mxu0
    %2868 = vmatprep.mubr.bf16.mxu0 0
    %2869 = vmatmul.mubr.bf16.gmra.mrb[0].mxu0 %v2604
    %v2870 = vpop.f32.mrb[0].mxu0
    %v2871 = vadd.f32 0.0, %v2870
    %v2872 = vpop.f32.mrb[0].mxu0
    %v2873 = vpop.f32.mrb[0].mxu0
    %v2874 = vadd.f32 0.0, %v2873
    %v2875 = vpop.f32.mrb[0].mxu0
    %2876 = vmatprep.mubr.bf16.mxu0 0
    %2877 = vmatmul.mubr.bf16.gmra.mrb[0].mxu0 %v2607
    %v2878 = vpop.f32.mrb[0].mxu0
    %v2879 = vadd.f32 0.0, %v2878
    %v2880 = vpop.f32.mrb[0].mxu0
    %v2881 = vpop.f32.mrb[0].mxu0
    %v2882 = vadd.f32 0.0, %v2881
    %v2883 = vpop.f32.mrb[0].mxu0
    %2884 = vmatprep.mubr.bf16.mxu0 0
    %2885 = vmatmul.mubr.bf16.gmra.mrb[0].mxu0 %v2610
    %v2886 = vpop.f32.mrb[0].mxu0
    %v2887 = vadd.f32 0.0, %v2886
    %v2888 = vpop.f32.mrb[0].mxu0
    %v2889 = vpop.f32.mrb[0].mxu0
    %v2890 = vadd.f32 0.0, %v2889
    %v2891 = vpop.f32.mrb[0].mxu0
    %2892 = vmatprep.mubr.bf16.mxu0 0
    %2893 = vmatmul.mubr.bf16.gmra.mrb[0].mxu0 %v2613
    %v2894 = vpop.f32.mrb[0].mxu0
    %v2895 = vadd.f32 0.0, %v2894
    %v2896 = vpop.f32.mrb[0].mxu0
    %v2897 = vpop.f32.mrb[0].mxu0
    %v2898 = vadd.f32 0.0, %v2897
    %v2899 = vpop.f32.mrb[0].mxu0
    %2900 = vmatprep.mubr.bf16.mxu0 0
    %2901 = vmatmul.mubr.bf16.gmra.mrb[0].mxu0 %v2616
    %v2902 = vpop.f32.mrb[0].mxu0
    %v2903 = vadd.f32 0.0, %v2902
    %v2904 = vpop.f32.mrb[0].mxu0
    %v2905 = vpop.f32.mrb[0].mxu0
    %v2906 = vadd.f32 0.0, %v2905
    %v2907 = vpop.f32.mrb[0].mxu0
    %2908 = vmatprep.mubr.bf16.mxu0 0
    %2909 = vmatmul.mubr.bf16.gmra.mrb[0].mxu0 %v2619
    %v2910 = vpop.f32.mrb[0].mxu0
    %v2911 = vadd.f32 0.0, %v2910
    %v2912 = vpop.f32.mrb[0].mxu0
    %v2913 = vpop.f32.mrb[0].mxu0
    %v2914 = vadd.f32 0.0, %v2913
    %v2915 = vpop.f32.mrb[0].mxu0
    %2916 = vmatprep.mubr.bf16.mxu0 0
    %2917 = vmatmul.mubr.bf16.gmra.mrb[0].mxu0 %v2622
    %v2918 = vpop.f32.mrb[0].mxu0
    %v2919 = vadd.f32 0.0, %v2918
    %v2920 = vpop.f32.mrb[0].mxu0
    %v2921 = vpop.f32.mrb[0].mxu0
    %v2922 = vadd.f32 0.0, %v2921
    %v2923 = vpop.f32.mrb[0].mxu0
    %2924 = vmatprep.mubr.bf16.mxu0 0
    %2925 = vmatmul.mubr.bf16.gmra.mrb[0].mxu0 %v2577
    %v2926 = vpop.f32.mrb[0].mxu0
    %v2927 = vadd.f32 0.0, %v2926
    %v2928 = vpop.f32.mrb[0].mxu0
    %v2929 = vpop.f32.mrb[0].mxu0
    %v2930 = vadd.f32 0.0, %v2929
    %v2931 = vpop.f32.mrb[0].mxu0
    %2932 = vmatprep.mubr.bf16.mxu0 0
    %2933 = vmatmul.mubr.bf16.gmra.mrb[0].mxu0 %v2625
    %v2934 = vpop.f32.mrb[0].mxu0
    %v2935 = vadd.f32 0.0, %v2934
    %v2936 = vpop.f32.mrb[0].mxu0
    %v2937 = vpop.f32.mrb[0].mxu0
    %v2938 = vadd.f32 0.0, %v2937
    %v2939 = vpop.f32.mrb[0].mxu0
    %2940 = vmatprep.mubr.bf16.mxu0 0
    %2941 = vmatmul.mubr.bf16.gmra.mrb[0].mxu0 %v2628
    %v2942 = vpop.f32.mrb[0].mxu0
    %v2943 = vadd.f32 0.0, %v2942
    %v2944 = vpop.f32.mrb[0].mxu0
    %v2945 = vpop.f32.mrb[0].mxu0
    %v2946 = vadd.f32 0.0, %v2945
    %v2947 = vpop.f32.mrb[0].mxu0
    %2948 = vmatprep.mubr.bf16.mxu0 0
    %2949 = vmatmul.mubr.bf16.gmra.mrb[0].mxu0 %v2631
    %v2950 = vpop.f32.mrb[0].mxu0
    %v2951 = vadd.f32 0.0, %v2950
    %v2952 = vpop.f32.mrb[0].mxu0
    %v2953 = vpop.f32.mrb[0].mxu0
    %v2954 = vadd.f32 0.0, %v2953
    %v2955 = vpop.f32.mrb[0].mxu0
    %2956 = vmatprep.mubr.bf16.mxu0 0
    %2957 = vmatmul.mubr.bf16.gmra.mrb[0].mxu0 %v2634
    %v2958 = vpop.f32.mrb[0].mxu0
    %v2959 = vadd.f32 0.0, %v2958
    %v2960 = vpop.f32.mrb[0].mxu0
    %v2961 = vpop.f32.mrb[0].mxu0
    %v2962 = vadd.f32 0.0, %v2961
    %v2963 = vpop.f32.mrb[0].mxu0
    %2964 = vmatprep.mubr.bf16.mxu0 0
    %2965 = vmatmul.mubr.bf16.gmra.mrb[0].mxu0 %v2637
    %v2966 = vpop.f32.mrb[0].mxu0
    %v2967 = vadd.f32 0.0, %v2966
    %v2968 = vpop.f32.mrb[0].mxu0
    %v2969 = vpop.f32.mrb[0].mxu0
    %v2970 = vadd.f32 0.0, %v2969
    %v2971 = vpop.f32.mrb[0].mxu0
    %2972 = vmatprep.mubr.bf16.mxu0 0
    %2973 = vmatmul.mubr.bf16.gmra.mrb[0].mxu0 %v2640
    %v2974 = vpop.f32.mrb[0].mxu0
    %v2975 = vadd.f32 0.0, %v2974
    %v2976 = vpop.f32.mrb[0].mxu0
    %v2977 = vpop.f32.mrb[0].mxu0
    %v2978 = vadd.f32 0.0, %v2977
    %v2979 = vpop.f32.mrb[0].mxu0
    %2980 = vmatprep.mubr.bf16.mxu0 0
    %2981 = vmatmul.mubr.bf16.gmra.mrb[0].mxu0 %v2643
    %v2982 = vpop.f32.mrb[0].mxu0
    %v2983 = vadd.f32 0.0, %v2982
    %v2984 = vpop.f32.mrb[0].mxu0
    %v2985 = vpop.f32.mrb[0].mxu0
    %v2986 = vadd.f32 0.0, %v2985
    %v2987 = vpop.f32.mrb[0].mxu0
    %2988 = vmatprep.mubr.bf16.mxu0 0
    %2989 = vmatmul.mubr.bf16.gmra.mrb[0].mxu0 %v2646
    %v2990 = vpop.f32.mrb[0].mxu0
    %v2991 = vadd.f32 0.0, %v2990
    %v2992 = vpop.f32.mrb[0].mxu0
    %v2993 = vpop.f32.mrb[0].mxu0
    %v2994 = vadd.f32 0.0, %v2993
    %v2995 = vpop.f32.mrb[0].mxu0
    %2996 = vmatprep.mubr.bf16.mxu0 0
    %2997 = vmatmul.mubr.bf16.gmra.mrb[0].mxu0 %v2649
    %v2998 = vpop.f32.mrb[0].mxu0
    %v2999 = vadd.f32 0.0, %v2998
    %v3000 = vpop.f32.mrb[0].mxu0
    %v3001 = vpop.f32.mrb[0].mxu0
    %v3002 = vadd.f32 0.0, %v3001
    %v3003 = vpop.f32.mrb[0].mxu0
    %3004 = vmatprep.mubr.bf16.mxu0 0
    %3005 = vmatmul.mubr.bf16.gmra.mrb[0].mxu0 %v2652
    %v3006 = vpop.f32.mrb[0].mxu0
    %v3007 = vadd.f32 0.0, %v3006
    %v3008 = vpop.f32.mrb[0].mxu0
    %v3009 = vpop.f32.mrb[0].mxu0
    %v3010 = vadd.f32 0.0, %v3009
    %v3011 = vpop.f32.mrb[0].mxu0
    %3012 = vmatprep.mubr.bf16.mxu0 0
    %3013 = vmatmul.mubr.bf16.gmra.mrb[0].mxu0 %v2655
    %v3014 = vpop.f32.mrb[0].mxu0
    %v3015 = vadd.f32 0.0, %v3014
    %v3016 = vpop.f32.mrb[0].mxu0
    %v3017 = vpop.f32.mrb[0].mxu0
    %v3018 = vadd.f32 0.0, %v3017
    %v3019 = vpop.f32.mrb[0].mxu0
    %3020 = vmatprep.mubr.bf16.mxu0 0
    %3021 = vmatmul.mubr.bf16.gmra.mrb[0].mxu0 %v2658
    %v3022 = vpop.f32.mrb[0].mxu0
    %v3023 = vadd.f32 0.0, %v3022
    %v3024 = vpop.f32.mrb[0].mxu0
    %v3025 = vpop.f32.mrb[0].mxu0
    %v3026 = vadd.f32 0.0, %v3025
    %v3027 = vpop.f32.mrb[0].mxu0
    %3028 = vmatprep.mubr.bf16.mxu0 0
    %3029 = vmatmul.mubr.bf16.gmra.mrb[0].mxu0 %v2661
    %v3030 = vpop.f32.mrb[0].mxu0
    %v3031 = vadd.f32 0.0, %v3030
    %v3032 = vpop.f32.mrb[0].mxu0
    %v3033 = vpop.f32.mrb[0].mxu0
    %v3034 = vadd.f32 0.0, %v3033
    %v3035 = vpop.f32.mrb[0].mxu0
    %3036 = vmatprep.mubr.bf16.mxu0 0
    %3037 = vmatmul.mubr.bf16.gmra.mrb[0].mxu0 %v2664
    %v3038 = vpop.f32.mrb[0].mxu0
    %v3039 = vadd.f32 0.0, %v3038
    %v3040 = vpop.f32.mrb[0].mxu0
    %v3041 = vpop.f32.mrb[0].mxu0
    %v3042 = vadd.f32 0.0, %v3041
    %v3043 = vpop.f32.mrb[0].mxu0
    %3044 = vmatprep.mubr.bf16.mxu0 0
    %3045 = vmatmul.mubr.bf16.gmra.mrb[0].mxu0 %v2667
    %v3046 = vpop.f32.mrb[0].mxu0
    %v3047 = vadd.f32 0.0, %v3046
    %v3048 = vpop.f32.mrb[0].mxu0
    %v3049 = vpop.f32.mrb[0].mxu0
    %v3050 = vadd.f32 0.0, %v3049
    %v3051 = vpop.f32.mrb[0].mxu0
    %3052 = vdwg.mxu0
    %v3053 = vadd.f32 %v2258, %v2799
    %v3054 = vadd.f32 %v2261, %v2802
    %v3055 = vadd.f32 %v2266, %v2807
    %v3056 = vadd.f32 %v2269, %v2810
    %v3057 = vadd.f32 %v2274, %v2815
    %v3058 = vadd.f32 %v2277, %v2818
    %v3059 = vadd.f32 %v2282, %v2823
    %v3060 = vadd.f32 %v2285, %v2826
    %v3061 = vadd.f32 %v2290, %v2831
    %v3062 = vadd.f32 %v2293, %v2834
    %v3063 = vadd.f32 %v2298, %v2839
    %v3064 = vadd.f32 %v2301, %v2842
    %v3065 = vadd.f32 %v2306, %v2847
    %v3066 = vadd.f32 %v2309, %v2850
    %v3067 = vadd.f32 %v2314, %v2855
    %v3068 = vadd.f32 %v2317, %v2858
    %v3069 = vadd.f32 %v2322, %v2863
    %v3070 = vadd.f32 %v2325, %v2866
    %v3071 = vadd.f32 %v2330, %v2871
    %v3072 = vadd.f32 %v2333, %v2874
    %v3073 = vadd.f32 %v2338, %v2879
    %v3074 = vadd.f32 %v2341, %v2882
    %v3075 = vadd.f32 %v2346, %v2887
    %v3076 = vadd.f32 %v2349, %v2890
    %v3077 = vadd.f32 %v2354, %v2895
    %v3078 = vadd.f32 %v2357, %v2898
    %v3079 = vadd.f32 %v2362, %v2903
    %v3080 = vadd.f32 %v2365, %v2906
    %v3081 = vadd.f32 %v2370, %v2911
    %v3082 = vadd.f32 %v2373, %v2914
    %v3083 = vadd.f32 %v2378, %v2919
    %v3084 = vadd.f32 %v2381, %v2922
    %v3085 = vadd.f32 %v2386, %v2927
    %v3086 = vadd.f32 %v2389, %v2930
    %v3087 = vadd.f32 %v2394, %v2935
    %v3088 = vadd.f32 %v2397, %v2938
    %v3089 = vadd.f32 %v2402, %v2943
    %v3090 = vadd.f32 %v2405, %v2946
    %v3091 = vadd.f32 %v2410, %v2951
    %v3092 = vadd.f32 %v2413, %v2954
    %v3093 = vadd.f32 %v2418, %v2959
    %v3094 = vadd.f32 %v2421, %v2962
    %v3095 = vadd.f32 %v2426, %v2967
    %v3096 = vadd.f32 %v2429, %v2970
    %v3097 = vadd.f32 %v2434, %v2975
    %v3098 = vadd.f32 %v2437, %v2978
    %v3099 = vadd.f32 %v2442, %v2983
    %v3100 = vadd.f32 %v2445, %v2986
    %v3101 = vadd.f32 %v2450, %v2991
    %v3102 = vadd.f32 %v2453, %v2994
    %v3103 = vadd.f32 %v2458, %v2999
    %v3104 = vadd.f32 %v2461, %v3002
    %v3105 = vadd.f32 %v2466, %v3007
    %v3106 = vadd.f32 %v2469, %v3010
    %v3107 = vadd.f32 %v2474, %v3015
    %v3108 = vadd.f32 %v2477, %v3018
    %v3109 = vadd.f32 %v2482, %v3023
    %v3110 = vadd.f32 %v2485, %v3026
    %v3111 = vadd.f32 %v2490, %v3031
    %v3112 = vadd.f32 %v2493, %v3034
    %v3113 = vadd.f32 %v2498, %v3039
    %v3114 = vadd.f32 %v2501, %v3042
    %v3115 = vadd.f32 %v2506, %v3047
    %v3116 = vadd.f32 %v2509, %v3050
    %s3117 = scalar_lea.vmem [#allocation7], 192
    %v3118 = vld [vmem:[%s3117] sm:$0xf]
    %v3119 = vld [vmem:[%s3117 + $0x4] sm:$0xf]
    %v3120 = vld [vmem:[%s3117 + $0x8] sm:$0xf]
    %v3121 = vld [vmem:[%s3117 + $0xc] sm:$0xf]
    %v3122 = vld [vmem:[%s3117 + $0x10] sm:$0xf]
    %v3123 = vld [vmem:[%s3117 + $0x14] sm:$0xf]
    %v3124 = vld [vmem:[%s3117 + $0x18] sm:$0xf]
    %v3125 = vld [vmem:[%s3117 + $0x1c] sm:$0xf]
    %v3126 = vld [vmem:[%s3117 + $0x20] sm:$0xf]
    %v3127 = vld [vmem:[%s3117 + $0x24] sm:$0xf]
    %v3128 = vld [vmem:[%s3117 + $0x28] sm:$0xf]
    %v3129 = vld [vmem:[%s3117 + $0x2c] sm:$0xf]
    %v3130 = vld [vmem:[%s3117 + $0x30] sm:$0xf]
    %v3131 = vld [vmem:[%s3117 + $0x34] sm:$0xf]
    %v3132 = vld [vmem:[%s3117 + $0x38] sm:$0xf]
    %v3133 = vld [vmem:[%s3117 + $0x3c] sm:$0xf]
    %v3150 = vunpack.c.l.b16 %v3118
    %v3151 = vunpack.c.l.b16 %v3119
    %v3152 = vunpack.c.l.b16 %v3120
    %v3153 = vunpack.c.l.b16 %v3121
    %v3154 = vunpack.c.l.b16 %v3122
    %v3155 = vunpack.c.l.b16 %v3123
    %v3156 = vunpack.c.l.b16 %v3124
    %v3157 = vunpack.c.l.b16 %v3125
    %v3158 = vunpack.c.l.b16 %v3126
    %v3159 = vunpack.c.l.b16 %v3127
    %v3160 = vunpack.c.l.b16 %v3128
    %v3161 = vunpack.c.l.b16 %v3129
    %v3162 = vunpack.c.l.b16 %v3130
    %v3163 = vunpack.c.l.b16 %v3131
    %v3164 = vunpack.c.l.b16 %v3132
    %v3165 = vunpack.c.l.b16 %v3133
    %v3166 = vpack.c.b16 %v3151, %v3150
    %v3167 = vpack.c.b16 %v3153, %v3152
    %v3168 = vpack.c.b16 %v3155, %v3154
    %v3169 = vpack.c.b16 %v3157, %v3156
    %v3170 = vpack.c.b16 %v3159, %v3158
    %v3171 = vpack.c.b16 %v3161, %v3160
    %v3172 = vpack.c.b16 %v3163, %v3162
    %v3173 = vpack.c.b16 %v3165, %v3164
    %3182 = vmatprep.subr.bf16.mxu0 0
    %3183 = vmatpush1.bf16.msra.mxu0 %v3166
    %3184 = vmatprep.subr.bf16.mxu0 0
    %3185 = vmatpush1.bf16.msra.mxu0 %v3167
    %3186 = vmatprep.subr.bf16.mxu0 0
    %3187 = vmatpush1.bf16.msra.mxu0 %v3168
    %3188 = vmatprep.subr.bf16.mxu0 0
    %3189 = vmatpush1.bf16.msra.mxu0 %v3169
    %3190 = vmatprep.subr.bf16.mxu0 0
    %3191 = vmatpush1.bf16.msra.mxu0 %v3170
    %3192 = vmatprep.subr.bf16.mxu0 0
    %3193 = vmatpush1.bf16.msra.mxu0 %v3171
    %3194 = vmatprep.subr.bf16.mxu0 0
    %3195 = vmatpush1.bf16.msra.mxu0 %v3172
    %3196 = vmatprep.subr.bf16.mxu0 0
    %3197 = vmatpush1.bf16.msra.mxu0 %v3173
    %3198 = vmatprep.subr.bf16.mxu0 0
    %3199 = vmatpush1.bf16.msra.mxu0 0
    %3200 = vmatprep.subr.bf16.mxu0 0
    %3201 = vmatpush1.bf16.msra.mxu0 0
    %3202 = vmatprep.subr.bf16.mxu0 0
    %3203 = vmatpush1.bf16.msra.mxu0 0
    %3204 = vmatprep.subr.bf16.mxu0 0
    %3205 = vmatpush1.bf16.msra.mxu0 0
    %3206 = vmatprep.subr.bf16.mxu0 0
    %3207 = vmatpush1.bf16.msra.mxu0 0
    %3208 = vmatprep.subr.bf16.mxu0 0
    %3209 = vmatpush1.bf16.msra.mxu0 0
    %3210 = vmatprep.subr.bf16.mxu0 0
    %3211 = vmatpush1.bf16.msra.mxu0 0
    %3212 = vmatprep.subr.bf16.mxu0 0
    %3213 = vmatpush1.bf16.msra.mxu0 0
    %3214 = vmatprep.mubr.bf16.mxu0 0
    %3215 = vmatmul.mubr.bf16.gmra.mrb[0].mxu0 %v1336
    %v3216 = vpop.f32.mrb[0].mxu0
    %v3217 = vadd.f32 0.0, %v3216
    %v3218 = vpop.f32.mrb[0].mxu0
    %v3219 = vpop.f32.mrb[0].mxu0
    %v3220 = vadd.f32 0.0, %v3219
    %v3221 = vpop.f32.mrb[0].mxu0
    %3222 = vmatprep.mubr.bf16.mxu0 0
    %3223 = vmatmul.mubr.bf16.gmra.mrb[0].mxu0 %v1337
    %v3224 = vpop.f32.mrb[0].mxu0
    %v3225 = vadd.f32 0.0, %v3224
    %v3226 = vpop.f32.mrb[0].mxu0
    %v3227 = vpop.f32.mrb[0].mxu0
    %v3228 = vadd.f32 0.0, %v3227
    %v3229 = vpop.f32.mrb[0].mxu0
    %3230 = vmatprep.mubr.bf16.mxu0 0
    %3231 = vmatmul.mubr.bf16.gmra.mrb[0].mxu0 %v1338
    %v3232 = vpop.f32.mrb[0].mxu0
    %v3233 = vadd.f32 0.0, %v3232
    %v3234 = vpop.f32.mrb[0].mxu0
    %v3235 = vpop.f32.mrb[0].mxu0
    %v3236 = vadd.f32 0.0, %v3235
    %v3237 = vpop.f32.mrb[0].mxu0
    %3238 = vmatprep.mubr.bf16.mxu0 0
    %3239 = vmatmul.mubr.bf16.gmra.mrb[0].mxu0 %v1339
    %v3240 = vpop.f32.mrb[0].mxu0
    %v3241 = vadd.f32 0.0, %v3240
    %v3242 = vpop.f32.mrb[0].mxu0
    %v3243 = vpop.f32.mrb[0].mxu0
    %v3244 = vadd.f32 0.0, %v3243
    %v3245 = vpop.f32.mrb[0].mxu0
    %3246 = vmatprep.mubr.bf16.mxu0 0
    %3247 = vmatmul.mubr.bf16.gmra.mrb[0].mxu0 %v1340
    %v3248 = vpop.f32.mrb[0].mxu0
    %v3249 = vadd.f32 0.0, %v3248
    %v3250 = vpop.f32.mrb[0].mxu0
    %v3251 = vpop.f32.mrb[0].mxu0
    %v3252 = vadd.f32 0.0, %v3251
    %v3253 = vpop.f32.mrb[0].mxu0
    %3254 = vmatprep.mubr.bf16.mxu0 0
    %3255 = vmatmul.mubr.bf16.gmra.mrb[0].mxu0 %v1341
    %v3256 = vpop.f32.mrb[0].mxu0
    %v3257 = vadd.f32 0.0, %v3256
    %v3258 = vpop.f32.mrb[0].mxu0
    %v3259 = vpop.f32.mrb[0].mxu0
    %v3260 = vadd.f32 0.0, %v3259
    %v3261 = vpop.f32.mrb[0].mxu0
    %3262 = vmatprep.mubr.bf16.mxu0 0
    %3263 = vmatmul.mubr.bf16.gmra.mrb[0].mxu0 %v1342
    %v3264 = vpop.f32.mrb[0].mxu0
    %v3265 = vadd.f32 0.0, %v3264
    %v3266 = vpop.f32.mrb[0].mxu0
    %v3267 = vpop.f32.mrb[0].mxu0
    %v3268 = vadd.f32 0.0, %v3267
    %v3269 = vpop.f32.mrb[0].mxu0
    %3270 = vmatprep.mubr.bf16.mxu0 0
    %3271 = vmatmul.mubr.bf16.gmra.mrb[0].mxu0 %v1343
    %v3272 = vpop.f32.mrb[0].mxu0
    %v3273 = vadd.f32 0.0, %v3272
    %v3274 = vpop.f32.mrb[0].mxu0
    %v3275 = vpop.f32.mrb[0].mxu0
    %v3276 = vadd.f32 0.0, %v3275
    %v3277 = vpop.f32.mrb[0].mxu0
    %3278 = vmatprep.mubr.bf16.mxu0 0
    %3279 = vmatmul.mubr.bf16.gmra.mrb[0].mxu0 %v1344
    %v3280 = vpop.f32.mrb[0].mxu0
    %v3281 = vadd.f32 0.0, %v3280
    %v3282 = vpop.f32.mrb[0].mxu0
    %v3283 = vpop.f32.mrb[0].mxu0
    %v3284 = vadd.f32 0.0, %v3283
    %v3285 = vpop.f32.mrb[0].mxu0
    %3286 = vmatprep.mubr.bf16.mxu0 0
    %3287 = vmatmul.mubr.bf16.gmra.mrb[0].mxu0 %v1345
    %v3288 = vpop.f32.mrb[0].mxu0
    %v3289 = vadd.f32 0.0, %v3288
    %v3290 = vpop.f32.mrb[0].mxu0
    %v3291 = vpop.f32.mrb[0].mxu0
    %v3292 = vadd.f32 0.0, %v3291
    %v3293 = vpop.f32.mrb[0].mxu0
    %3294 = vmatprep.mubr.bf16.mxu0 0
    %3295 = vmatmul.mubr.bf16.gmra.mrb[0].mxu0 %v1346
    %v3296 = vpop.f32.mrb[0].mxu0
    %v3297 = vadd.f32 0.0, %v3296
    %v3298 = vpop.f32.mrb[0].mxu0
    %v3299 = vpop.f32.mrb[0].mxu0
    %v3300 = vadd.f32 0.0, %v3299
    %v3301 = vpop.f32.mrb[0].mxu0
    %3302 = vmatprep.mubr.bf16.mxu0 0
    %3303 = vmatmul.mubr.bf16.gmra.mrb[0].mxu0 %v1347
    %v3304 = vpop.f32.mrb[0].mxu0
    %v3305 = vadd.f32 0.0, %v3304
    %v3306 = vpop.f32.mrb[0].mxu0
    %v3307 = vpop.f32.mrb[0].mxu0
    %v3308 = vadd.f32 0.0, %v3307
    %v3309 = vpop.f32.mrb[0].mxu0
    %3310 = vmatprep.mubr.bf16.mxu0 0
    %3311 = vmatmul.mubr.bf16.gmra.mrb[0].mxu0 %v1348
    %v3312 = vpop.f32.mrb[0].mxu0
    %v3313 = vadd.f32 0.0, %v3312
    %v3314 = vpop.f32.mrb[0].mxu0
    %v3315 = vpop.f32.mrb[0].mxu0
    %v3316 = vadd.f32 0.0, %v3315
    %v3317 = vpop.f32.mrb[0].mxu0
    %3318 = vmatprep.mubr.bf16.mxu0 0
    %3319 = vmatmul.mubr.bf16.gmra.mrb[0].mxu0 %v1349
    %v3320 = vpop.f32.mrb[0].mxu0
    %v3321 = vadd.f32 0.0, %v3320
    %v3322 = vpop.f32.mrb[0].mxu0
    %v3323 = vpop.f32.mrb[0].mxu0
    %v3324 = vadd.f32 0.0, %v3323
    %v3325 = vpop.f32.mrb[0].mxu0
    %3326 = vmatprep.mubr.bf16.mxu0 0
    %3327 = vmatmul.mubr.bf16.gmra.mrb[0].mxu0 %v1350
    %v3328 = vpop.f32.mrb[0].mxu0
    %v3329 = vadd.f32 0.0, %v3328
    %v3330 = vpop.f32.mrb[0].mxu0
    %v3331 = vpop.f32.mrb[0].mxu0
    %v3332 = vadd.f32 0.0, %v3331
    %v3333 = vpop.f32.mrb[0].mxu0
    %3334 = vmatprep.mubr.bf16.mxu0 0
    %3335 = vmatmul.mubr.bf16.gmra.mrb[0].mxu0 %v1351
    %v3336 = vpop.f32.mrb[0].mxu0
    %v3337 = vadd.f32 0.0, %v3336
    %v3338 = vpop.f32.mrb[0].mxu0
    %v3339 = vpop.f32.mrb[0].mxu0
    %v3340 = vadd.f32 0.0, %v3339
    %v3341 = vpop.f32.mrb[0].mxu0
    %3342 = vmatprep.mubr.bf16.mxu0 0
    %3343 = vmatmul.mubr.bf16.gmra.mrb[0].mxu0 %v1352
    %v3344 = vpop.f32.mrb[0].mxu0
    %v3345 = vadd.f32 0.0, %v3344
    %v3346 = vpop.f32.mrb[0].mxu0
    %v3347 = vpop.f32.mrb[0].mxu0
    %v3348 = vadd.f32 0.0, %v3347
    %v3349 = vpop.f32.mrb[0].mxu0
    %3350 = vmatprep.mubr.bf16.mxu0 0
    %3351 = vmatmul.mubr.bf16.gmra.mrb[0].mxu0 %v1353
    %v3352 = vpop.f32.mrb[0].mxu0
    %v3353 = vadd.f32 0.0, %v3352
    %v3354 = vpop.f32.mrb[0].mxu0
    %v3355 = vpop.f32.mrb[0].mxu0
    %v3356 = vadd.f32 0.0, %v3355
    %v3357 = vpop.f32.mrb[0].mxu0
    %3358 = vmatprep.mubr.bf16.mxu0 0
    %3359 = vmatmul.mubr.bf16.gmra.mrb[0].mxu0 %v1354
    %v3360 = vpop.f32.mrb[0].mxu0
    %v3361 = vadd.f32 0.0, %v3360
    %v3362 = vpop.f32.mrb[0].mxu0
    %v3363 = vpop.f32.mrb[0].mxu0
    %v3364 = vadd.f32 0.0, %v3363
    %v3365 = vpop.f32.mrb[0].mxu0
    %3366 = vmatprep.mubr.bf16.mxu0 0
    %3367 = vmatmul.mubr.bf16.gmra.mrb[0].mxu0 %v1355
    %v3368 = vpop.f32.mrb[0].mxu0
    %v3369 = vadd.f32 0.0, %v3368
    %v3370 = vpop.f32.mrb[0].mxu0
    %v3371 = vpop.f32.mrb[0].mxu0
    %v3372 = vadd.f32 0.0, %v3371
    %v3373 = vpop.f32.mrb[0].mxu0
    %3374 = vmatprep.mubr.bf16.mxu0 0
    %3375 = vmatmul.mubr.bf16.gmra.mrb[0].mxu0 %v1356
    %v3376 = vpop.f32.mrb[0].mxu0
    %v3377 = vadd.f32 0.0, %v3376
    %v3378 = vpop.f32.mrb[0].mxu0
    %v3379 = vpop.f32.mrb[0].mxu0
    %v3380 = vadd.f32 0.0, %v3379
    %v3381 = vpop.f32.mrb[0].mxu0
    %3382 = vmatprep.mubr.bf16.mxu0 0
    %3383 = vmatmul.mubr.bf16.gmra.mrb[0].mxu0 %v1357
    %v3384 = vpop.f32.mrb[0].mxu0
    %v3385 = vadd.f32 0.0, %v3384
    %v3386 = vpop.f32.mrb[0].mxu0
    %v3387 = vpop.f32.mrb[0].mxu0
    %v3388 = vadd.f32 0.0, %v3387
    %v3389 = vpop.f32.mrb[0].mxu0
    %3390 = vmatprep.mubr.bf16.mxu0 0
    %3391 = vmatmul.mubr.bf16.gmra.mrb[0].mxu0 %v1358
    %v3392 = vpop.f32.mrb[0].mxu0
    %v3393 = vadd.f32 0.0, %v3392
    %v3394 = vpop.f32.mrb[0].mxu0
    %v3395 = vpop.f32.mrb[0].mxu0
    %v3396 = vadd.f32 0.0, %v3395
    %v3397 = vpop.f32.mrb[0].mxu0
    %3398 = vmatprep.mubr.bf16.mxu0 0
    %3399 = vmatmul.mubr.bf16.gmra.mrb[0].mxu0 %v1359
    %v3400 = vpop.f32.mrb[0].mxu0
    %v3401 = vadd.f32 0.0, %v3400
    %v3402 = vpop.f32.mrb[0].mxu0
    %v3403 = vpop.f32.mrb[0].mxu0
    %v3404 = vadd.f32 0.0, %v3403
    %v3405 = vpop.f32.mrb[0].mxu0
    %3406 = vmatprep.mubr.bf16.mxu0 0
    %3407 = vmatmul.mubr.bf16.gmra.mrb[0].mxu0 %v1360
    %v3408 = vpop.f32.mrb[0].mxu0
    %v3409 = vadd.f32 0.0, %v3408
    %v3410 = vpop.f32.mrb[0].mxu0
    %v3411 = vpop.f32.mrb[0].mxu0
    %v3412 = vadd.f32 0.0, %v3411
    %v3413 = vpop.f32.mrb[0].mxu0
    %3414 = vmatprep.mubr.bf16.mxu0 0
    %3415 = vmatmul.mubr.bf16.gmra.mrb[0].mxu0 %v1361
    %v3416 = vpop.f32.mrb[0].mxu0
    %v3417 = vadd.f32 0.0, %v3416
    %v3418 = vpop.f32.mrb[0].mxu0
    %v3419 = vpop.f32.mrb[0].mxu0
    %v3420 = vadd.f32 0.0, %v3419
    %v3421 = vpop.f32.mrb[0].mxu0
    %3422 = vmatprep.mubr.bf16.mxu0 0
    %3423 = vmatmul.mubr.bf16.gmra.mrb[0].mxu0 %v1362
    %v3424 = vpop.f32.mrb[0].mxu0
    %v3425 = vadd.f32 0.0, %v3424
    %v3426 = vpop.f32.mrb[0].mxu0
    %v3427 = vpop.f32.mrb[0].mxu0
    %v3428 = vadd.f32 0.0, %v3427
    %v3429 = vpop.f32.mrb[0].mxu0
    %3430 = vmatprep.mubr.bf16.mxu0 0
    %3431 = vmatmul.mubr.bf16.gmra.mrb[0].mxu0 %v1363
    %v3432 = vpop.f32.mrb[0].mxu0
    %v3433 = vadd.f32 0.0, %v3432
    %v3434 = vpop.f32.mrb[0].mxu0
    %v3435 = vpop.f32.mrb[0].mxu0
    %v3436 = vadd.f32 0.0, %v3435
    %v3437 = vpop.f32.mrb[0].mxu0
    %3438 = vmatprep.mubr.bf16.mxu0 0
    %3439 = vmatmul.mubr.bf16.gmra.mrb[0].mxu0 %v1364
    %v3440 = vpop.f32.mrb[0].mxu0
    %v3441 = vadd.f32 0.0, %v3440
    %v3442 = vpop.f32.mrb[0].mxu0
    %v3443 = vpop.f32.mrb[0].mxu0
    %v3444 = vadd.f32 0.0, %v3443
    %v3445 = vpop.f32.mrb[0].mxu0
    %3446 = vmatprep.mubr.bf16.mxu0 0
    %3447 = vmatmul.mubr.bf16.gmra.mrb[0].mxu0 %v1365
    %v3448 = vpop.f32.mrb[0].mxu0
    %v3449 = vadd.f32 0.0, %v3448
    %v3450 = vpop.f32.mrb[0].mxu0
    %v3451 = vpop.f32.mrb[0].mxu0
    %v3452 = vadd.f32 0.0, %v3451
    %v3453 = vpop.f32.mrb[0].mxu0
    %3454 = vmatprep.mubr.bf16.mxu0 0
    %3455 = vmatmul.mubr.bf16.gmra.mrb[0].mxu0 %v1366
    %v3456 = vpop.f32.mrb[0].mxu0
    %v3457 = vadd.f32 0.0, %v3456
    %v3458 = vpop.f32.mrb[0].mxu0
    %v3459 = vpop.f32.mrb[0].mxu0
    %v3460 = vadd.f32 0.0, %v3459
    %v3461 = vpop.f32.mrb[0].mxu0
    %3462 = vmatprep.mubr.bf16.mxu0 0
    %3463 = vmatmul.mubr.bf16.gmra.mrb[0].mxu0 %v1367
    %v3464 = vpop.f32.mrb[0].mxu0
    %v3465 = vadd.f32 0.0, %v3464
    %v3466 = vpop.f32.mrb[0].mxu0
    %v3467 = vpop.f32.mrb[0].mxu0
    %v3468 = vadd.f32 0.0, %v3467
    %v3469 = vpop.f32.mrb[0].mxu0
    %3470 = vdwg.mxu0
    %v3471 = vadd.f32 %v3053, %v3217
    %v3472 = vadd.f32 %v3054, %v3220
    %v3473 = vadd.f32 %v3055, %v3225
    %v3474 = vadd.f32 %v3056, %v3228
    %v3475 = vadd.f32 %v3057, %v3233
    %v3476 = vadd.f32 %v3058, %v3236
    %v3477 = vadd.f32 %v3059, %v3241
    %v3478 = vadd.f32 %v3060, %v3244
    %v3479 = vadd.f32 %v3061, %v3249
    %v3480 = vadd.f32 %v3062, %v3252
    %v3481 = vadd.f32 %v3063, %v3257
    %v3482 = vadd.f32 %v3064, %v3260
    %v3483 = vadd.f32 %v3065, %v3265
    %v3484 = vadd.f32 %v3066, %v3268
    %v3485 = vadd.f32 %v3067, %v3273
    %v3486 = vadd.f32 %v3068, %v3276
    %v3487 = vadd.f32 %v3069, %v3281
    %v3488 = vadd.f32 %v3070, %v3284
    %v3489 = vadd.f32 %v3071, %v3289
    %v3490 = vadd.f32 %v3072, %v3292
    %v3491 = vadd.f32 %v3073, %v3297
    %v3492 = vadd.f32 %v3074, %v3300
    %v3493 = vadd.f32 %v3075, %v3305
    %v3494 = vadd.f32 %v3076, %v3308
    %v3495 = vadd.f32 %v3077, %v3313
    %v3496 = vadd.f32 %v3078, %v3316
    %v3497 = vadd.f32 %v3079, %v3321
    %v3498 = vadd.f32 %v3080, %v3324
    %v3499 = vadd.f32 %v3081, %v3329
    %v3500 = vadd.f32 %v3082, %v3332
    %v3501 = vadd.f32 %v3083, %v3337
    %v3502 = vadd.f32 %v3084, %v3340
    %v3503 = vadd.f32 %v3085, %v3345
    %v3504 = vadd.f32 %v3086, %v3348
    %v3505 = vadd.f32 %v3087, %v3353
    %v3506 = vadd.f32 %v3088, %v3356
    %v3507 = vadd.f32 %v3089, %v3361
    %v3508 = vadd.f32 %v3090, %v3364
    %v3509 = vadd.f32 %v3091, %v3369
    %v3510 = vadd.f32 %v3092, %v3372
    %v3511 = vadd.f32 %v3093, %v3377
    %v3512 = vadd.f32 %v3094, %v3380
    %v3513 = vadd.f32 %v3095, %v3385
    %v3514 = vadd.f32 %v3096, %v3388
    %v3515 = vadd.f32 %v3097, %v3393
    %v3516 = vadd.f32 %v3098, %v3396
    %v3517 = vadd.f32 %v3099, %v3401
    %v3518 = vadd.f32 %v3100, %v3404
    %v3519 = vadd.f32 %v3101, %v3409
    %v3520 = vadd.f32 %v3102, %v3412
    %v3521 = vadd.f32 %v3103, %v3417
    %v3522 = vadd.f32 %v3104, %v3420
    %v3523 = vadd.f32 %v3105, %v3425
    %v3524 = vadd.f32 %v3106, %v3428
    %v3525 = vadd.f32 %v3107, %v3433
    %v3526 = vadd.f32 %v3108, %v3436
    %v3527 = vadd.f32 %v3109, %v3441
    %v3528 = vadd.f32 %v3110, %v3444
    %v3529 = vadd.f32 %v3111, %v3449
    %v3530 = vadd.f32 %v3112, %v3452
    %v3531 = vadd.f32 %v3113, %v3457
    %v3532 = vadd.f32 %v3114, %v3460
    %v3533 = vadd.f32 %v3115, %v3465
    %v3534 = vadd.f32 %v3116, %v3468
    %v3536 = vshrl.u32 %v1351, 16
    %v3538 = vshll.u32 %v1351, 16
    %v3540 = vrot.slane %v3538, 1
    %v3541 = vor.u32 %v3536, %v3540
    %v3543 = vshll.u32 %v1384, 16
    %v3545 = vrot.slane %v3543, 1
    %v3546 = vsel %vm1417, %v3541, %v3545
    %v3548 = vshrl.u32 %v1367, 16
    %v3550 = vshll.u32 %v1367, 16
    %v3552 = vrot.slane %v3550, 1
    %v3553 = vor.u32 %v3548, %v3552
    %v3555 = vshll.u32 %v1400, 16
    %v3557 = vrot.slane %v3555, 1
    %v3558 = vsel %vm1417, %v3553, %v3557
    %s3561 = scalar_lea.vmem [#allocation7], 256
    %v3562 = vld [vmem:[%s3561] sm:$0xf]
    %v3563 = vld [vmem:[%s3561 + $0x4] sm:$0xf]
    %v3564 = vld [vmem:[%s3561 + $0x8] sm:$0xf]
    %v3565 = vld [vmem:[%s3561 + $0xc] sm:$0xf]
    %v3566 = vld [vmem:[%s3561 + $0x10] sm:$0xf]
    %v3567 = vld [vmem:[%s3561 + $0x14] sm:$0xf]
    %v3568 = vld [vmem:[%s3561 + $0x18] sm:$0xf]
    %v3569 = vld [vmem:[%s3561 + $0x1c] sm:$0xf]
    %v3570 = vld [vmem:[%s3561 + $0x20] sm:$0xf]
    %v3571 = vld [vmem:[%s3561 + $0x24] sm:$0xf]
    %v3572 = vld [vmem:[%s3561 + $0x28] sm:$0xf]
    %v3573 = vld [vmem:[%s3561 + $0x2c] sm:$0xf]
    %v3574 = vld [vmem:[%s3561 + $0x30] sm:$0xf]
    %v3575 = vld [vmem:[%s3561 + $0x34] sm:$0xf]
    %v3576 = vld [vmem:[%s3561 + $0x38] sm:$0xf]
    %v3577 = vld [vmem:[%s3561 + $0x3c] sm:$0xf]
    %v3594 = vunpack.c.l.b16 %v3562
    %v3595 = vunpack.c.l.b16 %v3563
    %v3596 = vunpack.c.l.b16 %v3564
    %v3597 = vunpack.c.l.b16 %v3565
    %v3598 = vunpack.c.l.b16 %v3566
    %v3599 = vunpack.c.l.b16 %v3567
    %v3600 = vunpack.c.l.b16 %v3568
    %v3601 = vunpack.c.l.b16 %v3569
    %v3602 = vunpack.c.l.b16 %v3570
    %v3603 = vunpack.c.l.b16 %v3571
    %v3604 = vunpack.c.l.b16 %v3572
    %v3605 = vunpack.c.l.b16 %v3573
    %v3606 = vunpack.c.l.b16 %v3574
    %v3607 = vunpack.c.l.b16 %v3575
    %v3608 = vunpack.c.l.b16 %v3576
    %v3609 = vunpack.c.l.b16 %v3577
    %v3610 = vpack.c.b16 %v3595, %v3594
    %v3611 = vpack.c.b16 %v3597, %v3596
    %v3612 = vpack.c.b16 %v3599, %v3598
    %v3613 = vpack.c.b16 %v3601, %v3600
    %v3614 = vpack.c.b16 %v3603, %v3602
    %v3615 = vpack.c.b16 %v3605, %v3604
    %v3616 = vpack.c.b16 %v3607, %v3606
    %v3617 = vpack.c.b16 %v3609, %v3608
    %3626 = vmatprep.subr.bf16.mxu0 0
    %3627 = vmatpush1.bf16.msra.mxu0 %v3610
    %3628 = vmatprep.subr.bf16.mxu0 0
    %3629 = vmatpush1.bf16.msra.mxu0 %v3611
    %3630 = vmatprep.subr.bf16.mxu0 0
    %3631 = vmatpush1.bf16.msra.mxu0 %v3612
    %3632 = vmatprep.subr.bf16.mxu0 0
    %3633 = vmatpush1.bf16.msra.mxu0 %v3613
    %3634 = vmatprep.subr.bf16.mxu0 0
    %3635 = vmatpush1.bf16.msra.mxu0 %v3614
    %3636 = vmatprep.subr.bf16.mxu0 0
    %3637 = vmatpush1.bf16.msra.mxu0 %v3615
    %3638 = vmatprep.subr.bf16.mxu0 0
    %3639 = vmatpush1.bf16.msra.mxu0 %v3616
    %3640 = vmatprep.subr.bf16.mxu0 0
    %3641 = vmatpush1.bf16.msra.mxu0 %v3617
    %3642 = vmatprep.subr.bf16.mxu0 0
    %3643 = vmatpush1.bf16.msra.mxu0 0
    %3644 = vmatprep.subr.bf16.mxu0 0
    %3645 = vmatpush1.bf16.msra.mxu0 0
    %3646 = vmatprep.subr.bf16.mxu0 0
    %3647 = vmatpush1.bf16.msra.mxu0 0
    %3648 = vmatprep.subr.bf16.mxu0 0
    %3649 = vmatpush1.bf16.msra.mxu0 0
    %3650 = vmatprep.subr.bf16.mxu0 0
    %3651 = vmatpush1.bf16.msra.mxu0 0
    %3652 = vmatprep.subr.bf16.mxu0 0
    %3653 = vmatpush1.bf16.msra.mxu0 0
    %3654 = vmatprep.subr.bf16.mxu0 0
    %3655 = vmatpush1.bf16.msra.mxu0 0
    %3656 = vmatprep.subr.bf16.mxu0 0
    %3657 = vmatpush1.bf16.msra.mxu0 0
    %3658 = vmatprep.mubr.bf16.mxu0 0
    %3659 = vmatmul.mubr.bf16.gmra.mrb[0].mxu0 %v1441
    %v3660 = vpop.f32.mrb[0].mxu0
    %v3661 = vadd.f32 0.0, %v3660
    %v3662 = vpop.f32.mrb[0].mxu0
    %v3663 = vpop.f32.mrb[0].mxu0
    %v3664 = vadd.f32 0.0, %v3663
    %v3665 = vpop.f32.mrb[0].mxu0
    %3666 = vmatprep.mubr.bf16.mxu0 0
    %3667 = vmatmul.mubr.bf16.gmra.mrb[0].mxu0 %v1453
    %v3668 = vpop.f32.mrb[0].mxu0
    %v3669 = vadd.f32 0.0, %v3668
    %v3670 = vpop.f32.mrb[0].mxu0
    %v3671 = vpop.f32.mrb[0].mxu0
    %v3672 = vadd.f32 0.0, %v3671
    %v3673 = vpop.f32.mrb[0].mxu0
    %3674 = vmatprep.mubr.bf16.mxu0 0
    %3675 = vmatmul.mubr.bf16.gmra.mrb[0].mxu0 %v1465
    %v3676 = vpop.f32.mrb[0].mxu0
    %v3677 = vadd.f32 0.0, %v3676
    %v3678 = vpop.f32.mrb[0].mxu0
    %v3679 = vpop.f32.mrb[0].mxu0
    %v3680 = vadd.f32 0.0, %v3679
    %v3681 = vpop.f32.mrb[0].mxu0
    %3682 = vmatprep.mubr.bf16.mxu0 0
    %3683 = vmatmul.mubr.bf16.gmra.mrb[0].mxu0 %v1477
    %v3684 = vpop.f32.mrb[0].mxu0
    %v3685 = vadd.f32 0.0, %v3684
    %v3686 = vpop.f32.mrb[0].mxu0
    %v3687 = vpop.f32.mrb[0].mxu0
    %v3688 = vadd.f32 0.0, %v3687
    %v3689 = vpop.f32.mrb[0].mxu0
    %3690 = vmatprep.mubr.bf16.mxu0 0
    %3691 = vmatmul.mubr.bf16.gmra.mrb[0].mxu0 %v1489
    %v3692 = vpop.f32.mrb[0].mxu0
    %v3693 = vadd.f32 0.0, %v3692
    %v3694 = vpop.f32.mrb[0].mxu0
    %v3695 = vpop.f32.mrb[0].mxu0
    %v3696 = vadd.f32 0.0, %v3695
    %v3697 = vpop.f32.mrb[0].mxu0
    %3698 = vmatprep.mubr.bf16.mxu0 0
    %3699 = vmatmul.mubr.bf16.gmra.mrb[0].mxu0 %v1501
    %v3700 = vpop.f32.mrb[0].mxu0
    %v3701 = vadd.f32 0.0, %v3700
    %v3702 = vpop.f32.mrb[0].mxu0
    %v3703 = vpop.f32.mrb[0].mxu0
    %v3704 = vadd.f32 0.0, %v3703
    %v3705 = vpop.f32.mrb[0].mxu0
    %3706 = vmatprep.mubr.bf16.mxu0 0
    %3707 = vmatmul.mubr.bf16.gmra.mrb[0].mxu0 %v1513
    %v3708 = vpop.f32.mrb[0].mxu0
    %v3709 = vadd.f32 0.0, %v3708
    %v3710 = vpop.f32.mrb[0].mxu0
    %v3711 = vpop.f32.mrb[0].mxu0
    %v3712 = vadd.f32 0.0, %v3711
    %v3713 = vpop.f32.mrb[0].mxu0
    %3714 = vmatprep.mubr.bf16.mxu0 0
    %3715 = vmatmul.mubr.bf16.gmra.mrb[0].mxu0 %v1525
    %v3716 = vpop.f32.mrb[0].mxu0
    %v3717 = vadd.f32 0.0, %v3716
    %v3718 = vpop.f32.mrb[0].mxu0
    %v3719 = vpop.f32.mrb[0].mxu0
    %v3720 = vadd.f32 0.0, %v3719
    %v3721 = vpop.f32.mrb[0].mxu0
    %3722 = vmatprep.mubr.bf16.mxu0 0
    %3723 = vmatmul.mubr.bf16.gmra.mrb[0].mxu0 %v1537
    %v3724 = vpop.f32.mrb[0].mxu0
    %v3725 = vadd.f32 0.0, %v3724
    %v3726 = vpop.f32.mrb[0].mxu0
    %v3727 = vpop.f32.mrb[0].mxu0
    %v3728 = vadd.f32 0.0, %v3727
    %v3729 = vpop.f32.mrb[0].mxu0
    %3730 = vmatprep.mubr.bf16.mxu0 0
    %3731 = vmatmul.mubr.bf16.gmra.mrb[0].mxu0 %v1549
    %v3732 = vpop.f32.mrb[0].mxu0
    %v3733 = vadd.f32 0.0, %v3732
    %v3734 = vpop.f32.mrb[0].mxu0
    %v3735 = vpop.f32.mrb[0].mxu0
    %v3736 = vadd.f32 0.0, %v3735
    %v3737 = vpop.f32.mrb[0].mxu0
    %3738 = vmatprep.mubr.bf16.mxu0 0
    %3739 = vmatmul.mubr.bf16.gmra.mrb[0].mxu0 %v1561
    %v3740 = vpop.f32.mrb[0].mxu0
    %v3741 = vadd.f32 0.0, %v3740
    %v3742 = vpop.f32.mrb[0].mxu0
    %v3743 = vpop.f32.mrb[0].mxu0
    %v3744 = vadd.f32 0.0, %v3743
    %v3745 = vpop.f32.mrb[0].mxu0
    %3746 = vmatprep.mubr.bf16.mxu0 0
    %3747 = vmatmul.mubr.bf16.gmra.mrb[0].mxu0 %v1573
    %v3748 = vpop.f32.mrb[0].mxu0
    %v3749 = vadd.f32 0.0, %v3748
    %v3750 = vpop.f32.mrb[0].mxu0
    %v3751 = vpop.f32.mrb[0].mxu0
    %v3752 = vadd.f32 0.0, %v3751
    %v3753 = vpop.f32.mrb[0].mxu0
    %3754 = vmatprep.mubr.bf16.mxu0 0
    %3755 = vmatmul.mubr.bf16.gmra.mrb[0].mxu0 %v1585
    %v3756 = vpop.f32.mrb[0].mxu0
    %v3757 = vadd.f32 0.0, %v3756
    %v3758 = vpop.f32.mrb[0].mxu0
    %v3759 = vpop.f32.mrb[0].mxu0
    %v3760 = vadd.f32 0.0, %v3759
    %v3761 = vpop.f32.mrb[0].mxu0
    %3762 = vmatprep.mubr.bf16.mxu0 0
    %3763 = vmatmul.mubr.bf16.gmra.mrb[0].mxu0 %v1597
    %v3764 = vpop.f32.mrb[0].mxu0
    %v3765 = vadd.f32 0.0, %v3764
    %v3766 = vpop.f32.mrb[0].mxu0
    %v3767 = vpop.f32.mrb[0].mxu0
    %v3768 = vadd.f32 0.0, %v3767
    %v3769 = vpop.f32.mrb[0].mxu0
    %3770 = vmatprep.mubr.bf16.mxu0 0
    %3771 = vmatmul.mubr.bf16.gmra.mrb[0].mxu0 %v1609
    %v3772 = vpop.f32.mrb[0].mxu0
    %v3773 = vadd.f32 0.0, %v3772
    %v3774 = vpop.f32.mrb[0].mxu0
    %v3775 = vpop.f32.mrb[0].mxu0
    %v3776 = vadd.f32 0.0, %v3775
    %v3777 = vpop.f32.mrb[0].mxu0
    %3778 = vmatprep.mubr.bf16.mxu0 0
    %3779 = vmatmul.mubr.bf16.gmra.mrb[0].mxu0 %v3546
    %v3780 = vpop.f32.mrb[0].mxu0
    %v3781 = vadd.f32 0.0, %v3780
    %v3782 = vpop.f32.mrb[0].mxu0
    %v3783 = vpop.f32.mrb[0].mxu0
    %v3784 = vadd.f32 0.0, %v3783
    %v3785 = vpop.f32.mrb[0].mxu0
    %3786 = vmatprep.mubr.bf16.mxu0 0
    %3787 = vmatmul.mubr.bf16.gmra.mrb[0].mxu0 %v1621
    %v3788 = vpop.f32.mrb[0].mxu0
    %v3789 = vadd.f32 0.0, %v3788
    %v3790 = vpop.f32.mrb[0].mxu0
    %v3791 = vpop.f32.mrb[0].mxu0
    %v3792 = vadd.f32 0.0, %v3791
    %v3793 = vpop.f32.mrb[0].mxu0
    %3794 = vmatprep.mubr.bf16.mxu0 0
    %3795 = vmatmul.mubr.bf16.gmra.mrb[0].mxu0 %v1633
    %v3796 = vpop.f32.mrb[0].mxu0
    %v3797 = vadd.f32 0.0, %v3796
    %v3798 = vpop.f32.mrb[0].mxu0
    %v3799 = vpop.f32.mrb[0].mxu0
    %v3800 = vadd.f32 0.0, %v3799
    %v3801 = vpop.f32.mrb[0].mxu0
    %3802 = vmatprep.mubr.bf16.mxu0 0
    %3803 = vmatmul.mubr.bf16.gmra.mrb[0].mxu0 %v1645
    %v3804 = vpop.f32.mrb[0].mxu0
    %v3805 = vadd.f32 0.0, %v3804
    %v3806 = vpop.f32.mrb[0].mxu0
    %v3807 = vpop.f32.mrb[0].mxu0
    %v3808 = vadd.f32 0.0, %v3807
    %v3809 = vpop.f32.mrb[0].mxu0
    %3810 = vmatprep.mubr.bf16.mxu0 0
    %3811 = vmatmul.mubr.bf16.gmra.mrb[0].mxu0 %v1657
    %v3812 = vpop.f32.mrb[0].mxu0
    %v3813 = vadd.f32 0.0, %v3812
    %v3814 = vpop.f32.mrb[0].mxu0
    %v3815 = vpop.f32.mrb[0].mxu0
    %v3816 = vadd.f32 0.0, %v3815
    %v3817 = vpop.f32.mrb[0].mxu0
    %3818 = vmatprep.mubr.bf16.mxu0 0
    %3819 = vmatmul.mubr.bf16.gmra.mrb[0].mxu0 %v1669
    %v3820 = vpop.f32.mrb[0].mxu0
    %v3821 = vadd.f32 0.0, %v3820
    %v3822 = vpop.f32.mrb[0].mxu0
    %v3823 = vpop.f32.mrb[0].mxu0
    %v3824 = vadd.f32 0.0, %v3823
    %v3825 = vpop.f32.mrb[0].mxu0
    %3826 = vmatprep.mubr.bf16.mxu0 0
    %3827 = vmatmul.mubr.bf16.gmra.mrb[0].mxu0 %v1681
    %v3828 = vpop.f32.mrb[0].mxu0
    %v3829 = vadd.f32 0.0, %v3828
    %v3830 = vpop.f32.mrb[0].mxu0
    %v3831 = vpop.f32.mrb[0].mxu0
    %v3832 = vadd.f32 0.0, %v3831
    %v3833 = vpop.f32.mrb[0].mxu0
    %3834 = vmatprep.mubr.bf16.mxu0 0
    %3835 = vmatmul.mubr.bf16.gmra.mrb[0].mxu0 %v1693
    %v3836 = vpop.f32.mrb[0].mxu0
    %v3837 = vadd.f32 0.0, %v3836
    %v3838 = vpop.f32.mrb[0].mxu0
    %v3839 = vpop.f32.mrb[0].mxu0
    %v3840 = vadd.f32 0.0, %v3839
    %v3841 = vpop.f32.mrb[0].mxu0
    %3842 = vmatprep.mubr.bf16.mxu0 0
    %3843 = vmatmul.mubr.bf16.gmra.mrb[0].mxu0 %v1705
    %v3844 = vpop.f32.mrb[0].mxu0
    %v3845 = vadd.f32 0.0, %v3844
    %v3846 = vpop.f32.mrb[0].mxu0
    %v3847 = vpop.f32.mrb[0].mxu0
    %v3848 = vadd.f32 0.0, %v3847
    %v3849 = vpop.f32.mrb[0].mxu0
    %3850 = vmatprep.mubr.bf16.mxu0 0
    %3851 = vmatmul.mubr.bf16.gmra.mrb[0].mxu0 %v1717
    %v3852 = vpop.f32.mrb[0].mxu0
    %v3853 = vadd.f32 0.0, %v3852
    %v3854 = vpop.f32.mrb[0].mxu0
    %v3855 = vpop.f32.mrb[0].mxu0
    %v3856 = vadd.f32 0.0, %v3855
    %v3857 = vpop.f32.mrb[0].mxu0
    %3858 = vmatprep.mubr.bf16.mxu0 0
    %3859 = vmatmul.mubr.bf16.gmra.mrb[0].mxu0 %v1729
    %v3860 = vpop.f32.mrb[0].mxu0
    %v3861 = vadd.f32 0.0, %v3860
    %v3862 = vpop.f32.mrb[0].mxu0
    %v3863 = vpop.f32.mrb[0].mxu0
    %v3864 = vadd.f32 0.0, %v3863
    %v3865 = vpop.f32.mrb[0].mxu0
    %3866 = vmatprep.mubr.bf16.mxu0 0
    %3867 = vmatmul.mubr.bf16.gmra.mrb[0].mxu0 %v1741
    %v3868 = vpop.f32.mrb[0].mxu0
    %v3869 = vadd.f32 0.0, %v3868
    %v3870 = vpop.f32.mrb[0].mxu0
    %v3871 = vpop.f32.mrb[0].mxu0
    %v3872 = vadd.f32 0.0, %v3871
    %v3873 = vpop.f32.mrb[0].mxu0
    %3874 = vmatprep.mubr.bf16.mxu0 0
    %3875 = vmatmul.mubr.bf16.gmra.mrb[0].mxu0 %v1753
    %v3876 = vpop.f32.mrb[0].mxu0
    %v3877 = vadd.f32 0.0, %v3876
    %v3878 = vpop.f32.mrb[0].mxu0
    %v3879 = vpop.f32.mrb[0].mxu0
    %v3880 = vadd.f32 0.0, %v3879
    %v3881 = vpop.f32.mrb[0].mxu0
    %3882 = vmatprep.mubr.bf16.mxu0 0
    %3883 = vmatmul.mubr.bf16.gmra.mrb[0].mxu0 %v1765
    %v3884 = vpop.f32.mrb[0].mxu0
    %v3885 = vadd.f32 0.0, %v3884
    %v3886 = vpop.f32.mrb[0].mxu0
    %v3887 = vpop.f32.mrb[0].mxu0
    %v3888 = vadd.f32 0.0, %v3887
    %v3889 = vpop.f32.mrb[0].mxu0
    %3890 = vmatprep.mubr.bf16.mxu0 0
    %3891 = vmatmul.mubr.bf16.gmra.mrb[0].mxu0 %v1777
    %v3892 = vpop.f32.mrb[0].mxu0
    %v3893 = vadd.f32 0.0, %v3892
    %v3894 = vpop.f32.mrb[0].mxu0
    %v3895 = vpop.f32.mrb[0].mxu0
    %v3896 = vadd.f32 0.0, %v3895
    %v3897 = vpop.f32.mrb[0].mxu0
    %3898 = vmatprep.mubr.bf16.mxu0 0
    %3899 = vmatmul.mubr.bf16.gmra.mrb[0].mxu0 %v1789
    %v3900 = vpop.f32.mrb[0].mxu0
    %v3901 = vadd.f32 0.0, %v3900
    %v3902 = vpop.f32.mrb[0].mxu0
    %v3903 = vpop.f32.mrb[0].mxu0
    %v3904 = vadd.f32 0.0, %v3903
    %v3905 = vpop.f32.mrb[0].mxu0
    %3906 = vmatprep.mubr.bf16.mxu0 0
    %3907 = vmatmul.mubr.bf16.gmra.mrb[0].mxu0 %v3558
    %v3908 = vpop.f32.mrb[0].mxu0
    %v3909 = vadd.f32 0.0, %v3908
    %v3910 = vpop.f32.mrb[0].mxu0
    %v3911 = vpop.f32.mrb[0].mxu0
    %v3912 = vadd.f32 0.0, %v3911
    %v3913 = vpop.f32.mrb[0].mxu0
    %3914 = vdwg.mxu0
    %v3915 = vadd.f32 %v3471, %v3661
    %v3916 = vadd.f32 %v3472, %v3664
    %v3917 = vadd.f32 %v3473, %v3669
    %v3918 = vadd.f32 %v3474, %v3672
    %v3919 = vadd.f32 %v3475, %v3677
    %v3920 = vadd.f32 %v3476, %v3680
    %v3921 = vadd.f32 %v3477, %v3685
    %v3922 = vadd.f32 %v3478, %v3688
    %v3923 = vadd.f32 %v3479, %v3693
    %v3924 = vadd.f32 %v3480, %v3696
    %v3925 = vadd.f32 %v3481, %v3701
    %v3926 = vadd.f32 %v3482, %v3704
    %v3927 = vadd.f32 %v3483, %v3709
    %v3928 = vadd.f32 %v3484, %v3712
    %v3929 = vadd.f32 %v3485, %v3717
    %v3930 = vadd.f32 %v3486, %v3720
    %v3931 = vadd.f32 %v3487, %v3725
    %v3932 = vadd.f32 %v3488, %v3728
    %v3933 = vadd.f32 %v3489, %v3733
    %v3934 = vadd.f32 %v3490, %v3736
    %v3935 = vadd.f32 %v3491, %v3741
    %v3936 = vadd.f32 %v3492, %v3744
    %v3937 = vadd.f32 %v3493, %v3749
    %v3938 = vadd.f32 %v3494, %v3752
    %v3939 = vadd.f32 %v3495, %v3757
    %v3940 = vadd.f32 %v3496, %v3760
    %v3941 = vadd.f32 %v3497, %v3765
    %v3942 = vadd.f32 %v3498, %v3768
    %v3943 = vadd.f32 %v3499, %v3773
    %v3944 = vadd.f32 %v3500, %v3776
    %v3945 = vadd.f32 %v3501, %v3781
    %v3946 = vadd.f32 %v3502, %v3784
    %v3947 = vadd.f32 %v3503, %v3789
    %v3948 = vadd.f32 %v3504, %v3792
    %v3949 = vadd.f32 %v3505, %v3797
    %v3950 = vadd.f32 %v3506, %v3800
    %v3951 = vadd.f32 %v3507, %v3805
    %v3952 = vadd.f32 %v3508, %v3808
    %v3953 = vadd.f32 %v3509, %v3813
    %v3954 = vadd.f32 %v3510, %v3816
    %v3955 = vadd.f32 %v3511, %v3821
    %v3956 = vadd.f32 %v3512, %v3824
    %v3957 = vadd.f32 %v3513, %v3829
    %v3958 = vadd.f32 %v3514, %v3832
    %v3959 = vadd.f32 %v3515, %v3837
    %v3960 = vadd.f32 %v3516, %v3840
    %v3961 = vadd.f32 %v3517, %v3845
    %v3962 = vadd.f32 %v3518, %v3848
    %v3963 = vadd.f32 %v3519, %v3853
    %v3964 = vadd.f32 %v3520, %v3856
    %v3965 = vadd.f32 %v3521, %v3861
    %v3966 = vadd.f32 %v3522, %v3864
    %v3967 = vadd.f32 %v3523, %v3869
    %v3968 = vadd.f32 %v3524, %v3872
    %v3969 = vadd.f32 %v3525, %v3877
    %v3970 = vadd.f32 %v3526, %v3880
    %v3971 = vadd.f32 %v3527, %v3885
    %v3972 = vadd.f32 %v3528, %v3888
    %v3973 = vadd.f32 %v3529, %v3893
    %v3974 = vadd.f32 %v3530, %v3896
    %v3975 = vadd.f32 %v3531, %v3901
    %v3976 = vadd.f32 %v3532, %v3904
    %v3977 = vadd.f32 %v3533, %v3909
    %v3978 = vadd.f32 %v3534, %v3912
    %v3983 = vrot.slane %v1351, 1
    %v3984 = vrot.slane %v1384, 1
    %v3985 = vsel %vm2574, %v3983, %v3984
    %v3986 = vrot.slane %v1367, 1
    %v3987 = vrot.slane %v1400, 1
    %v3988 = vsel %vm2574, %v3986, %v3987
    %s3991 = scalar_lea.vmem [#allocation7], 320
    %v3992 = vld [vmem:[%s3991] sm:$0xf]
    %v3993 = vld [vmem:[%s3991 + $0x4] sm:$0xf]
    %v3994 = vld [vmem:[%s3991 + $0x8] sm:$0xf]
    %v3995 = vld [vmem:[%s3991 + $0xc] sm:$0xf]
    %v3996 = vld [vmem:[%s3991 + $0x10] sm:$0xf]
    %v3997 = vld [vmem:[%s3991 + $0x14] sm:$0xf]
    %v3998 = vld [vmem:[%s3991 + $0x18] sm:$0xf]
    %v3999 = vld [vmem:[%s3991 + $0x1c] sm:$0xf]
    %v4000 = vld [vmem:[%s3991 + $0x20] sm:$0xf]
    %v4001 = vld [vmem:[%s3991 + $0x24] sm:$0xf]
    %v4002 = vld [vmem:[%s3991 + $0x28] sm:$0xf]
    %v4003 = vld [vmem:[%s3991 + $0x2c] sm:$0xf]
    %v4004 = vld [vmem:[%s3991 + $0x30] sm:$0xf]
    %v4005 = vld [vmem:[%s3991 + $0x34] sm:$0xf]
    %v4006 = vld [vmem:[%s3991 + $0x38] sm:$0xf]
    %v4007 = vld [vmem:[%s3991 + $0x3c] sm:$0xf]
    %v4024 = vunpack.c.l.b16 %v3992
    %v4025 = vunpack.c.l.b16 %v3993
    %v4026 = vunpack.c.l.b16 %v3994
    %v4027 = vunpack.c.l.b16 %v3995
    %v4028 = vunpack.c.l.b16 %v3996
    %v4029 = vunpack.c.l.b16 %v3997
    %v4030 = vunpack.c.l.b16 %v3998
    %v4031 = vunpack.c.l.b16 %v3999
    %v4032 = vunpack.c.l.b16 %v4000
    %v4033 = vunpack.c.l.b16 %v4001
    %v4034 = vunpack.c.l.b16 %v4002
    %v4035 = vunpack.c.l.b16 %v4003
    %v4036 = vunpack.c.l.b16 %v4004
    %v4037 = vunpack.c.l.b16 %v4005
    %v4038 = vunpack.c.l.b16 %v4006
    %v4039 = vunpack.c.l.b16 %v4007
    %v4040 = vpack.c.b16 %v4025, %v4024
    %v4041 = vpack.c.b16 %v4027, %v4026
    %v4042 = vpack.c.b16 %v4029, %v4028
    %v4043 = vpack.c.b16 %v4031, %v4030
    %v4044 = vpack.c.b16 %v4033, %v4032
    %v4045 = vpack.c.b16 %v4035, %v4034
    %v4046 = vpack.c.b16 %v4037, %v4036
    %v4047 = vpack.c.b16 %v4039, %v4038
    %4056 = vmatprep.subr.bf16.mxu0 0
    %4057 = vmatpush1.bf16.msra.mxu0 %v4040
    %4058 = vmatprep.subr.bf16.mxu0 0
    %4059 = vmatpush1.bf16.msra.mxu0 %v4041
    %4060 = vmatprep.subr.bf16.mxu0 0
    %4061 = vmatpush1.bf16.msra.mxu0 %v4042
    %4062 = vmatprep.subr.bf16.mxu0 0
    %4063 = vmatpush1.bf16.msra.mxu0 %v4043
    %4064 = vmatprep.subr.bf16.mxu0 0
    %4065 = vmatpush1.bf16.msra.mxu0 %v4044
    %4066 = vmatprep.subr.bf16.mxu0 0
    %4067 = vmatpush1.bf16.msra.mxu0 %v4045
    %4068 = vmatprep.subr.bf16.mxu0 0
    %4069 = vmatpush1.bf16.msra.mxu0 %v4046
    %4070 = vmatprep.subr.bf16.mxu0 0
    %4071 = vmatpush1.bf16.msra.mxu0 %v4047
    %4072 = vmatprep.subr.bf16.mxu0 0
    %4073 = vmatpush1.bf16.msra.mxu0 0
    %4074 = vmatprep.subr.bf16.mxu0 0
    %4075 = vmatpush1.bf16.msra.mxu0 0
    %4076 = vmatprep.subr.bf16.mxu0 0
    %4077 = vmatpush1.bf16.msra.mxu0 0
    %4078 = vmatprep.subr.bf16.mxu0 0
    %4079 = vmatpush1.bf16.msra.mxu0 0
    %4080 = vmatprep.subr.bf16.mxu0 0
    %4081 = vmatpush1.bf16.msra.mxu0 0
    %4082 = vmatprep.subr.bf16.mxu0 0
    %4083 = vmatpush1.bf16.msra.mxu0 0
    %4084 = vmatprep.subr.bf16.mxu0 0
    %4085 = vmatpush1.bf16.msra.mxu0 0
    %4086 = vmatprep.subr.bf16.mxu0 0
    %4087 = vmatpush1.bf16.msra.mxu0 0
    %4088 = vmatprep.mubr.bf16.mxu0 0
    %4089 = vmatmul.mubr.bf16.gmra.mrb[0].mxu0 %v2580
    %v4090 = vpop.f32.mrb[0].mxu0
    %v4091 = vadd.f32 0.0, %v4090
    %v4092 = vpop.f32.mrb[0].mxu0
    %v4093 = vpop.f32.mrb[0].mxu0
    %v4094 = vadd.f32 0.0, %v4093
    %v4095 = vpop.f32.mrb[0].mxu0
    %4096 = vmatprep.mubr.bf16.mxu0 0
    %4097 = vmatmul.mubr.bf16.gmra.mrb[0].mxu0 %v2583
    %v4098 = vpop.f32.mrb[0].mxu0
    %v4099 = vadd.f32 0.0, %v4098
    %v4100 = vpop.f32.mrb[0].mxu0
    %v4101 = vpop.f32.mrb[0].mxu0
    %v4102 = vadd.f32 0.0, %v4101
    %v4103 = vpop.f32.mrb[0].mxu0
    %4104 = vmatprep.mubr.bf16.mxu0 0
    %4105 = vmatmul.mubr.bf16.gmra.mrb[0].mxu0 %v2586
    %v4106 = vpop.f32.mrb[0].mxu0
    %v4107 = vadd.f32 0.0, %v4106
    %v4108 = vpop.f32.mrb[0].mxu0
    %v4109 = vpop.f32.mrb[0].mxu0
    %v4110 = vadd.f32 0.0, %v4109
    %v4111 = vpop.f32.mrb[0].mxu0
    %4112 = vmatprep.mubr.bf16.mxu0 0
    %4113 = vmatmul.mubr.bf16.gmra.mrb[0].mxu0 %v2589
    %v4114 = vpop.f32.mrb[0].mxu0
    %v4115 = vadd.f32 0.0, %v4114
    %v4116 = vpop.f32.mrb[0].mxu0
    %v4117 = vpop.f32.mrb[0].mxu0
    %v4118 = vadd.f32 0.0, %v4117
    %v4119 = vpop.f32.mrb[0].mxu0
    %4120 = vmatprep.mubr.bf16.mxu0 0
    %4121 = vmatmul.mubr.bf16.gmra.mrb[0].mxu0 %v2592
    %v4122 = vpop.f32.mrb[0].mxu0
    %v4123 = vadd.f32 0.0, %v4122
    %v4124 = vpop.f32.mrb[0].mxu0
    %v4125 = vpop.f32.mrb[0].mxu0
    %v4126 = vadd.f32 0.0, %v4125
    %v4127 = vpop.f32.mrb[0].mxu0
    %4128 = vmatprep.mubr.bf16.mxu0 0
    %4129 = vmatmul.mubr.bf16.gmra.mrb[0].mxu0 %v2595
    %v4130 = vpop.f32.mrb[0].mxu0
    %v4131 = vadd.f32 0.0, %v4130
    %v4132 = vpop.f32.mrb[0].mxu0
    %v4133 = vpop.f32.mrb[0].mxu0
    %v4134 = vadd.f32 0.0, %v4133
    %v4135 = vpop.f32.mrb[0].mxu0
    %4136 = vmatprep.mubr.bf16.mxu0 0
    %4137 = vmatmul.mubr.bf16.gmra.mrb[0].mxu0 %v2598
    %v4138 = vpop.f32.mrb[0].mxu0
    %v4139 = vadd.f32 0.0, %v4138
    %v4140 = vpop.f32.mrb[0].mxu0
    %v4141 = vpop.f32.mrb[0].mxu0
    %v4142 = vadd.f32 0.0, %v4141
    %v4143 = vpop.f32.mrb[0].mxu0
    %4144 = vmatprep.mubr.bf16.mxu0 0
    %4145 = vmatmul.mubr.bf16.gmra.mrb[0].mxu0 %v2601
    %v4146 = vpop.f32.mrb[0].mxu0
    %v4147 = vadd.f32 0.0, %v4146
    %v4148 = vpop.f32.mrb[0].mxu0
    %v4149 = vpop.f32.mrb[0].mxu0
    %v4150 = vadd.f32 0.0, %v4149
    %v4151 = vpop.f32.mrb[0].mxu0
    %4152 = vmatprep.mubr.bf16.mxu0 0
    %4153 = vmatmul.mubr.bf16.gmra.mrb[0].mxu0 %v2604
    %v4154 = vpop.f32.mrb[0].mxu0
    %v4155 = vadd.f32 0.0, %v4154
    %v4156 = vpop.f32.mrb[0].mxu0
    %v4157 = vpop.f32.mrb[0].mxu0
    %v4158 = vadd.f32 0.0, %v4157
    %v4159 = vpop.f32.mrb[0].mxu0
    %4160 = vmatprep.mubr.bf16.mxu0 0
    %4161 = vmatmul.mubr.bf16.gmra.mrb[0].mxu0 %v2607
    %v4162 = vpop.f32.mrb[0].mxu0
    %v4163 = vadd.f32 0.0, %v4162
    %v4164 = vpop.f32.mrb[0].mxu0
    %v4165 = vpop.f32.mrb[0].mxu0
    %v4166 = vadd.f32 0.0, %v4165
    %v4167 = vpop.f32.mrb[0].mxu0
    %4168 = vmatprep.mubr.bf16.mxu0 0
    %4169 = vmatmul.mubr.bf16.gmra.mrb[0].mxu0 %v2610
    %v4170 = vpop.f32.mrb[0].mxu0
    %v4171 = vadd.f32 0.0, %v4170
    %v4172 = vpop.f32.mrb[0].mxu0
    %v4173 = vpop.f32.mrb[0].mxu0
    %v4174 = vadd.f32 0.0, %v4173
    %v4175 = vpop.f32.mrb[0].mxu0
    %4176 = vmatprep.mubr.bf16.mxu0 0
    %4177 = vmatmul.mubr.bf16.gmra.mrb[0].mxu0 %v2613
    %v4178 = vpop.f32.mrb[0].mxu0
    %v4179 = vadd.f32 0.0, %v4178
    %v4180 = vpop.f32.mrb[0].mxu0
    %v4181 = vpop.f32.mrb[0].mxu0
    %v4182 = vadd.f32 0.0, %v4181
    %v4183 = vpop.f32.mrb[0].mxu0
    %4184 = vmatprep.mubr.bf16.mxu0 0
    %4185 = vmatmul.mubr.bf16.gmra.mrb[0].mxu0 %v2616
    %v4186 = vpop.f32.mrb[0].mxu0
    %v4187 = vadd.f32 0.0, %v4186
    %v4188 = vpop.f32.mrb[0].mxu0
    %v4189 = vpop.f32.mrb[0].mxu0
    %v4190 = vadd.f32 0.0, %v4189
    %v4191 = vpop.f32.mrb[0].mxu0
    %4192 = vmatprep.mubr.bf16.mxu0 0
    %4193 = vmatmul.mubr.bf16.gmra.mrb[0].mxu0 %v2619
    %v4194 = vpop.f32.mrb[0].mxu0
    %v4195 = vadd.f32 0.0, %v4194
    %v4196 = vpop.f32.mrb[0].mxu0
    %v4197 = vpop.f32.mrb[0].mxu0
    %v4198 = vadd.f32 0.0, %v4197
    %v4199 = vpop.f32.mrb[0].mxu0
    %4200 = vmatprep.mubr.bf16.mxu0 0
    %4201 = vmatmul.mubr.bf16.gmra.mrb[0].mxu0 %v2622
    %v4202 = vpop.f32.mrb[0].mxu0
    %v4203 = vadd.f32 0.0, %v4202
    %v4204 = vpop.f32.mrb[0].mxu0
    %v4205 = vpop.f32.mrb[0].mxu0
    %v4206 = vadd.f32 0.0, %v4205
    %v4207 = vpop.f32.mrb[0].mxu0
    %4208 = vmatprep.mubr.bf16.mxu0 0
    %4209 = vmatmul.mubr.bf16.gmra.mrb[0].mxu0 %v3985
    %v4210 = vpop.f32.mrb[0].mxu0
    %v4211 = vadd.f32 0.0, %v4210
    %v4212 = vpop.f32.mrb[0].mxu0
    %v4213 = vpop.f32.mrb[0].mxu0
    %v4214 = vadd.f32 0.0, %v4213
    %v4215 = vpop.f32.mrb[0].mxu0
    %4216 = vmatprep.mubr.bf16.mxu0 0
    %4217 = vmatmul.mubr.bf16.gmra.mrb[0].mxu0 %v2625
    %v4218 = vpop.f32.mrb[0].mxu0
    %v4219 = vadd.f32 0.0, %v4218
    %v4220 = vpop.f32.mrb[0].mxu0
    %v4221 = vpop.f32.mrb[0].mxu0
    %v4222 = vadd.f32 0.0, %v4221
    %v4223 = vpop.f32.mrb[0].mxu0
    %4224 = vmatprep.mubr.bf16.mxu0 0
    %4225 = vmatmul.mubr.bf16.gmra.mrb[0].mxu0 %v2628
    %v4226 = vpop.f32.mrb[0].mxu0
    %v4227 = vadd.f32 0.0, %v4226
    %v4228 = vpop.f32.mrb[0].mxu0
    %v4229 = vpop.f32.mrb[0].mxu0
    %v4230 = vadd.f32 0.0, %v4229
    %v4231 = vpop.f32.mrb[0].mxu0
    %4232 = vmatprep.mubr.bf16.mxu0 0
    %4233 = vmatmul.mubr.bf16.gmra.mrb[0].mxu0 %v2631
    %v4234 = vpop.f32.mrb[0].mxu0
    %v4235 = vadd.f32 0.0, %v4234
    %v4236 = vpop.f32.mrb[0].mxu0
    %v4237 = vpop.f32.mrb[0].mxu0
    %v4238 = vadd.f32 0.0, %v4237
    %v4239 = vpop.f32.mrb[0].mxu0
    %4240 = vmatprep.mubr.bf16.mxu0 0
    %4241 = vmatmul.mubr.bf16.gmra.mrb[0].mxu0 %v2634
    %v4242 = vpop.f32.mrb[0].mxu0
    %v4243 = vadd.f32 0.0, %v4242
    %v4244 = vpop.f32.mrb[0].mxu0
    %v4245 = vpop.f32.mrb[0].mxu0
    %v4246 = vadd.f32 0.0, %v4245
    %v4247 = vpop.f32.mrb[0].mxu0
    %4248 = vmatprep.mubr.bf16.mxu0 0
    %4249 = vmatmul.mubr.bf16.gmra.mrb[0].mxu0 %v2637
    %v4250 = vpop.f32.mrb[0].mxu0
    %v4251 = vadd.f32 0.0, %v4250
    %v4252 = vpop.f32.mrb[0].mxu0
    %v4253 = vpop.f32.mrb[0].mxu0
    %v4254 = vadd.f32 0.0, %v4253
    %v4255 = vpop.f32.mrb[0].mxu0
    %4256 = vmatprep.mubr.bf16.mxu0 0
    %4257 = vmatmul.mubr.bf16.gmra.mrb[0].mxu0 %v2640
    %v4258 = vpop.f32.mrb[0].mxu0
    %v4259 = vadd.f32 0.0, %v4258
    %v4260 = vpop.f32.mrb[0].mxu0
    %v4261 = vpop.f32.mrb[0].mxu0
    %v4262 = vadd.f32 0.0, %v4261
    %v4263 = vpop.f32.mrb[0].mxu0
    %4264 = vmatprep.mubr.bf16.mxu0 0
    %4265 = vmatmul.mubr.bf16.gmra.mrb[0].mxu0 %v2643
    %v4266 = vpop.f32.mrb[0].mxu0
    %v4267 = vadd.f32 0.0, %v4266
    %v4268 = vpop.f32.mrb[0].mxu0
    %v4269 = vpop.f32.mrb[0].mxu0
    %v4270 = vadd.f32 0.0, %v4269
    %v4271 = vpop.f32.mrb[0].mxu0
    %4272 = vmatprep.mubr.bf16.mxu0 0
    %4273 = vmatmul.mubr.bf16.gmra.mrb[0].mxu0 %v2646
    %v4274 = vpop.f32.mrb[0].mxu0
    %v4275 = vadd.f32 0.0, %v4274
    %v4276 = vpop.f32.mrb[0].mxu0
    %v4277 = vpop.f32.mrb[0].mxu0
    %v4278 = vadd.f32 0.0, %v4277
    %v4279 = vpop.f32.mrb[0].mxu0
    %4280 = vmatprep.mubr.bf16.mxu0 0
    %4281 = vmatmul.mubr.bf16.gmra.mrb[0].mxu0 %v2649
    %v4282 = vpop.f32.mrb[0].mxu0
    %v4283 = vadd.f32 0.0, %v4282
    %v4284 = vpop.f32.mrb[0].mxu0
    %v4285 = vpop.f32.mrb[0].mxu0
    %v4286 = vadd.f32 0.0, %v4285
    %v4287 = vpop.f32.mrb[0].mxu0
    %4288 = vmatprep.mubr.bf16.mxu0 0
    %4289 = vmatmul.mubr.bf16.gmra.mrb[0].mxu0 %v2652
    %v4290 = vpop.f32.mrb[0].mxu0
    %v4291 = vadd.f32 0.0, %v4290
    %v4292 = vpop.f32.mrb[0].mxu0
    %v4293 = vpop.f32.mrb[0].mxu0
    %v4294 = vadd.f32 0.0, %v4293
    %v4295 = vpop.f32.mrb[0].mxu0
    %4296 = vmatprep.mubr.bf16.mxu0 0
    %4297 = vmatmul.mubr.bf16.gmra.mrb[0].mxu0 %v2655
    %v4298 = vpop.f32.mrb[0].mxu0
    %v4299 = vadd.f32 0.0, %v4298
    %v4300 = vpop.f32.mrb[0].mxu0
    %v4301 = vpop.f32.mrb[0].mxu0
    %v4302 = vadd.f32 0.0, %v4301
    %v4303 = vpop.f32.mrb[0].mxu0
    %4304 = vmatprep.mubr.bf16.mxu0 0
    %4305 = vmatmul.mubr.bf16.gmra.mrb[0].mxu0 %v2658
    %v4306 = vpop.f32.mrb[0].mxu0
    %v4307 = vadd.f32 0.0, %v4306
    %v4308 = vpop.f32.mrb[0].mxu0
    %v4309 = vpop.f32.mrb[0].mxu0
    %v4310 = vadd.f32 0.0, %v4309
    %v4311 = vpop.f32.mrb[0].mxu0
    %4312 = vmatprep.mubr.bf16.mxu0 0
    %4313 = vmatmul.mubr.bf16.gmra.mrb[0].mxu0 %v2661
    %v4314 = vpop.f32.mrb[0].mxu0
    %v4315 = vadd.f32 0.0, %v4314
    %v4316 = vpop.f32.mrb[0].mxu0
    %v4317 = vpop.f32.mrb[0].mxu0
    %v4318 = vadd.f32 0.0, %v4317
    %v4319 = vpop.f32.mrb[0].mxu0
    %4320 = vmatprep.mubr.bf16.mxu0 0
    %4321 = vmatmul.mubr.bf16.gmra.mrb[0].mxu0 %v2664
    %v4322 = vpop.f32.mrb[0].mxu0
    %v4323 = vadd.f32 0.0, %v4322
    %v4324 = vpop.f32.mrb[0].mxu0
    %v4325 = vpop.f32.mrb[0].mxu0
    %v4326 = vadd.f32 0.0, %v4325
    %v4327 = vpop.f32.mrb[0].mxu0
    %4328 = vmatprep.mubr.bf16.mxu0 0
    %4329 = vmatmul.mubr.bf16.gmra.mrb[0].mxu0 %v2667
    %v4330 = vpop.f32.mrb[0].mxu0
    %v4331 = vadd.f32 0.0, %v4330
    %v4332 = vpop.f32.mrb[0].mxu0
    %v4333 = vpop.f32.mrb[0].mxu0
    %v4334 = vadd.f32 0.0, %v4333
    %v4335 = vpop.f32.mrb[0].mxu0
    %4336 = vmatprep.mubr.bf16.mxu0 0
    %4337 = vmatmul.mubr.bf16.gmra.mrb[0].mxu0 %v3988
    %v4338 = vpop.f32.mrb[0].mxu0
    %v4339 = vadd.f32 0.0, %v4338
    %v4340 = vpop.f32.mrb[0].mxu0
    %v4341 = vpop.f32.mrb[0].mxu0
    %v4342 = vadd.f32 0.0, %v4341
    %v4343 = vpop.f32.mrb[0].mxu0
    %4344 = vdwg.mxu0
    %v4345 = vadd.f32 %v3915, %v4091
    %v4346 = vadd.f32 %v3916, %v4094
    %v4347 = vadd.f32 %v3917, %v4099
    %v4348 = vadd.f32 %v3918, %v4102
    %v4349 = vadd.f32 %v3919, %v4107
    %v4350 = vadd.f32 %v3920, %v4110
    %v4351 = vadd.f32 %v3921, %v4115
    %v4352 = vadd.f32 %v3922, %v4118
    %v4353 = vadd.f32 %v3923, %v4123
    %v4354 = vadd.f32 %v3924, %v4126
    %v4355 = vadd.f32 %v3925, %v4131
    %v4356 = vadd.f32 %v3926, %v4134
    %v4357 = vadd.f32 %v3927, %v4139
    %v4358 = vadd.f32 %v3928, %v4142
    %v4359 = vadd.f32 %v3929, %v4147
    %v4360 = vadd.f32 %v3930, %v4150
    %v4361 = vadd.f32 %v3931, %v4155
    %v4362 = vadd.f32 %v3932, %v4158
    %v4363 = vadd.f32 %v3933, %v4163
    %v4364 = vadd.f32 %v3934, %v4166
    %v4365 = vadd.f32 %v3935, %v4171
    %v4366 = vadd.f32 %v3936, %v4174
    %v4367 = vadd.f32 %v3937, %v4179
    %v4368 = vadd.f32 %v3938, %v4182
    %v4369 = vadd.f32 %v3939, %v4187
    %v4370 = vadd.f32 %v3940, %v4190
    %v4371 = vadd.f32 %v3941, %v4195
    %v4372 = vadd.f32 %v3942, %v4198
    %v4373 = vadd.f32 %v3943, %v4203
    %v4374 = vadd.f32 %v3944, %v4206
    %v4375 = vadd.f32 %v3945, %v4211
    %v4376 = vadd.f32 %v3946, %v4214
    %v4377 = vadd.f32 %v3947, %v4219
    %v4378 = vadd.f32 %v3948, %v4222
    %v4379 = vadd.f32 %v3949, %v4227
    %v4380 = vadd.f32 %v3950, %v4230
    %v4381 = vadd.f32 %v3951, %v4235
    %v4382 = vadd.f32 %v3952, %v4238
    %v4383 = vadd.f32 %v3953, %v4243
    %v4384 = vadd.f32 %v3954, %v4246
    %v4385 = vadd.f32 %v3955, %v4251
    %v4386 = vadd.f32 %v3956, %v4254
    %v4387 = vadd.f32 %v3957, %v4259
    %v4388 = vadd.f32 %v3958, %v4262
    %v4389 = vadd.f32 %v3959, %v4267
    %v4390 = vadd.f32 %v3960, %v4270
    %v4391 = vadd.f32 %v3961, %v4275
    %v4392 = vadd.f32 %v3962, %v4278
    %v4393 = vadd.f32 %v3963, %v4283
    %v4394 = vadd.f32 %v3964, %v4286
    %v4395 = vadd.f32 %v3965, %v4291
    %v4396 = vadd.f32 %v3966, %v4294
    %v4397 = vadd.f32 %v3967, %v4299
    %v4398 = vadd.f32 %v3968, %v4302
    %v4399 = vadd.f32 %v3969, %v4307
    %v4400 = vadd.f32 %v3970, %v4310
    %v4401 = vadd.f32 %v3971, %v4315
    %v4402 = vadd.f32 %v3972, %v4318
    %v4403 = vadd.f32 %v3973, %v4323
    %v4404 = vadd.f32 %v3974, %v4326
    %v4405 = vadd.f32 %v3975, %v4331
    %v4406 = vadd.f32 %v3976, %v4334
    %v4407 = vadd.f32 %v3977, %v4339
    %v4408 = vadd.f32 %v3978, %v4342
    %s4409 = scalar_lea.vmem [#allocation7], 384
    %v4410 = vld [vmem:[%s4409] sm:$0xf]
    %v4411 = vld [vmem:[%s4409 + $0x4] sm:$0xf]
    %v4412 = vld [vmem:[%s4409 + $0x8] sm:$0xf]
    %v4413 = vld [vmem:[%s4409 + $0xc] sm:$0xf]
    %v4414 = vld [vmem:[%s4409 + $0x10] sm:$0xf]
    %v4415 = vld [vmem:[%s4409 + $0x14] sm:$0xf]
    %v4416 = vld [vmem:[%s4409 + $0x18] sm:$0xf]
    %v4417 = vld [vmem:[%s4409 + $0x1c] sm:$0xf]
    %v4418 = vld [vmem:[%s4409 + $0x20] sm:$0xf]
    %v4419 = vld [vmem:[%s4409 + $0x24] sm:$0xf]
    %v4420 = vld [vmem:[%s4409 + $0x28] sm:$0xf]
    %v4421 = vld [vmem:[%s4409 + $0x2c] sm:$0xf]
    %v4422 = vld [vmem:[%s4409 + $0x30] sm:$0xf]
    %v4423 = vld [vmem:[%s4409 + $0x34] sm:$0xf]
    %v4424 = vld [vmem:[%s4409 + $0x38] sm:$0xf]
    %v4425 = vld [vmem:[%s4409 + $0x3c] sm:$0xf]
    %v4442 = vunpack.c.l.b16 %v4410
    %v4443 = vunpack.c.l.b16 %v4411
    %v4444 = vunpack.c.l.b16 %v4412
    %v4445 = vunpack.c.l.b16 %v4413
    %v4446 = vunpack.c.l.b16 %v4414
    %v4447 = vunpack.c.l.b16 %v4415
    %v4448 = vunpack.c.l.b16 %v4416
    %v4449 = vunpack.c.l.b16 %v4417
    %v4450 = vunpack.c.l.b16 %v4418
    %v4451 = vunpack.c.l.b16 %v4419
    %v4452 = vunpack.c.l.b16 %v4420
    %v4453 = vunpack.c.l.b16 %v4421
    %v4454 = vunpack.c.l.b16 %v4422
    %v4455 = vunpack.c.l.b16 %v4423
    %v4456 = vunpack.c.l.b16 %v4424
    %v4457 = vunpack.c.l.b16 %v4425
    %v4458 = vpack.c.b16 %v4443, %v4442
    %v4459 = vpack.c.b16 %v4445, %v4444
    %v4460 = vpack.c.b16 %v4447, %v4446
    %v4461 = vpack.c.b16 %v4449, %v4448
    %v4462 = vpack.c.b16 %v4451, %v4450
    %v4463 = vpack.c.b16 %v4453, %v4452
    %v4464 = vpack.c.b16 %v4455, %v4454
    %v4465 = vpack.c.b16 %v4457, %v4456
    %4474 = vmatprep.subr.bf16.mxu0 0
    %4475 = vmatpush1.bf16.msra.mxu0 %v4458
    %4476 = vmatprep.subr.bf16.mxu0 0
    %4477 = vmatpush1.bf16.msra.mxu0 %v4459
    %4478 = vmatprep.subr.bf16.mxu0 0
    %4479 = vmatpush1.bf16.msra.mxu0 %v4460
    %4480 = vmatprep.subr.bf16.mxu0 0
    %4481 = vmatpush1.bf16.msra.mxu0 %v4461
    %4482 = vmatprep.subr.bf16.mxu0 0
    %4483 = vmatpush1.bf16.msra.mxu0 %v4462
    %4484 = vmatprep.subr.bf16.mxu0 0
    %4485 = vmatpush1.bf16.msra.mxu0 %v4463
    %4486 = vmatprep.subr.bf16.mxu0 0
    %4487 = vmatpush1.bf16.msra.mxu0 %v4464
    %4488 = vmatprep.subr.bf16.mxu0 0
    %4489 = vmatpush1.bf16.msra.mxu0 %v4465
    %4490 = vmatprep.subr.bf16.mxu0 0
    %4491 = vmatpush1.bf16.msra.mxu0 0
    %4492 = vmatprep.subr.bf16.mxu0 0
    %4493 = vmatpush1.bf16.msra.mxu0 0
    %4494 = vmatprep.subr.bf16.mxu0 0
    %4495 = vmatpush1.bf16.msra.mxu0 0
    %4496 = vmatprep.subr.bf16.mxu0 0
    %4497 = vmatpush1.bf16.msra.mxu0 0
    %4498 = vmatprep.subr.bf16.mxu0 0
    %4499 = vmatpush1.bf16.msra.mxu0 0
    %4500 = vmatprep.subr.bf16.mxu0 0
    %4501 = vmatpush1.bf16.msra.mxu0 0
    %4502 = vmatprep.subr.bf16.mxu0 0
    %4503 = vmatpush1.bf16.msra.mxu0 0
    %4504 = vmatprep.subr.bf16.mxu0 0
    %4505 = vmatpush1.bf16.msra.mxu0 0
    %4506 = vmatprep.mubr.bf16.mxu0 0
    %4507 = vmatmul.mubr.bf16.gmra.mrb[0].mxu0 %v1337
    %v4508 = vpop.f32.mrb[0].mxu0
    %v4509 = vadd.f32 0.0, %v4508
    %v4510 = vpop.f32.mrb[0].mxu0
    %v4511 = vpop.f32.mrb[0].mxu0
    %v4512 = vadd.f32 0.0, %v4511
    %v4513 = vpop.f32.mrb[0].mxu0
    %4514 = vmatprep.mubr.bf16.mxu0 0
    %4515 = vmatmul.mubr.bf16.gmra.mrb[0].mxu0 %v1338
    %v4516 = vpop.f32.mrb[0].mxu0
    %v4517 = vadd.f32 0.0, %v4516
    %v4518 = vpop.f32.mrb[0].mxu0
    %v4519 = vpop.f32.mrb[0].mxu0
    %v4520 = vadd.f32 0.0, %v4519
    %v4521 = vpop.f32.mrb[0].mxu0
    %4522 = vmatprep.mubr.bf16.mxu0 0
    %4523 = vmatmul.mubr.bf16.gmra.mrb[0].mxu0 %v1339
    %v4524 = vpop.f32.mrb[0].mxu0
    %v4525 = vadd.f32 0.0, %v4524
    %v4526 = vpop.f32.mrb[0].mxu0
    %v4527 = vpop.f32.mrb[0].mxu0
    %v4528 = vadd.f32 0.0, %v4527
    %v4529 = vpop.f32.mrb[0].mxu0
    %4530 = vmatprep.mubr.bf16.mxu0 0
    %4531 = vmatmul.mubr.bf16.gmra.mrb[0].mxu0 %v1340
    %v4532 = vpop.f32.mrb[0].mxu0
    %v4533 = vadd.f32 0.0, %v4532
    %v4534 = vpop.f32.mrb[0].mxu0
    %v4535 = vpop.f32.mrb[0].mxu0
    %v4536 = vadd.f32 0.0, %v4535
    %v4537 = vpop.f32.mrb[0].mxu0
    %4538 = vmatprep.mubr.bf16.mxu0 0
    %4539 = vmatmul.mubr.bf16.gmra.mrb[0].mxu0 %v1341
    %v4540 = vpop.f32.mrb[0].mxu0
    %v4541 = vadd.f32 0.0, %v4540
    %v4542 = vpop.f32.mrb[0].mxu0
    %v4543 = vpop.f32.mrb[0].mxu0
    %v4544 = vadd.f32 0.0, %v4543
    %v4545 = vpop.f32.mrb[0].mxu0
    %4546 = vmatprep.mubr.bf16.mxu0 0
    %4547 = vmatmul.mubr.bf16.gmra.mrb[0].mxu0 %v1342
    %v4548 = vpop.f32.mrb[0].mxu0
    %v4549 = vadd.f32 0.0, %v4548
    %v4550 = vpop.f32.mrb[0].mxu0
    %v4551 = vpop.f32.mrb[0].mxu0
    %v4552 = vadd.f32 0.0, %v4551
    %v4553 = vpop.f32.mrb[0].mxu0
    %4554 = vmatprep.mubr.bf16.mxu0 0
    %4555 = vmatmul.mubr.bf16.gmra.mrb[0].mxu0 %v1343
    %v4556 = vpop.f32.mrb[0].mxu0
    %v4557 = vadd.f32 0.0, %v4556
    %v4558 = vpop.f32.mrb[0].mxu0
    %v4559 = vpop.f32.mrb[0].mxu0
    %v4560 = vadd.f32 0.0, %v4559
    %v4561 = vpop.f32.mrb[0].mxu0
    %4562 = vmatprep.mubr.bf16.mxu0 0
    %4563 = vmatmul.mubr.bf16.gmra.mrb[0].mxu0 %v1344
    %v4564 = vpop.f32.mrb[0].mxu0
    %v4565 = vadd.f32 0.0, %v4564
    %v4566 = vpop.f32.mrb[0].mxu0
    %v4567 = vpop.f32.mrb[0].mxu0
    %v4568 = vadd.f32 0.0, %v4567
    %v4569 = vpop.f32.mrb[0].mxu0
    %4570 = vmatprep.mubr.bf16.mxu0 0
    %4571 = vmatmul.mubr.bf16.gmra.mrb[0].mxu0 %v1345
    %v4572 = vpop.f32.mrb[0].mxu0
    %v4573 = vadd.f32 0.0, %v4572
    %v4574 = vpop.f32.mrb[0].mxu0
    %v4575 = vpop.f32.mrb[0].mxu0
    %v4576 = vadd.f32 0.0, %v4575
    %v4577 = vpop.f32.mrb[0].mxu0
    %4578 = vmatprep.mubr.bf16.mxu0 0
    %4579 = vmatmul.mubr.bf16.gmra.mrb[0].mxu0 %v1346
    %v4580 = vpop.f32.mrb[0].mxu0
    %v4581 = vadd.f32 0.0, %v4580
    %v4582 = vpop.f32.mrb[0].mxu0
    %v4583 = vpop.f32.mrb[0].mxu0
    %v4584 = vadd.f32 0.0, %v4583
    %v4585 = vpop.f32.mrb[0].mxu0
    %4586 = vmatprep.mubr.bf16.mxu0 0
    %4587 = vmatmul.mubr.bf16.gmra.mrb[0].mxu0 %v1347
    %v4588 = vpop.f32.mrb[0].mxu0
    %v4589 = vadd.f32 0.0, %v4588
    %v4590 = vpop.f32.mrb[0].mxu0
    %v4591 = vpop.f32.mrb[0].mxu0
    %v4592 = vadd.f32 0.0, %v4591
    %v4593 = vpop.f32.mrb[0].mxu0
    %4594 = vmatprep.mubr.bf16.mxu0 0
    %4595 = vmatmul.mubr.bf16.gmra.mrb[0].mxu0 %v1348
    %v4596 = vpop.f32.mrb[0].mxu0
    %v4597 = vadd.f32 0.0, %v4596
    %v4598 = vpop.f32.mrb[0].mxu0
    %v4599 = vpop.f32.mrb[0].mxu0
    %v4600 = vadd.f32 0.0, %v4599
    %v4601 = vpop.f32.mrb[0].mxu0
    %4602 = vmatprep.mubr.bf16.mxu0 0
    %4603 = vmatmul.mubr.bf16.gmra.mrb[0].mxu0 %v1349
    %v4604 = vpop.f32.mrb[0].mxu0
    %v4605 = vadd.f32 0.0, %v4604
    %v4606 = vpop.f32.mrb[0].mxu0
    %v4607 = vpop.f32.mrb[0].mxu0
    %v4608 = vadd.f32 0.0, %v4607
    %v4609 = vpop.f32.mrb[0].mxu0
    %4610 = vmatprep.mubr.bf16.mxu0 0
    %4611 = vmatmul.mubr.bf16.gmra.mrb[0].mxu0 %v1350
    %v4612 = vpop.f32.mrb[0].mxu0
    %v4613 = vadd.f32 0.0, %v4612
    %v4614 = vpop.f32.mrb[0].mxu0
    %v4615 = vpop.f32.mrb[0].mxu0
    %v4616 = vadd.f32 0.0, %v4615
    %v4617 = vpop.f32.mrb[0].mxu0
    %4618 = vmatprep.mubr.bf16.mxu0 0
    %4619 = vmatmul.mubr.bf16.gmra.mrb[0].mxu0 %v1351
    %v4620 = vpop.f32.mrb[0].mxu0
    %v4621 = vadd.f32 0.0, %v4620
    %v4622 = vpop.f32.mrb[0].mxu0
    %v4623 = vpop.f32.mrb[0].mxu0
    %v4624 = vadd.f32 0.0, %v4623
    %v4625 = vpop.f32.mrb[0].mxu0
    %4626 = vmatprep.mubr.bf16.mxu0 0
    %4627 = vmatmul.mubr.bf16.gmra.mrb[0].mxu0 %v1335
    %v4628 = vpop.f32.mrb[0].mxu0
    %v4629 = vadd.f32 0.0, %v4628
    %v4630 = vpop.f32.mrb[0].mxu0
    %v4631 = vpop.f32.mrb[0].mxu0
    %v4632 = vadd.f32 0.0, %v4631
    %v4633 = vpop.f32.mrb[0].mxu0
    %4634 = vmatprep.mubr.bf16.mxu0 0
    %4635 = vmatmul.mubr.bf16.gmra.mrb[0].mxu0 %v1353
    %v4636 = vpop.f32.mrb[0].mxu0
    %v4637 = vadd.f32 0.0, %v4636
    %v4638 = vpop.f32.mrb[0].mxu0
    %v4639 = vpop.f32.mrb[0].mxu0
    %v4640 = vadd.f32 0.0, %v4639
    %v4641 = vpop.f32.mrb[0].mxu0
    %4642 = vmatprep.mubr.bf16.mxu0 0
    %4643 = vmatmul.mubr.bf16.gmra.mrb[0].mxu0 %v1354
    %v4644 = vpop.f32.mrb[0].mxu0
    %v4645 = vadd.f32 0.0, %v4644
    %v4646 = vpop.f32.mrb[0].mxu0
    %v4647 = vpop.f32.mrb[0].mxu0
    %v4648 = vadd.f32 0.0, %v4647
    %v4649 = vpop.f32.mrb[0].mxu0
    %4650 = vmatprep.mubr.bf16.mxu0 0
    %4651 = vmatmul.mubr.bf16.gmra.mrb[0].mxu0 %v1355
    %v4652 = vpop.f32.mrb[0].mxu0
    %v4653 = vadd.f32 0.0, %v4652
    %v4654 = vpop.f32.mrb[0].mxu0
    %v4655 = vpop.f32.mrb[0].mxu0
    %v4656 = vadd.f32 0.0, %v4655
    %v4657 = vpop.f32.mrb[0].mxu0
    %4658 = vmatprep.mubr.bf16.mxu0 0
    %4659 = vmatmul.mubr.bf16.gmra.mrb[0].mxu0 %v1356
    %v4660 = vpop.f32.mrb[0].mxu0
    %v4661 = vadd.f32 0.0, %v4660
    %v4662 = vpop.f32.mrb[0].mxu0
    %v4663 = vpop.f32.mrb[0].mxu0
    %v4664 = vadd.f32 0.0, %v4663
    %v4665 = vpop.f32.mrb[0].mxu0
    %4666 = vmatprep.mubr.bf16.mxu0 0
    %4667 = vmatmul.mubr.bf16.gmra.mrb[0].mxu0 %v1357
    %v4668 = vpop.f32.mrb[0].mxu0
    %v4669 = vadd.f32 0.0, %v4668
    %v4670 = vpop.f32.mrb[0].mxu0
    %v4671 = vpop.f32.mrb[0].mxu0
    %v4672 = vadd.f32 0.0, %v4671
    %v4673 = vpop.f32.mrb[0].mxu0
    %4674 = vmatprep.mubr.bf16.mxu0 0
    %4675 = vmatmul.mubr.bf16.gmra.mrb[0].mxu0 %v1358
    %v4676 = vpop.f32.mrb[0].mxu0
    %v4677 = vadd.f32 0.0, %v4676
    %v4678 = vpop.f32.mrb[0].mxu0
    %v4679 = vpop.f32.mrb[0].mxu0
    %v4680 = vadd.f32 0.0, %v4679
    %v4681 = vpop.f32.mrb[0].mxu0
    %4682 = vmatprep.mubr.bf16.mxu0 0
    %4683 = vmatmul.mubr.bf16.gmra.mrb[0].mxu0 %v1359
    %v4684 = vpop.f32.mrb[0].mxu0
    %v4685 = vadd.f32 0.0, %v4684
    %v4686 = vpop.f32.mrb[0].mxu0
    %v4687 = vpop.f32.mrb[0].mxu0
    %v4688 = vadd.f32 0.0, %v4687
    %v4689 = vpop.f32.mrb[0].mxu0
    %4690 = vmatprep.mubr.bf16.mxu0 0
    %4691 = vmatmul.mubr.bf16.gmra.mrb[0].mxu0 %v1360
    %v4692 = vpop.f32.mrb[0].mxu0
    %v4693 = vadd.f32 0.0, %v4692
    %v4694 = vpop.f32.mrb[0].mxu0
    %v4695 = vpop.f32.mrb[0].mxu0
    %v4696 = vadd.f32 0.0, %v4695
    %v4697 = vpop.f32.mrb[0].mxu0
    %4698 = vmatprep.mubr.bf16.mxu0 0
    %4699 = vmatmul.mubr.bf16.gmra.mrb[0].mxu0 %v1361
    %v4700 = vpop.f32.mrb[0].mxu0
    %v4701 = vadd.f32 0.0, %v4700
    %v4702 = vpop.f32.mrb[0].mxu0
    %v4703 = vpop.f32.mrb[0].mxu0
    %v4704 = vadd.f32 0.0, %v4703
    %v4705 = vpop.f32.mrb[0].mxu0
    %4706 = vmatprep.mubr.bf16.mxu0 0
    %4707 = vmatmul.mubr.bf16.gmra.mrb[0].mxu0 %v1362
    %v4708 = vpop.f32.mrb[0].mxu0
    %v4709 = vadd.f32 0.0, %v4708
    %v4710 = vpop.f32.mrb[0].mxu0
    %v4711 = vpop.f32.mrb[0].mxu0
    %v4712 = vadd.f32 0.0, %v4711
    %v4713 = vpop.f32.mrb[0].mxu0
    %4714 = vmatprep.mubr.bf16.mxu0 0
    %4715 = vmatmul.mubr.bf16.gmra.mrb[0].mxu0 %v1363
    %v4716 = vpop.f32.mrb[0].mxu0
    %v4717 = vadd.f32 0.0, %v4716
    %v4718 = vpop.f32.mrb[0].mxu0
    %v4719 = vpop.f32.mrb[0].mxu0
    %v4720 = vadd.f32 0.0, %v4719
    %v4721 = vpop.f32.mrb[0].mxu0
    %4722 = vmatprep.mubr.bf16.mxu0 0
    %4723 = vmatmul.mubr.bf16.gmra.mrb[0].mxu0 %v1364
    %v4724 = vpop.f32.mrb[0].mxu0
    %v4725 = vadd.f32 0.0, %v4724
    %v4726 = vpop.f32.mrb[0].mxu0
    %v4727 = vpop.f32.mrb[0].mxu0
    %v4728 = vadd.f32 0.0, %v4727
    %v4729 = vpop.f32.mrb[0].mxu0
    %4730 = vmatprep.mubr.bf16.mxu0 0
    %4731 = vmatmul.mubr.bf16.gmra.mrb[0].mxu0 %v1365
    %v4732 = vpop.f32.mrb[0].mxu0
    %v4733 = vadd.f32 0.0, %v4732
    %v4734 = vpop.f32.mrb[0].mxu0
    %v4735 = vpop.f32.mrb[0].mxu0
    %v4736 = vadd.f32 0.0, %v4735
    %v4737 = vpop.f32.mrb[0].mxu0
    %4738 = vmatprep.mubr.bf16.mxu0 0
    %4739 = vmatmul.mubr.bf16.gmra.mrb[0].mxu0 %v1366
    %v4740 = vpop.f32.mrb[0].mxu0
    %v4741 = vadd.f32 0.0, %v4740
    %v4742 = vpop.f32.mrb[0].mxu0
    %v4743 = vpop.f32.mrb[0].mxu0
    %v4744 = vadd.f32 0.0, %v4743
    %v4745 = vpop.f32.mrb[0].mxu0
    %4746 = vmatprep.mubr.bf16.mxu0 0
    %4747 = vmatmul.mubr.bf16.gmra.mrb[0].mxu0 %v1367
    %v4748 = vpop.f32.mrb[0].mxu0
    %v4749 = vadd.f32 0.0, %v4748
    %v4750 = vpop.f32.mrb[0].mxu0
    %v4751 = vpop.f32.mrb[0].mxu0
    %v4752 = vadd.f32 0.0, %v4751
    %v4753 = vpop.f32.mrb[0].mxu0
    %4754 = vmatprep.mubr.bf16.mxu0 0
    %4755 = vmatmul.mubr.bf16.gmra.mrb[0].mxu0 %v1335
    %v4756 = vpop.f32.mrb[0].mxu0
    %v4757 = vadd.f32 0.0, %v4756
    %v4758 = vpop.f32.mrb[0].mxu0
    %v4759 = vpop.f32.mrb[0].mxu0
    %v4760 = vadd.f32 0.0, %v4759
    %v4761 = vpop.f32.mrb[0].mxu0
    %4762 = vdwg.mxu0
    %v4763 = vadd.f32 %v4345, %v4509
    %v4764 = vadd.f32 %v4346, %v4512
    %v4765 = vadd.f32 %v4347, %v4517
    %v4766 = vadd.f32 %v4348, %v4520
    %v4767 = vadd.f32 %v4349, %v4525
    %v4768 = vadd.f32 %v4350, %v4528
    %v4769 = vadd.f32 %v4351, %v4533
    %v4770 = vadd.f32 %v4352, %v4536
    %v4771 = vadd.f32 %v4353, %v4541
    %v4772 = vadd.f32 %v4354, %v4544
    %v4773 = vadd.f32 %v4355, %v4549
    %v4774 = vadd.f32 %v4356, %v4552
    %v4775 = vadd.f32 %v4357, %v4557
    %v4776 = vadd.f32 %v4358, %v4560
    %v4777 = vadd.f32 %v4359, %v4565
    %v4778 = vadd.f32 %v4360, %v4568
    %v4779 = vadd.f32 %v4361, %v4573
    %v4780 = vadd.f32 %v4362, %v4576
    %v4781 = vadd.f32 %v4363, %v4581
    %v4782 = vadd.f32 %v4364, %v4584
    %v4783 = vadd.f32 %v4365, %v4589
    %v4784 = vadd.f32 %v4366, %v4592
    %v4785 = vadd.f32 %v4367, %v4597
    %v4786 = vadd.f32 %v4368, %v4600
    %v4787 = vadd.f32 %v4369, %v4605
    %v4788 = vadd.f32 %v4370, %v4608
    %v4789 = vadd.f32 %v4371, %v4613
    %v4790 = vadd.f32 %v4372, %v4616
    %v4791 = vadd.f32 %v4373, %v4621
    %v4792 = vadd.f32 %v4374, %v4624
    %v4793 = vadd.f32 %v4375, %v4629
    %v4794 = vadd.f32 %v4376, %v4632
    %v4795 = vadd.f32 %v4377, %v4637
    %v4796 = vadd.f32 %v4378, %v4640
    %v4797 = vadd.f32 %v4379, %v4645
    %v4798 = vadd.f32 %v4380, %v4648
    %v4799 = vadd.f32 %v4381, %v4653
    %v4800 = vadd.f32 %v4382, %v4656
    %v4801 = vadd.f32 %v4383, %v4661
    %v4802 = vadd.f32 %v4384, %v4664
    %v4803 = vadd.f32 %v4385, %v4669
    %v4804 = vadd.f32 %v4386, %v4672
    %v4805 = vadd.f32 %v4387, %v4677
    %v4806 = vadd.f32 %v4388, %v4680
    %v4807 = vadd.f32 %v4389, %v4685
    %v4808 = vadd.f32 %v4390, %v4688
    %v4809 = vadd.f32 %v4391, %v4693
    %v4810 = vadd.f32 %v4392, %v4696
    %v4811 = vadd.f32 %v4393, %v4701
    %v4812 = vadd.f32 %v4394, %v4704
    %v4813 = vadd.f32 %v4395, %v4709
    %v4814 = vadd.f32 %v4396, %v4712
    %v4815 = vadd.f32 %v4397, %v4717
    %v4816 = vadd.f32 %v4398, %v4720
    %v4817 = vadd.f32 %v4399, %v4725
    %v4818 = vadd.f32 %v4400, %v4728
    %v4819 = vadd.f32 %v4401, %v4733
    %v4820 = vadd.f32 %v4402, %v4736
    %v4821 = vadd.f32 %v4403, %v4741
    %v4822 = vadd.f32 %v4404, %v4744
    %v4823 = vadd.f32 %v4405, %v4749
    %v4824 = vadd.f32 %v4406, %v4752
    %v4825 = vadd.f32 %v4407, %v4757
    %v4826 = vadd.f32 %v4408, %v4760
    %s4827 = scalar_lea.vmem [#allocation7], 448
    %v4828 = vld [vmem:[%s4827] sm:$0xf]
    %v4829 = vld [vmem:[%s4827 + $0x4] sm:$0xf]
    %v4830 = vld [vmem:[%s4827 + $0x8] sm:$0xf]
    %v4831 = vld [vmem:[%s4827 + $0xc] sm:$0xf]
    %v4832 = vld [vmem:[%s4827 + $0x10] sm:$0xf]
    %v4833 = vld [vmem:[%s4827 + $0x14] sm:$0xf]
    %v4834 = vld [vmem:[%s4827 + $0x18] sm:$0xf]
    %v4835 = vld [vmem:[%s4827 + $0x1c] sm:$0xf]
    %v4836 = vld [vmem:[%s4827 + $0x20] sm:$0xf]
    %v4837 = vld [vmem:[%s4827 + $0x24] sm:$0xf]
    %v4838 = vld [vmem:[%s4827 + $0x28] sm:$0xf]
    %v4839 = vld [vmem:[%s4827 + $0x2c] sm:$0xf]
    %v4840 = vld [vmem:[%s4827 + $0x30] sm:$0xf]
    %v4841 = vld [vmem:[%s4827 + $0x34] sm:$0xf]
    %v4842 = vld [vmem:[%s4827 + $0x38] sm:$0xf]
    %v4843 = vld [vmem:[%s4827 + $0x3c] sm:$0xf]
    %v4860 = vunpack.c.l.b16 %v4828
    %v4861 = vunpack.c.l.b16 %v4829
    %v4862 = vunpack.c.l.b16 %v4830
    %v4863 = vunpack.c.l.b16 %v4831
    %v4864 = vunpack.c.l.b16 %v4832
    %v4865 = vunpack.c.l.b16 %v4833
    %v4866 = vunpack.c.l.b16 %v4834
    %v4867 = vunpack.c.l.b16 %v4835
    %v4868 = vunpack.c.l.b16 %v4836
    %v4869 = vunpack.c.l.b16 %v4837
    %v4870 = vunpack.c.l.b16 %v4838
    %v4871 = vunpack.c.l.b16 %v4839
    %v4872 = vunpack.c.l.b16 %v4840
    %v4873 = vunpack.c.l.b16 %v4841
    %v4874 = vunpack.c.l.b16 %v4842
    %v4875 = vunpack.c.l.b16 %v4843
    %v4876 = vpack.c.b16 %v4861, %v4860
    %v4877 = vpack.c.b16 %v4863, %v4862
    %v4878 = vpack.c.b16 %v4865, %v4864
    %v4879 = vpack.c.b16 %v4867, %v4866
    %v4880 = vpack.c.b16 %v4869, %v4868
    %v4881 = vpack.c.b16 %v4871, %v4870
    %v4882 = vpack.c.b16 %v4873, %v4872
    %v4883 = vpack.c.b16 %v4875, %v4874
    %4892 = vmatprep.subr.bf16.mxu0 0
    %4893 = vmatpush1.bf16.msra.mxu0 %v4876
    %4894 = vmatprep.subr.bf16.mxu0 0
    %4895 = vmatpush1.bf16.msra.mxu0 %v4877
    %4896 = vmatprep.subr.bf16.mxu0 0
    %4897 = vmatpush1.bf16.msra.mxu0 %v4878
    %4898 = vmatprep.subr.bf16.mxu0 0
    %4899 = vmatpush1.bf16.msra.mxu0 %v4879
    %4900 = vmatprep.subr.bf16.mxu0 0
    %4901 = vmatpush1.bf16.msra.mxu0 %v4880
    %4902 = vmatprep.subr.bf16.mxu0 0
    %4903 = vmatpush1.bf16.msra.mxu0 %v4881
    %4904 = vmatprep.subr.bf16.mxu0 0
    %4905 = vmatpush1.bf16.msra.mxu0 %v4882
    %4906 = vmatprep.subr.bf16.mxu0 0
    %4907 = vmatpush1.bf16.msra.mxu0 %v4883
    %4908 = vmatprep.subr.bf16.mxu0 0
    %4909 = vmatpush1.bf16.msra.mxu0 0
    %4910 = vmatprep.subr.bf16.mxu0 0
    %4911 = vmatpush1.bf16.msra.mxu0 0
    %4912 = vmatprep.subr.bf16.mxu0 0
    %4913 = vmatpush1.bf16.msra.mxu0 0
    %4914 = vmatprep.subr.bf16.mxu0 0
    %4915 = vmatpush1.bf16.msra.mxu0 0
    %4916 = vmatprep.subr.bf16.mxu0 0
    %4917 = vmatpush1.bf16.msra.mxu0 0
    %4918 = vmatprep.subr.bf16.mxu0 0
    %4919 = vmatpush1.bf16.msra.mxu0 0
    %4920 = vmatprep.subr.bf16.mxu0 0
    %4921 = vmatpush1.bf16.msra.mxu0 0
    %4922 = vmatprep.subr.bf16.mxu0 0
    %4923 = vmatpush1.bf16.msra.mxu0 0
    %4924 = vmatprep.mubr.bf16.mxu0 0
    %4925 = vmatmul.mubr.bf16.gmra.mrb[0].mxu0 %v1453
    %v4926 = vpop.f32.mrb[0].mxu0
    %v4927 = vadd.f32 0.0, %v4926
    %v4928 = vpop.f32.mrb[0].mxu0
    %v4929 = vpop.f32.mrb[0].mxu0
    %v4930 = vadd.f32 0.0, %v4929
    %v4931 = vpop.f32.mrb[0].mxu0
    %4932 = vmatprep.mubr.bf16.mxu0 0
    %4933 = vmatmul.mubr.bf16.gmra.mrb[0].mxu0 %v1465
    %v4934 = vpop.f32.mrb[0].mxu0
    %v4935 = vadd.f32 0.0, %v4934
    %v4936 = vpop.f32.mrb[0].mxu0
    %v4937 = vpop.f32.mrb[0].mxu0
    %v4938 = vadd.f32 0.0, %v4937
    %v4939 = vpop.f32.mrb[0].mxu0
    %4940 = vmatprep.mubr.bf16.mxu0 0
    %4941 = vmatmul.mubr.bf16.gmra.mrb[0].mxu0 %v1477
    %v4942 = vpop.f32.mrb[0].mxu0
    %v4943 = vadd.f32 0.0, %v4942
    %v4944 = vpop.f32.mrb[0].mxu0
    %v4945 = vpop.f32.mrb[0].mxu0
    %v4946 = vadd.f32 0.0, %v4945
    %v4947 = vpop.f32.mrb[0].mxu0
    %4948 = vmatprep.mubr.bf16.mxu0 0
    %4949 = vmatmul.mubr.bf16.gmra.mrb[0].mxu0 %v1489
    %v4950 = vpop.f32.mrb[0].mxu0
    %v4951 = vadd.f32 0.0, %v4950
    %v4952 = vpop.f32.mrb[0].mxu0
    %v4953 = vpop.f32.mrb[0].mxu0
    %v4954 = vadd.f32 0.0, %v4953
    %v4955 = vpop.f32.mrb[0].mxu0
    %4956 = vmatprep.mubr.bf16.mxu0 0
    %4957 = vmatmul.mubr.bf16.gmra.mrb[0].mxu0 %v1501
    %v4958 = vpop.f32.mrb[0].mxu0
    %v4959 = vadd.f32 0.0, %v4958
    %v4960 = vpop.f32.mrb[0].mxu0
    %v4961 = vpop.f32.mrb[0].mxu0
    %v4962 = vadd.f32 0.0, %v4961
    %v4963 = vpop.f32.mrb[0].mxu0
    %4964 = vmatprep.mubr.bf16.mxu0 0
    %4965 = vmatmul.mubr.bf16.gmra.mrb[0].mxu0 %v1513
    %v4966 = vpop.f32.mrb[0].mxu0
    %v4967 = vadd.f32 0.0, %v4966
    %v4968 = vpop.f32.mrb[0].mxu0
    %v4969 = vpop.f32.mrb[0].mxu0
    %v4970 = vadd.f32 0.0, %v4969
    %v4971 = vpop.f32.mrb[0].mxu0
    %4972 = vmatprep.mubr.bf16.mxu0 0
    %4973 = vmatmul.mubr.bf16.gmra.mrb[0].mxu0 %v1525
    %v4974 = vpop.f32.mrb[0].mxu0
    %v4975 = vadd.f32 0.0, %v4974
    %v4976 = vpop.f32.mrb[0].mxu0
    %v4977 = vpop.f32.mrb[0].mxu0
    %v4978 = vadd.f32 0.0, %v4977
    %v4979 = vpop.f32.mrb[0].mxu0
    %4980 = vmatprep.mubr.bf16.mxu0 0
    %4981 = vmatmul.mubr.bf16.gmra.mrb[0].mxu0 %v1537
    %v4982 = vpop.f32.mrb[0].mxu0
    %v4983 = vadd.f32 0.0, %v4982
    %v4984 = vpop.f32.mrb[0].mxu0
    %v4985 = vpop.f32.mrb[0].mxu0
    %v4986 = vadd.f32 0.0, %v4985
    %v4987 = vpop.f32.mrb[0].mxu0
    %4988 = vmatprep.mubr.bf16.mxu0 0
    %4989 = vmatmul.mubr.bf16.gmra.mrb[0].mxu0 %v1549
    %v4990 = vpop.f32.mrb[0].mxu0
    %v4991 = vadd.f32 0.0, %v4990
    %v4992 = vpop.f32.mrb[0].mxu0
    %v4993 = vpop.f32.mrb[0].mxu0
    %v4994 = vadd.f32 0.0, %v4993
    %v4995 = vpop.f32.mrb[0].mxu0
    %4996 = vmatprep.mubr.bf16.mxu0 0
    %4997 = vmatmul.mubr.bf16.gmra.mrb[0].mxu0 %v1561
    %v4998 = vpop.f32.mrb[0].mxu0
    %v4999 = vadd.f32 0.0, %v4998
    %v5000 = vpop.f32.mrb[0].mxu0
    %v5001 = vpop.f32.mrb[0].mxu0
    %v5002 = vadd.f32 0.0, %v5001
    %v5003 = vpop.f32.mrb[0].mxu0
    %5004 = vmatprep.mubr.bf16.mxu0 0
    %5005 = vmatmul.mubr.bf16.gmra.mrb[0].mxu0 %v1573
    %v5006 = vpop.f32.mrb[0].mxu0
    %v5007 = vadd.f32 0.0, %v5006
    %v5008 = vpop.f32.mrb[0].mxu0
    %v5009 = vpop.f32.mrb[0].mxu0
    %v5010 = vadd.f32 0.0, %v5009
    %v5011 = vpop.f32.mrb[0].mxu0
    %5012 = vmatprep.mubr.bf16.mxu0 0
    %5013 = vmatmul.mubr.bf16.gmra.mrb[0].mxu0 %v1585
    %v5014 = vpop.f32.mrb[0].mxu0
    %v5015 = vadd.f32 0.0, %v5014
    %v5016 = vpop.f32.mrb[0].mxu0
    %v5017 = vpop.f32.mrb[0].mxu0
    %v5018 = vadd.f32 0.0, %v5017
    %v5019 = vpop.f32.mrb[0].mxu0
    %5020 = vmatprep.mubr.bf16.mxu0 0
    %5021 = vmatmul.mubr.bf16.gmra.mrb[0].mxu0 %v1597
    %v5022 = vpop.f32.mrb[0].mxu0
    %v5023 = vadd.f32 0.0, %v5022
    %v5024 = vpop.f32.mrb[0].mxu0
    %v5025 = vpop.f32.mrb[0].mxu0
    %v5026 = vadd.f32 0.0, %v5025
    %v5027 = vpop.f32.mrb[0].mxu0
    %5028 = vmatprep.mubr.bf16.mxu0 0
    %5029 = vmatmul.mubr.bf16.gmra.mrb[0].mxu0 %v1609
    %v5030 = vpop.f32.mrb[0].mxu0
    %v5031 = vadd.f32 0.0, %v5030
    %v5032 = vpop.f32.mrb[0].mxu0
    %v5033 = vpop.f32.mrb[0].mxu0
    %v5034 = vadd.f32 0.0, %v5033
    %v5035 = vpop.f32.mrb[0].mxu0
    %5036 = vmatprep.mubr.bf16.mxu0 0
    %5037 = vmatmul.mubr.bf16.gmra.mrb[0].mxu0 %v3546
    %v5038 = vpop.f32.mrb[0].mxu0
    %v5039 = vadd.f32 0.0, %v5038
    %v5040 = vpop.f32.mrb[0].mxu0
    %v5041 = vpop.f32.mrb[0].mxu0
    %v5042 = vadd.f32 0.0, %v5041
    %v5043 = vpop.f32.mrb[0].mxu0
    %5044 = vmatprep.mubr.bf16.mxu0 0
    %5045 = vmatmul.mubr.bf16.gmra.mrb[0].mxu0 %v1429
    %v5046 = vpop.f32.mrb[0].mxu0
    %v5047 = vadd.f32 0.0, %v5046
    %v5048 = vpop.f32.mrb[0].mxu0
    %v5049 = vpop.f32.mrb[0].mxu0
    %v5050 = vadd.f32 0.0, %v5049
    %v5051 = vpop.f32.mrb[0].mxu0
    %5052 = vmatprep.mubr.bf16.mxu0 0
    %5053 = vmatmul.mubr.bf16.gmra.mrb[0].mxu0 %v1633
    %v5054 = vpop.f32.mrb[0].mxu0
    %v5055 = vadd.f32 0.0, %v5054
    %v5056 = vpop.f32.mrb[0].mxu0
    %v5057 = vpop.f32.mrb[0].mxu0
    %v5058 = vadd.f32 0.0, %v5057
    %v5059 = vpop.f32.mrb[0].mxu0
    %5060 = vmatprep.mubr.bf16.mxu0 0
    %5061 = vmatmul.mubr.bf16.gmra.mrb[0].mxu0 %v1645
    %v5062 = vpop.f32.mrb[0].mxu0
    %v5063 = vadd.f32 0.0, %v5062
    %v5064 = vpop.f32.mrb[0].mxu0
    %v5065 = vpop.f32.mrb[0].mxu0
    %v5066 = vadd.f32 0.0, %v5065
    %v5067 = vpop.f32.mrb[0].mxu0
    %5068 = vmatprep.mubr.bf16.mxu0 0
    %5069 = vmatmul.mubr.bf16.gmra.mrb[0].mxu0 %v1657
    %v5070 = vpop.f32.mrb[0].mxu0
    %v5071 = vadd.f32 0.0, %v5070
    %v5072 = vpop.f32.mrb[0].mxu0
    %v5073 = vpop.f32.mrb[0].mxu0
    %v5074 = vadd.f32 0.0, %v5073
    %v5075 = vpop.f32.mrb[0].mxu0
    %5076 = vmatprep.mubr.bf16.mxu0 0
    %5077 = vmatmul.mubr.bf16.gmra.mrb[0].mxu0 %v1669
    %v5078 = vpop.f32.mrb[0].mxu0
    %v5079 = vadd.f32 0.0, %v5078
    %v5080 = vpop.f32.mrb[0].mxu0
    %v5081 = vpop.f32.mrb[0].mxu0
    %v5082 = vadd.f32 0.0, %v5081
    %v5083 = vpop.f32.mrb[0].mxu0
    %5084 = vmatprep.mubr.bf16.mxu0 0
    %5085 = vmatmul.mubr.bf16.gmra.mrb[0].mxu0 %v1681
    %v5086 = vpop.f32.mrb[0].mxu0
    %v5087 = vadd.f32 0.0, %v5086
    %v5088 = vpop.f32.mrb[0].mxu0
    %v5089 = vpop.f32.mrb[0].mxu0
    %v5090 = vadd.f32 0.0, %v5089
    %v5091 = vpop.f32.mrb[0].mxu0
    %5092 = vmatprep.mubr.bf16.mxu0 0
    %5093 = vmatmul.mubr.bf16.gmra.mrb[0].mxu0 %v1693
    %v5094 = vpop.f32.mrb[0].mxu0
    %v5095 = vadd.f32 0.0, %v5094
    %v5096 = vpop.f32.mrb[0].mxu0
    %v5097 = vpop.f32.mrb[0].mxu0
    %v5098 = vadd.f32 0.0, %v5097
    %v5099 = vpop.f32.mrb[0].mxu0
    %5100 = vmatprep.mubr.bf16.mxu0 0
    %5101 = vmatmul.mubr.bf16.gmra.mrb[0].mxu0 %v1705
    %v5102 = vpop.f32.mrb[0].mxu0
    %v5103 = vadd.f32 0.0, %v5102
    %v5104 = vpop.f32.mrb[0].mxu0
    %v5105 = vpop.f32.mrb[0].mxu0
    %v5106 = vadd.f32 0.0, %v5105
    %v5107 = vpop.f32.mrb[0].mxu0
    %5108 = vmatprep.mubr.bf16.mxu0 0
    %5109 = vmatmul.mubr.bf16.gmra.mrb[0].mxu0 %v1717
    %v5110 = vpop.f32.mrb[0].mxu0
    %v5111 = vadd.f32 0.0, %v5110
    %v5112 = vpop.f32.mrb[0].mxu0
    %v5113 = vpop.f32.mrb[0].mxu0
    %v5114 = vadd.f32 0.0, %v5113
    %v5115 = vpop.f32.mrb[0].mxu0
    %5116 = vmatprep.mubr.bf16.mxu0 0
    %5117 = vmatmul.mubr.bf16.gmra.mrb[0].mxu0 %v1729
    %v5118 = vpop.f32.mrb[0].mxu0
    %v5119 = vadd.f32 0.0, %v5118
    %v5120 = vpop.f32.mrb[0].mxu0
    %v5121 = vpop.f32.mrb[0].mxu0
    %v5122 = vadd.f32 0.0, %v5121
    %v5123 = vpop.f32.mrb[0].mxu0
    %5124 = vmatprep.mubr.bf16.mxu0 0
    %5125 = vmatmul.mubr.bf16.gmra.mrb[0].mxu0 %v1741
    %v5126 = vpop.f32.mrb[0].mxu0
    %v5127 = vadd.f32 0.0, %v5126
    %v5128 = vpop.f32.mrb[0].mxu0
    %v5129 = vpop.f32.mrb[0].mxu0
    %v5130 = vadd.f32 0.0, %v5129
    %v5131 = vpop.f32.mrb[0].mxu0
    %5132 = vmatprep.mubr.bf16.mxu0 0
    %5133 = vmatmul.mubr.bf16.gmra.mrb[0].mxu0 %v1753
    %v5134 = vpop.f32.mrb[0].mxu0
    %v5135 = vadd.f32 0.0, %v5134
    %v5136 = vpop.f32.mrb[0].mxu0
    %v5137 = vpop.f32.mrb[0].mxu0
    %v5138 = vadd.f32 0.0, %v5137
    %v5139 = vpop.f32.mrb[0].mxu0
    %5140 = vmatprep.mubr.bf16.mxu0 0
    %5141 = vmatmul.mubr.bf16.gmra.mrb[0].mxu0 %v1765
    %v5142 = vpop.f32.mrb[0].mxu0
    %v5143 = vadd.f32 0.0, %v5142
    %v5144 = vpop.f32.mrb[0].mxu0
    %v5145 = vpop.f32.mrb[0].mxu0
    %v5146 = vadd.f32 0.0, %v5145
    %v5147 = vpop.f32.mrb[0].mxu0
    %5148 = vmatprep.mubr.bf16.mxu0 0
    %5149 = vmatmul.mubr.bf16.gmra.mrb[0].mxu0 %v1777
    %v5150 = vpop.f32.mrb[0].mxu0
    %v5151 = vadd.f32 0.0, %v5150
    %v5152 = vpop.f32.mrb[0].mxu0
    %v5153 = vpop.f32.mrb[0].mxu0
    %v5154 = vadd.f32 0.0, %v5153
    %v5155 = vpop.f32.mrb[0].mxu0
    %5156 = vmatprep.mubr.bf16.mxu0 0
    %5157 = vmatmul.mubr.bf16.gmra.mrb[0].mxu0 %v1789
    %v5158 = vpop.f32.mrb[0].mxu0
    %v5159 = vadd.f32 0.0, %v5158
    %v5160 = vpop.f32.mrb[0].mxu0
    %v5161 = vpop.f32.mrb[0].mxu0
    %v5162 = vadd.f32 0.0, %v5161
    %v5163 = vpop.f32.mrb[0].mxu0
    %5164 = vmatprep.mubr.bf16.mxu0 0
    %5165 = vmatmul.mubr.bf16.gmra.mrb[0].mxu0 %v3558
    %v5166 = vpop.f32.mrb[0].mxu0
    %v5167 = vadd.f32 0.0, %v5166
    %v5168 = vpop.f32.mrb[0].mxu0
    %v5169 = vpop.f32.mrb[0].mxu0
    %v5170 = vadd.f32 0.0, %v5169
    %v5171 = vpop.f32.mrb[0].mxu0
    %5172 = vmatprep.mubr.bf16.mxu0 0
    %5173 = vmatmul.mubr.bf16.gmra.mrb[0].mxu0 %v1429
    %v5174 = vpop.f32.mrb[0].mxu0
    %v5175 = vadd.f32 0.0, %v5174
    %v5176 = vpop.f32.mrb[0].mxu0
    %v5177 = vpop.f32.mrb[0].mxu0
    %v5178 = vadd.f32 0.0, %v5177
    %v5179 = vpop.f32.mrb[0].mxu0
    %5180 = vdwg.mxu0
    %v5181 = vadd.f32 %v4763, %v4927
    %v5182 = vadd.f32 %v4764, %v4930
    %v5183 = vadd.f32 %v4765, %v4935
    %v5184 = vadd.f32 %v4766, %v4938
    %v5185 = vadd.f32 %v4767, %v4943
    %v5186 = vadd.f32 %v4768, %v4946
    %v5187 = vadd.f32 %v4769, %v4951
    %v5188 = vadd.f32 %v4770, %v4954
    %v5189 = vadd.f32 %v4771, %v4959
    %v5190 = vadd.f32 %v4772, %v4962
    %v5191 = vadd.f32 %v4773, %v4967
    %v5192 = vadd.f32 %v4774, %v4970
    %v5193 = vadd.f32 %v4775, %v4975
    %v5194 = vadd.f32 %v4776, %v4978
    %v5195 = vadd.f32 %v4777, %v4983
    %v5196 = vadd.f32 %v4778, %v4986
    %v5197 = vadd.f32 %v4779, %v4991
    %v5198 = vadd.f32 %v4780, %v4994
    %v5199 = vadd.f32 %v4781, %v4999
    %v5200 = vadd.f32 %v4782, %v5002
    %v5201 = vadd.f32 %v4783, %v5007
    %v5202 = vadd.f32 %v4784, %v5010
    %v5203 = vadd.f32 %v4785, %v5015
    %v5204 = vadd.f32 %v4786, %v5018
    %v5205 = vadd.f32 %v4787, %v5023
    %v5206 = vadd.f32 %v4788, %v5026
    %v5207 = vadd.f32 %v4789, %v5031
    %v5208 = vadd.f32 %v4790, %v5034
    %v5209 = vadd.f32 %v4791, %v5039
    %v5210 = vadd.f32 %v4792, %v5042
    %v5211 = vadd.f32 %v4793, %v5047
    %v5212 = vadd.f32 %v4794, %v5050
    %v5213 = vadd.f32 %v4795, %v5055
    %v5214 = vadd.f32 %v4796, %v5058
    %v5215 = vadd.f32 %v4797, %v5063
    %v5216 = vadd.f32 %v4798, %v5066
    %v5217 = vadd.f32 %v4799, %v5071
    %v5218 = vadd.f32 %v4800, %v5074
    %v5219 = vadd.f32 %v4801, %v5079
    %v5220 = vadd.f32 %v4802, %v5082
    %v5221 = vadd.f32 %v4803, %v5087
    %v5222 = vadd.f32 %v4804, %v5090
    %v5223 = vadd.f32 %v4805, %v5095
    %v5224 = vadd.f32 %v4806, %v5098
    %v5225 = vadd.f32 %v4807, %v5103
    %v5226 = vadd.f32 %v4808, %v5106
    %v5227 = vadd.f32 %v4809, %v5111
    %v5228 = vadd.f32 %v4810, %v5114
    %v5229 = vadd.f32 %v4811, %v5119
    %v5230 = vadd.f32 %v4812, %v5122
    %v5231 = vadd.f32 %v4813, %v5127
    %v5232 = vadd.f32 %v4814, %v5130
    %v5233 = vadd.f32 %v4815, %v5135
    %v5234 = vadd.f32 %v4816, %v5138
    %v5235 = vadd.f32 %v4817, %v5143
    %v5236 = vadd.f32 %v4818, %v5146
    %v5237 = vadd.f32 %v4819, %v5151
    %v5238 = vadd.f32 %v4820, %v5154
    %v5239 = vadd.f32 %v4821, %v5159
    %v5240 = vadd.f32 %v4822, %v5162
    %v5241 = vadd.f32 %v4823, %v5167
    %v5242 = vadd.f32 %v4824, %v5170
    %v5243 = vadd.f32 %v4825, %v5175
    %v5244 = vadd.f32 %v4826, %v5178
    %s5245 = scalar_lea.vmem [#allocation7], 512
    %v5246 = vld [vmem:[%s5245] sm:$0xf]
    %v5247 = vld [vmem:[%s5245 + $0x4] sm:$0xf]
    %v5248 = vld [vmem:[%s5245 + $0x8] sm:$0xf]
    %v5249 = vld [vmem:[%s5245 + $0xc] sm:$0xf]
    %v5250 = vld [vmem:[%s5245 + $0x10] sm:$0xf]
    %v5251 = vld [vmem:[%s5245 + $0x14] sm:$0xf]
    %v5252 = vld [vmem:[%s5245 + $0x18] sm:$0xf]
    %v5253 = vld [vmem:[%s5245 + $0x1c] sm:$0xf]
    %v5254 = vld [vmem:[%s5245 + $0x20] sm:$0xf]
    %v5255 = vld [vmem:[%s5245 + $0x24] sm:$0xf]
    %v5256 = vld [vmem:[%s5245 + $0x28] sm:$0xf]
    %v5257 = vld [vmem:[%s5245 + $0x2c] sm:$0xf]
    %v5258 = vld [vmem:[%s5245 + $0x30] sm:$0xf]
    %v5259 = vld [vmem:[%s5245 + $0x34] sm:$0xf]
    %v5260 = vld [vmem:[%s5245 + $0x38] sm:$0xf]
    %v5261 = vld [vmem:[%s5245 + $0x3c] sm:$0xf]
    %v5278 = vunpack.c.l.b16 %v5246
    %v5279 = vunpack.c.l.b16 %v5247
    %v5280 = vunpack.c.l.b16 %v5248
    %v5281 = vunpack.c.l.b16 %v5249
    %v5282 = vunpack.c.l.b16 %v5250
    %v5283 = vunpack.c.l.b16 %v5251
    %v5284 = vunpack.c.l.b16 %v5252
    %v5285 = vunpack.c.l.b16 %v5253
    %v5286 = vunpack.c.l.b16 %v5254
    %v5287 = vunpack.c.l.b16 %v5255
    %v5288 = vunpack.c.l.b16 %v5256
    %v5289 = vunpack.c.l.b16 %v5257
    %v5290 = vunpack.c.l.b16 %v5258
    %v5291 = vunpack.c.l.b16 %v5259
    %v5292 = vunpack.c.l.b16 %v5260
    %v5293 = vunpack.c.l.b16 %v5261
    %v5294 = vpack.c.b16 %v5279, %v5278
    %v5295 = vpack.c.b16 %v5281, %v5280
    %v5296 = vpack.c.b16 %v5283, %v5282
    %v5297 = vpack.c.b16 %v5285, %v5284
    %v5298 = vpack.c.b16 %v5287, %v5286
    %v5299 = vpack.c.b16 %v5289, %v5288
    %v5300 = vpack.c.b16 %v5291, %v5290
    %v5301 = vpack.c.b16 %v5293, %v5292
    %5310 = vmatprep.subr.bf16.mxu0 0
    %5311 = vmatpush1.bf16.msra.mxu0 %v5294
    %5312 = vmatprep.subr.bf16.mxu0 0
    %5313 = vmatpush1.bf16.msra.mxu0 %v5295
    %5314 = vmatprep.subr.bf16.mxu0 0
    %5315 = vmatpush1.bf16.msra.mxu0 %v5296
    %5316 = vmatprep.subr.bf16.mxu0 0
    %5317 = vmatpush1.bf16.msra.mxu0 %v5297
    %5318 = vmatprep.subr.bf16.mxu0 0
    %5319 = vmatpush1.bf16.msra.mxu0 %v5298
    %5320 = vmatprep.subr.bf16.mxu0 0
    %5321 = vmatpush1.bf16.msra.mxu0 %v5299
    %5322 = vmatprep.subr.bf16.mxu0 0
    %5323 = vmatpush1.bf16.msra.mxu0 %v5300
    %5324 = vmatprep.subr.bf16.mxu0 0
    %5325 = vmatpush1.bf16.msra.mxu0 %v5301
    %5326 = vmatprep.subr.bf16.mxu0 0
    %5327 = vmatpush1.bf16.msra.mxu0 0
    %5328 = vmatprep.subr.bf16.mxu0 0
    %5329 = vmatpush1.bf16.msra.mxu0 0
    %5330 = vmatprep.subr.bf16.mxu0 0
    %5331 = vmatpush1.bf16.msra.mxu0 0
    %5332 = vmatprep.subr.bf16.mxu0 0
    %5333 = vmatpush1.bf16.msra.mxu0 0
    %5334 = vmatprep.subr.bf16.mxu0 0
    %5335 = vmatpush1.bf16.msra.mxu0 0
    %5336 = vmatprep.subr.bf16.mxu0 0
    %5337 = vmatpush1.bf16.msra.mxu0 0
    %5338 = vmatprep.subr.bf16.mxu0 0
    %5339 = vmatpush1.bf16.msra.mxu0 0
    %5340 = vmatprep.subr.bf16.mxu0 0
    %5341 = vmatpush1.bf16.msra.mxu0 0
    %5342 = vmatprep.mubr.bf16.mxu0 0
    %5343 = vmatmul.mubr.bf16.gmra.mrb[0].mxu0 %v2583
    %v5344 = vpop.f32.mrb[0].mxu0
    %v5345 = vadd.f32 0.0, %v5344
    %v5346 = vpop.f32.mrb[0].mxu0
    %v5347 = vpop.f32.mrb[0].mxu0
    %v5348 = vadd.f32 0.0, %v5347
    %v5349 = vpop.f32.mrb[0].mxu0
    %5350 = vmatprep.mubr.bf16.mxu0 0
    %5351 = vmatmul.mubr.bf16.gmra.mrb[0].mxu0 %v2586
    %v5352 = vpop.f32.mrb[0].mxu0
    %v5353 = vadd.f32 0.0, %v5352
    %v5354 = vpop.f32.mrb[0].mxu0
    %v5355 = vpop.f32.mrb[0].mxu0
    %v5356 = vadd.f32 0.0, %v5355
    %v5357 = vpop.f32.mrb[0].mxu0
    %5358 = vmatprep.mubr.bf16.mxu0 0
    %5359 = vmatmul.mubr.bf16.gmra.mrb[0].mxu0 %v2589
    %v5360 = vpop.f32.mrb[0].mxu0
    %v5361 = vadd.f32 0.0, %v5360
    %v5362 = vpop.f32.mrb[0].mxu0
    %v5363 = vpop.f32.mrb[0].mxu0
    %v5364 = vadd.f32 0.0, %v5363
    %v5365 = vpop.f32.mrb[0].mxu0
    %5366 = vmatprep.mubr.bf16.mxu0 0
    %5367 = vmatmul.mubr.bf16.gmra.mrb[0].mxu0 %v2592
    %v5368 = vpop.f32.mrb[0].mxu0
    %v5369 = vadd.f32 0.0, %v5368
    %v5370 = vpop.f32.mrb[0].mxu0
    %v5371 = vpop.f32.mrb[0].mxu0
    %v5372 = vadd.f32 0.0, %v5371
    %v5373 = vpop.f32.mrb[0].mxu0
    %5374 = vmatprep.mubr.bf16.mxu0 0
    %5375 = vmatmul.mubr.bf16.gmra.mrb[0].mxu0 %v2595
    %v5376 = vpop.f32.mrb[0].mxu0
    %v5377 = vadd.f32 0.0, %v5376
    %v5378 = vpop.f32.mrb[0].mxu0
    %v5379 = vpop.f32.mrb[0].mxu0
    %v5380 = vadd.f32 0.0, %v5379
    %v5381 = vpop.f32.mrb[0].mxu0
    %5382 = vmatprep.mubr.bf16.mxu0 0
    %5383 = vmatmul.mubr.bf16.gmra.mrb[0].mxu0 %v2598
    %v5384 = vpop.f32.mrb[0].mxu0
    %v5385 = vadd.f32 0.0, %v5384
    %v5386 = vpop.f32.mrb[0].mxu0
    %v5387 = vpop.f32.mrb[0].mxu0
    %v5388 = vadd.f32 0.0, %v5387
    %v5389 = vpop.f32.mrb[0].mxu0
    %5390 = vmatprep.mubr.bf16.mxu0 0
    %5391 = vmatmul.mubr.bf16.gmra.mrb[0].mxu0 %v2601
    %v5392 = vpop.f32.mrb[0].mxu0
    %v5393 = vadd.f32 0.0, %v5392
    %v5394 = vpop.f32.mrb[0].mxu0
    %v5395 = vpop.f32.mrb[0].mxu0
    %v5396 = vadd.f32 0.0, %v5395
    %v5397 = vpop.f32.mrb[0].mxu0
    %5398 = vmatprep.mubr.bf16.mxu0 0
    %5399 = vmatmul.mubr.bf16.gmra.mrb[0].mxu0 %v2604
    %v5400 = vpop.f32.mrb[0].mxu0
    %v5401 = vadd.f32 0.0, %v5400
    %v5402 = vpop.f32.mrb[0].mxu0
    %v5403 = vpop.f32.mrb[0].mxu0
    %v5404 = vadd.f32 0.0, %v5403
    %v5405 = vpop.f32.mrb[0].mxu0
    %5406 = vmatprep.mubr.bf16.mxu0 0
    %5407 = vmatmul.mubr.bf16.gmra.mrb[0].mxu0 %v2607
    %v5408 = vpop.f32.mrb[0].mxu0
    %v5409 = vadd.f32 0.0, %v5408
    %v5410 = vpop.f32.mrb[0].mxu0
    %v5411 = vpop.f32.mrb[0].mxu0
    %v5412 = vadd.f32 0.0, %v5411
    %v5413 = vpop.f32.mrb[0].mxu0
    %5414 = vmatprep.mubr.bf16.mxu0 0
    %5415 = vmatmul.mubr.bf16.gmra.mrb[0].mxu0 %v2610
    %v5416 = vpop.f32.mrb[0].mxu0
    %v5417 = vadd.f32 0.0, %v5416
    %v5418 = vpop.f32.mrb[0].mxu0
    %v5419 = vpop.f32.mrb[0].mxu0
    %v5420 = vadd.f32 0.0, %v5419
    %v5421 = vpop.f32.mrb[0].mxu0
    %5422 = vmatprep.mubr.bf16.mxu0 0
    %5423 = vmatmul.mubr.bf16.gmra.mrb[0].mxu0 %v2613
    %v5424 = vpop.f32.mrb[0].mxu0
    %v5425 = vadd.f32 0.0, %v5424
    %v5426 = vpop.f32.mrb[0].mxu0
    %v5427 = vpop.f32.mrb[0].mxu0
    %v5428 = vadd.f32 0.0, %v5427
    %v5429 = vpop.f32.mrb[0].mxu0
    %5430 = vmatprep.mubr.bf16.mxu0 0
    %5431 = vmatmul.mubr.bf16.gmra.mrb[0].mxu0 %v2616
    %v5432 = vpop.f32.mrb[0].mxu0
    %v5433 = vadd.f32 0.0, %v5432
    %v5434 = vpop.f32.mrb[0].mxu0
    %v5435 = vpop.f32.mrb[0].mxu0
    %v5436 = vadd.f32 0.0, %v5435
    %v5437 = vpop.f32.mrb[0].mxu0
    %5438 = vmatprep.mubr.bf16.mxu0 0
    %5439 = vmatmul.mubr.bf16.gmra.mrb[0].mxu0 %v2619
    %v5440 = vpop.f32.mrb[0].mxu0
    %v5441 = vadd.f32 0.0, %v5440
    %v5442 = vpop.f32.mrb[0].mxu0
    %v5443 = vpop.f32.mrb[0].mxu0
    %v5444 = vadd.f32 0.0, %v5443
    %v5445 = vpop.f32.mrb[0].mxu0
    %5446 = vmatprep.mubr.bf16.mxu0 0
    %5447 = vmatmul.mubr.bf16.gmra.mrb[0].mxu0 %v2622
    %v5448 = vpop.f32.mrb[0].mxu0
    %v5449 = vadd.f32 0.0, %v5448
    %v5450 = vpop.f32.mrb[0].mxu0
    %v5451 = vpop.f32.mrb[0].mxu0
    %v5452 = vadd.f32 0.0, %v5451
    %v5453 = vpop.f32.mrb[0].mxu0
    %5454 = vmatprep.mubr.bf16.mxu0 0
    %5455 = vmatmul.mubr.bf16.gmra.mrb[0].mxu0 %v3985
    %v5456 = vpop.f32.mrb[0].mxu0
    %v5457 = vadd.f32 0.0, %v5456
    %v5458 = vpop.f32.mrb[0].mxu0
    %v5459 = vpop.f32.mrb[0].mxu0
    %v5460 = vadd.f32 0.0, %v5459
    %v5461 = vpop.f32.mrb[0].mxu0
    %5462 = vmatprep.mubr.bf16.mxu0 0
    %5463 = vmatmul.mubr.bf16.gmra.mrb[0].mxu0 %v2577
    %v5464 = vpop.f32.mrb[0].mxu0
    %v5465 = vadd.f32 0.0, %v5464
    %v5466 = vpop.f32.mrb[0].mxu0
    %v5467 = vpop.f32.mrb[0].mxu0
    %v5468 = vadd.f32 0.0, %v5467
    %v5469 = vpop.f32.mrb[0].mxu0
    %5470 = vmatprep.mubr.bf16.mxu0 0
    %5471 = vmatmul.mubr.bf16.gmra.mrb[0].mxu0 %v2628
    %v5472 = vpop.f32.mrb[0].mxu0
    %v5473 = vadd.f32 0.0, %v5472
    %v5474 = vpop.f32.mrb[0].mxu0
    %v5475 = vpop.f32.mrb[0].mxu0
    %v5476 = vadd.f32 0.0, %v5475
    %v5477 = vpop.f32.mrb[0].mxu0
    %5478 = vmatprep.mubr.bf16.mxu0 0
    %5479 = vmatmul.mubr.bf16.gmra.mrb[0].mxu0 %v2631
    %v5480 = vpop.f32.mrb[0].mxu0
    %v5481 = vadd.f32 0.0, %v5480
    %v5482 = vpop.f32.mrb[0].mxu0
    %v5483 = vpop.f32.mrb[0].mxu0
    %v5484 = vadd.f32 0.0, %v5483
    %v5485 = vpop.f32.mrb[0].mxu0
    %5486 = vmatprep.mubr.bf16.mxu0 0
    %5487 = vmatmul.mubr.bf16.gmra.mrb[0].mxu0 %v2634
    %v5488 = vpop.f32.mrb[0].mxu0
    %v5489 = vadd.f32 0.0, %v5488
    %v5490 = vpop.f32.mrb[0].mxu0
    %v5491 = vpop.f32.mrb[0].mxu0
    %v5492 = vadd.f32 0.0, %v5491
    %v5493 = vpop.f32.mrb[0].mxu0
    %5494 = vmatprep.mubr.bf16.mxu0 0
    %5495 = vmatmul.mubr.bf16.gmra.mrb[0].mxu0 %v2637
    %v5496 = vpop.f32.mrb[0].mxu0
    %v5497 = vadd.f32 0.0, %v5496
    %v5498 = vpop.f32.mrb[0].mxu0
    %v5499 = vpop.f32.mrb[0].mxu0
    %v5500 = vadd.f32 0.0, %v5499
    %v5501 = vpop.f32.mrb[0].mxu0
    %5502 = vmatprep.mubr.bf16.mxu0 0
    %5503 = vmatmul.mubr.bf16.gmra.mrb[0].mxu0 %v2640
    %v5504 = vpop.f32.mrb[0].mxu0
    %v5505 = vadd.f32 0.0, %v5504
    %v5506 = vpop.f32.mrb[0].mxu0
    %v5507 = vpop.f32.mrb[0].mxu0
    %v5508 = vadd.f32 0.0, %v5507
    %v5509 = vpop.f32.mrb[0].mxu0
    %5510 = vmatprep.mubr.bf16.mxu0 0
    %5511 = vmatmul.mubr.bf16.gmra.mrb[0].mxu0 %v2643
    %v5512 = vpop.f32.mrb[0].mxu0
    %v5513 = vadd.f32 0.0, %v5512
    %v5514 = vpop.f32.mrb[0].mxu0
    %v5515 = vpop.f32.mrb[0].mxu0
    %v5516 = vadd.f32 0.0, %v5515
    %v5517 = vpop.f32.mrb[0].mxu0
    %5518 = vmatprep.mubr.bf16.mxu0 0
    %5519 = vmatmul.mubr.bf16.gmra.mrb[0].mxu0 %v2646
    %v5520 = vpop.f32.mrb[0].mxu0
    %v5521 = vadd.f32 0.0, %v5520
    %v5522 = vpop.f32.mrb[0].mxu0
    %v5523 = vpop.f32.mrb[0].mxu0
    %v5524 = vadd.f32 0.0, %v5523
    %v5525 = vpop.f32.mrb[0].mxu0
    %5526 = vmatprep.mubr.bf16.mxu0 0
    %5527 = vmatmul.mubr.bf16.gmra.mrb[0].mxu0 %v2649
    %v5528 = vpop.f32.mrb[0].mxu0
    %v5529 = vadd.f32 0.0, %v5528
    %v5530 = vpop.f32.mrb[0].mxu0
    %v5531 = vpop.f32.mrb[0].mxu0
    %v5532 = vadd.f32 0.0, %v5531
    %v5533 = vpop.f32.mrb[0].mxu0
    %5534 = vmatprep.mubr.bf16.mxu0 0
    %5535 = vmatmul.mubr.bf16.gmra.mrb[0].mxu0 %v2652
    %v5536 = vpop.f32.mrb[0].mxu0
    %v5537 = vadd.f32 0.0, %v5536
    %v5538 = vpop.f32.mrb[0].mxu0
    %v5539 = vpop.f32.mrb[0].mxu0
    %v5540 = vadd.f32 0.0, %v5539
    %v5541 = vpop.f32.mrb[0].mxu0
    %5542 = vmatprep.mubr.bf16.mxu0 0
    %5543 = vmatmul.mubr.bf16.gmra.mrb[0].mxu0 %v2655
    %v5544 = vpop.f32.mrb[0].mxu0
    %v5545 = vadd.f32 0.0, %v5544
    %v5546 = vpop.f32.mrb[0].mxu0
    %v5547 = vpop.f32.mrb[0].mxu0
    %v5548 = vadd.f32 0.0, %v5547
    %v5549 = vpop.f32.mrb[0].mxu0
    %5550 = vmatprep.mubr.bf16.mxu0 0
    %5551 = vmatmul.mubr.bf16.gmra.mrb[0].mxu0 %v2658
    %v5552 = vpop.f32.mrb[0].mxu0
    %v5553 = vadd.f32 0.0, %v5552
    %v5554 = vpop.f32.mrb[0].mxu0
    %v5555 = vpop.f32.mrb[0].mxu0
    %v5556 = vadd.f32 0.0, %v5555
    %v5557 = vpop.f32.mrb[0].mxu0
    %5558 = vmatprep.mubr.bf16.mxu0 0
    %5559 = vmatmul.mubr.bf16.gmra.mrb[0].mxu0 %v2661
    %v5560 = vpop.f32.mrb[0].mxu0
    %v5561 = vadd.f32 0.0, %v5560
    %v5562 = vpop.f32.mrb[0].mxu0
    %v5563 = vpop.f32.mrb[0].mxu0
    %v5564 = vadd.f32 0.0, %v5563
    %v5565 = vpop.f32.mrb[0].mxu0
    %5566 = vmatprep.mubr.bf16.mxu0 0
    %5567 = vmatmul.mubr.bf16.gmra.mrb[0].mxu0 %v2664
    %v5568 = vpop.f32.mrb[0].mxu0
    %v5569 = vadd.f32 0.0, %v5568
    %v5570 = vpop.f32.mrb[0].mxu0
    %v5571 = vpop.f32.mrb[0].mxu0
    %v5572 = vadd.f32 0.0, %v5571
    %v5573 = vpop.f32.mrb[0].mxu0
    %5574 = vmatprep.mubr.bf16.mxu0 0
    %5575 = vmatmul.mubr.bf16.gmra.mrb[0].mxu0 %v2667
    %v5576 = vpop.f32.mrb[0].mxu0
    %v5577 = vadd.f32 0.0, %v5576
    %v5578 = vpop.f32.mrb[0].mxu0
    %v5579 = vpop.f32.mrb[0].mxu0
    %v5580 = vadd.f32 0.0, %v5579
    %v5581 = vpop.f32.mrb[0].mxu0
    %5582 = vmatprep.mubr.bf16.mxu0 0
    %5583 = vmatmul.mubr.bf16.gmra.mrb[0].mxu0 %v3988
    %v5584 = vpop.f32.mrb[0].mxu0
    %v5585 = vadd.f32 0.0, %v5584
    %v5586 = vpop.f32.mrb[0].mxu0
    %v5587 = vpop.f32.mrb[0].mxu0
    %v5588 = vadd.f32 0.0, %v5587
    %v5589 = vpop.f32.mrb[0].mxu0
    %5590 = vmatprep.mubr.bf16.mxu0 0
    %5591 = vmatmul.mubr.bf16.gmra.mrb[0].mxu0 %v2577
    %v5592 = vpop.f32.mrb[0].mxu0
    %v5593 = vadd.f32 0.0, %v5592
    %v5594 = vpop.f32.mrb[0].mxu0
    %v5595 = vpop.f32.mrb[0].mxu0
    %v5596 = vadd.f32 0.0, %v5595
    %v5597 = vpop.f32.mrb[0].mxu0
    %5598 = vdwg.mxu0
    %v5599 = vadd.f32 %v5181, %v5345
    %v5600 = vadd.f32 %v5182, %v5348
    %v5601 = vadd.f32 %v5183, %v5353
    %v5602 = vadd.f32 %v5184, %v5356
    %v5603 = vadd.f32 %v5185, %v5361
    %v5604 = vadd.f32 %v5186, %v5364
    %v5605 = vadd.f32 %v5187, %v5369
    %v5606 = vadd.f32 %v5188, %v5372
    %v5607 = vadd.f32 %v5189, %v5377
    %v5608 = vadd.f32 %v5190, %v5380
    %v5609 = vadd.f32 %v5191, %v5385
    %v5610 = vadd.f32 %v5192, %v5388
    %v5611 = vadd.f32 %v5193, %v5393
    %v5612 = vadd.f32 %v5194, %v5396
    %v5613 = vadd.f32 %v5195, %v5401
    %v5614 = vadd.f32 %v5196, %v5404
    %v5615 = vadd.f32 %v5197, %v5409
    %v5616 = vadd.f32 %v5198, %v5412
    %v5617 = vadd.f32 %v5199, %v5417
    %v5618 = vadd.f32 %v5200, %v5420
    %v5619 = vadd.f32 %v5201, %v5425
    %v5620 = vadd.f32 %v5202, %v5428
    %v5621 = vadd.f32 %v5203, %v5433
    %v5622 = vadd.f32 %v5204, %v5436
    %v5623 = vadd.f32 %v5205, %v5441
    %v5624 = vadd.f32 %v5206, %v5444
    %v5625 = vadd.f32 %v5207, %v5449
    %v5626 = vadd.f32 %v5208, %v5452
    %v5627 = vadd.f32 %v5209, %v5457
    %v5628 = vadd.f32 %v5210, %v5460
    %v5629 = vadd.f32 %v5211, %v5465
    %v5630 = vadd.f32 %v5212, %v5468
    %v5631 = vadd.f32 %v5213, %v5473
    %v5632 = vadd.f32 %v5214, %v5476
    %v5633 = vadd.f32 %v5215, %v5481
    %v5634 = vadd.f32 %v5216, %v5484
    %v5635 = vadd.f32 %v5217, %v5489
    %v5636 = vadd.f32 %v5218, %v5492
    %v5637 = vadd.f32 %v5219, %v5497
    %v5638 = vadd.f32 %v5220, %v5500
    %v5639 = vadd.f32 %v5221, %v5505
    %v5640 = vadd.f32 %v5222, %v5508
    %v5641 = vadd.f32 %v5223, %v5513
    %v5642 = vadd.f32 %v5224, %v5516
    %v5643 = vadd.f32 %v5225, %v5521
    %v5644 = vadd.f32 %v5226, %v5524
    %v5645 = vadd.f32 %v5227, %v5529
    %v5646 = vadd.f32 %v5228, %v5532
    %v5647 = vadd.f32 %v5229, %v5537
    %v5648 = vadd.f32 %v5230, %v5540
    %v5649 = vadd.f32 %v5231, %v5545
    %v5650 = vadd.f32 %v5232, %v5548
    %v5651 = vadd.f32 %v5233, %v5553
    %v5652 = vadd.f32 %v5234, %v5556
    %v5653 = vadd.f32 %v5235, %v5561
    %v5654 = vadd.f32 %v5236, %v5564
    %v5655 = vadd.f32 %v5237, %v5569
    %v5656 = vadd.f32 %v5238, %v5572
    %v5657 = vadd.f32 %v5239, %v5577
    %v5658 = vadd.f32 %v5240, %v5580
    %v5659 = vadd.f32 %v5241, %v5585
    %v5660 = vadd.f32 %v5242, %v5588
    %v5661 = vadd.f32 %v5243, %v5593
    %v5662 = vadd.f32 %v5244, %v5596
    %v5663 = vmul.f32 %v5599, 0.2
    %v5664 = vmul.f32 %v5600, 0.2
    %v5665 = vmul.f32 %v5601, 0.2
    %v5666 = vmul.f32 %v5602, 0.2
    %v5667 = vmul.f32 %v5603, 0.2
    %v5668 = vmul.f32 %v5604, 0.2
    %v5669 = vmul.f32 %v5605, 0.2
    %v5670 = vmul.f32 %v5606, 0.2
    %v5671 = vmul.f32 %v5607, 0.2
    %v5672 = vmul.f32 %v5608, 0.2
    %v5673 = vmul.f32 %v5609, 0.2
    %v5674 = vmul.f32 %v5610, 0.2
    %v5675 = vmul.f32 %v5611, 0.2
    %v5676 = vmul.f32 %v5612, 0.2
    %v5677 = vmul.f32 %v5613, 0.2
    %v5678 = vmul.f32 %v5614, 0.2
    %v5679 = vmul.f32 %v5615, 0.2
    %v5680 = vmul.f32 %v5616, 0.2
    %v5681 = vmul.f32 %v5617, 0.2
    %v5682 = vmul.f32 %v5618, 0.2
    %v5683 = vmul.f32 %v5619, 0.2
    %v5684 = vmul.f32 %v5620, 0.2
    %v5685 = vmul.f32 %v5621, 0.2
    %v5686 = vmul.f32 %v5622, 0.2
    %v5687 = vmul.f32 %v5623, 0.2
    %v5688 = vmul.f32 %v5624, 0.2
    %v5689 = vmul.f32 %v5625, 0.2
    %v5690 = vmul.f32 %v5626, 0.2
    %v5691 = vmul.f32 %v5627, 0.2
    %v5692 = vmul.f32 %v5628, 0.2
    %v5693 = vmul.f32 %v5629, 0.2
    %v5694 = vmul.f32 %v5630, 0.2
    %v5695 = vmul.f32 %v5631, 0.2
    %v5696 = vmul.f32 %v5632, 0.2
    %v5697 = vmul.f32 %v5633, 0.2
    %v5698 = vmul.f32 %v5634, 0.2
    %v5699 = vmul.f32 %v5635, 0.2
    %v5700 = vmul.f32 %v5636, 0.2
    %v5701 = vmul.f32 %v5637, 0.2
    %v5702 = vmul.f32 %v5638, 0.2
    %v5703 = vmul.f32 %v5639, 0.2
    %v5704 = vmul.f32 %v5640, 0.2
    %v5705 = vmul.f32 %v5641, 0.2
    %v5706 = vmul.f32 %v5642, 0.2
    %v5707 = vmul.f32 %v5643, 0.2
    %v5708 = vmul.f32 %v5644, 0.2
    %v5709 = vmul.f32 %v5645, 0.2
    %v5710 = vmul.f32 %v5646, 0.2
    %v5711 = vmul.f32 %v5647, 0.2
    %v5712 = vmul.f32 %v5648, 0.2
    %v5713 = vmul.f32 %v5649, 0.2
    %v5714 = vmul.f32 %v5650, 0.2
    %v5715 = vmul.f32 %v5651, 0.2
    %v5716 = vmul.f32 %v5652, 0.2
    %v5717 = vmul.f32 %v5653, 0.2
    %v5718 = vmul.f32 %v5654, 0.2
    %v5719 = vmul.f32 %v5655, 0.2
    %v5720 = vmul.f32 %v5656, 0.2
    %v5721 = vmul.f32 %v5657, 0.2
    %v5722 = vmul.f32 %v5658, 0.2
    %v5723 = vmul.f32 %v5659, 0.2
    %v5724 = vmul.f32 %v5660, 0.2
    %v5725 = vmul.f32 %v5661, 0.2
    %v5726 = vmul.f32 %v5662, 0.2
    %v5727 = vmax.f32 %v5599, %v5663
    %v5728 = vmax.f32 %v5600, %v5664
    %v5729 = vmax.f32 %v5601, %v5665
    %v5730 = vmax.f32 %v5602, %v5666
    %v5731 = vmax.f32 %v5603, %v5667
    %v5732 = vmax.f32 %v5604, %v5668
    %v5733 = vmax.f32 %v5605, %v5669
    %v5734 = vmax.f32 %v5606, %v5670
    %v5735 = vmax.f32 %v5607, %v5671
    %v5736 = vmax.f32 %v5608, %v5672
    %v5737 = vmax.f32 %v5609, %v5673
    %v5738 = vmax.f32 %v5610, %v5674
    %v5739 = vmax.f32 %v5611, %v5675
    %v5740 = vmax.f32 %v5612, %v5676
    %v5741 = vmax.f32 %v5613, %v5677
    %v5742 = vmax.f32 %v5614, %v5678
    %v5743 = vmax.f32 %v5615, %v5679
    %v5744 = vmax.f32 %v5616, %v5680
    %v5745 = vmax.f32 %v5617, %v5681
    %v5746 = vmax.f32 %v5618, %v5682
    %v5747 = vmax.f32 %v5619, %v5683
    %v5748 = vmax.f32 %v5620, %v5684
    %v5749 = vmax.f32 %v5621, %v5685
    %v5750 = vmax.f32 %v5622, %v5686
    %v5751 = vmax.f32 %v5623, %v5687
    %v5752 = vmax.f32 %v5624, %v5688
    %v5753 = vmax.f32 %v5625, %v5689
    %v5754 = vmax.f32 %v5626, %v5690
    %v5755 = vmax.f32 %v5627, %v5691
    %v5756 = vmax.f32 %v5628, %v5692
    %v5757 = vmax.f32 %v5629, %v5693
    %v5758 = vmax.f32 %v5630, %v5694
    %v5759 = vmax.f32 %v5631, %v5695
    %v5760 = vmax.f32 %v5632, %v5696
    %v5761 = vmax.f32 %v5633, %v5697
    %v5762 = vmax.f32 %v5634, %v5698
    %v5763 = vmax.f32 %v5635, %v5699
    %v5764 = vmax.f32 %v5636, %v5700
    %v5765 = vmax.f32 %v5637, %v5701
    %v5766 = vmax.f32 %v5638, %v5702
    %v5767 = vmax.f32 %v5639, %v5703
    %v5768 = vmax.f32 %v5640, %v5704
    %v5769 = vmax.f32 %v5641, %v5705
    %v5770 = vmax.f32 %v5642, %v5706
    %v5771 = vmax.f32 %v5643, %v5707
    %v5772 = vmax.f32 %v5644, %v5708
    %v5773 = vmax.f32 %v5645, %v5709
    %v5774 = vmax.f32 %v5646, %v5710
    %v5775 = vmax.f32 %v5647, %v5711
    %v5776 = vmax.f32 %v5648, %v5712
    %v5777 = vmax.f32 %v5649, %v5713
    %v5778 = vmax.f32 %v5650, %v5714
    %v5779 = vmax.f32 %v5651, %v5715
    %v5780 = vmax.f32 %v5652, %v5716
    %v5781 = vmax.f32 %v5653, %v5717
    %v5782 = vmax.f32 %v5654, %v5718
    %v5783 = vmax.f32 %v5655, %v5719
    %v5784 = vmax.f32 %v5656, %v5720
    %v5785 = vmax.f32 %v5657, %v5721
    %v5786 = vmax.f32 %v5658, %v5722
    %v5787 = vmax.f32 %v5659, %v5723
    %v5788 = vmax.f32 %v5660, %v5724
    %v5789 = vmax.f32 %v5661, %v5725
    %v5790 = vmax.f32 %v5662, %v5726
    %v5791 = vpack.c.bf16 %v5728, %v5727
    %v5792 = vpack.c.bf16 %v5730, %v5729
    %v5793 = vpack.c.bf16 %v5732, %v5731
    %v5794 = vpack.c.bf16 %v5734, %v5733
    %v5795 = vpack.c.bf16 %v5736, %v5735
    %v5796 = vpack.c.bf16 %v5738, %v5737
    %v5797 = vpack.c.bf16 %v5740, %v5739
    %v5798 = vpack.c.bf16 %v5742, %v5741
    %v5799 = vpack.c.bf16 %v5744, %v5743
    %v5800 = vpack.c.bf16 %v5746, %v5745
    %v5801 = vpack.c.bf16 %v5748, %v5747
    %v5802 = vpack.c.bf16 %v5750, %v5749
    %v5803 = vpack.c.bf16 %v5752, %v5751
    %v5804 = vpack.c.bf16 %v5754, %v5753
    %v5805 = vpack.c.bf16 %v5756, %v5755
    %v5806 = vpack.c.bf16 %v5758, %v5757
    %v5807 = vpack.c.bf16 %v5760, %v5759
    %v5808 = vpack.c.bf16 %v5762, %v5761
    %v5809 = vpack.c.bf16 %v5764, %v5763
    %v5810 = vpack.c.bf16 %v5766, %v5765
    %v5811 = vpack.c.bf16 %v5768, %v5767
    %v5812 = vpack.c.bf16 %v5770, %v5769
    %v5813 = vpack.c.bf16 %v5772, %v5771
    %v5814 = vpack.c.bf16 %v5774, %v5773
    %v5815 = vpack.c.bf16 %v5776, %v5775
    %v5816 = vpack.c.bf16 %v5778, %v5777
    %v5817 = vpack.c.bf16 %v5780, %v5779
    %v5818 = vpack.c.bf16 %v5782, %v5781
    %v5819 = vpack.c.bf16 %v5784, %v5783
    %v5820 = vpack.c.bf16 %v5786, %v5785
    %v5821 = vpack.c.bf16 %v5788, %v5787
    %v5822 = vpack.c.bf16 %v5790, %v5789
    %v5823 = vld [vmem:[#allocation8] sm:$0xff]
    %v5824 = vld [vmem:[#allocation8 + $0x8] sm:$0xff]
    %v5825 = vld [vmem:[#allocation8 + $0x10] sm:$0xff]
    %v5826 = vld [vmem:[#allocation8 + $0x18] sm:$0xff]
    %v5827 = vld [vmem:[#allocation8 + $0x20] sm:$0xff]
    %v5828 = vld [vmem:[#allocation8 + $0x28] sm:$0xff]
    %v5829 = vld [vmem:[#allocation8 + $0x30] sm:$0xff]
    %v5830 = vld [vmem:[#allocation8 + $0x38] sm:$0xff]
    %v5831 = vld [vmem:[#allocation8 + $0x40] sm:$0xff]
    %v5832 = vld [vmem:[#allocation8 + $0x48] sm:$0xff]
    %v5833 = vld [vmem:[#allocation8 + $0x50] sm:$0xff]
    %v5834 = vld [vmem:[#allocation8 + $0x58] sm:$0xff]
    %v5835 = vld [vmem:[#allocation8 + $0x60] sm:$0xff]
    %v5836 = vld [vmem:[#allocation8 + $0x68] sm:$0xff]
    %v5837 = vld [vmem:[#allocation8 + $0x70] sm:$0xff]
    %v5838 = vld [vmem:[#allocation8 + $0x78] sm:$0xff]
    %v5855 = vunpack.c.l.b16 %v5823
    %v5856 = vunpack.c.h.b16 %v5823
    %v5857 = vunpack.c.l.b16 %v5824
    %v5858 = vunpack.c.h.b16 %v5824
    %v5859 = vunpack.c.l.b16 %v5825
    %v5860 = vunpack.c.h.b16 %v5825
    %v5861 = vunpack.c.l.b16 %v5826
    %v5862 = vunpack.c.h.b16 %v5826
    %v5863 = vunpack.c.l.b16 %v5827
    %v5864 = vunpack.c.h.b16 %v5827
    %v5865 = vunpack.c.l.b16 %v5828
    %v5866 = vunpack.c.h.b16 %v5828
    %v5867 = vunpack.c.l.b16 %v5829
    %v5868 = vunpack.c.h.b16 %v5829
    %v5869 = vunpack.c.l.b16 %v5830
    %v5870 = vunpack.c.h.b16 %v5830
    %v5871 = vunpack.c.l.b16 %v5831
    %v5872 = vunpack.c.h.b16 %v5831
    %v5873 = vunpack.c.l.b16 %v5832
    %v5874 = vunpack.c.h.b16 %v5832
    %v5875 = vunpack.c.l.b16 %v5833
    %v5876 = vunpack.c.h.b16 %v5833
    %v5877 = vunpack.c.l.b16 %v5834
    %v5878 = vunpack.c.h.b16 %v5834
    %v5879 = vunpack.c.l.b16 %v5835
    %v5880 = vunpack.c.h.b16 %v5835
    %v5881 = vunpack.c.l.b16 %v5836
    %v5882 = vunpack.c.h.b16 %v5836
    %v5883 = vunpack.c.l.b16 %v5837
    %v5884 = vunpack.c.h.b16 %v5837
    %v5885 = vunpack.c.l.b16 %v5838
    %v5886 = vunpack.c.h.b16 %v5838
    %v5887 = vpack.c.b16 %v5857, %v5855
    %v5888 = vpack.c.b16 %v5858, %v5856
    %v5889 = vpack.c.b16 %v5861, %v5859
    %v5890 = vpack.c.b16 %v5862, %v5860
    %v5891 = vpack.c.b16 %v5865, %v5863
    %v5892 = vpack.c.b16 %v5866, %v5864
    %v5893 = vpack.c.b16 %v5869, %v5867
    %v5894 = vpack.c.b16 %v5870, %v5868
    %v5895 = vpack.c.b16 %v5873, %v5871
    %v5896 = vpack.c.b16 %v5874, %v5872
    %v5897 = vpack.c.b16 %v5877, %v5875
    %v5898 = vpack.c.b16 %v5878, %v5876
    %v5899 = vpack.c.b16 %v5881, %v5879
    %v5900 = vpack.c.b16 %v5882, %v5880
    %v5901 = vpack.c.b16 %v5885, %v5883
    %v5902 = vpack.c.b16 %v5886, %v5884
    %5919 = vmatprep.subr.bf16.mxu0 %v5888
    %5920 = vmatpush1.bf16.msra.mxu0 %v5887
    %5921 = vmatprep.subr.bf16.mxu0 %v5890
    %5922 = vmatpush1.bf16.msra.mxu0 %v5889
    %5923 = vmatprep.subr.bf16.mxu0 %v5892
    %5924 = vmatpush1.bf16.msra.mxu0 %v5891
    %5925 = vmatprep.subr.bf16.mxu0 %v5894
    %5926 = vmatpush1.bf16.msra.mxu0 %v5893
    %5927 = vmatprep.subr.bf16.mxu0 %v5896
    %5928 = vmatpush1.bf16.msra.mxu0 %v5895
    %5929 = vmatprep.subr.bf16.mxu0 %v5898
    %5930 = vmatpush1.bf16.msra.mxu0 %v5897
    %5931 = vmatprep.subr.bf16.mxu0 %v5900
    %5932 = vmatpush1.bf16.msra.mxu0 %v5899
    %5933 = vmatprep.subr.bf16.mxu0 %v5902
    %5934 = vmatpush1.bf16.msra.mxu0 %v5901
    %5935 = vmatprep.subr.bf16.mxu0 0
    %5936 = vmatpush1.bf16.msra.mxu0 0
    %5937 = vmatprep.subr.bf16.mxu0 0
    %5938 = vmatpush1.bf16.msra.mxu0 0
    %5939 = vmatprep.subr.bf16.mxu0 0
    %5940 = vmatpush1.bf16.msra.mxu0 0
    %5941 = vmatprep.subr.bf16.mxu0 0
    %5942 = vmatpush1.bf16.msra.mxu0 0
    %5943 = vmatprep.subr.bf16.mxu0 0
    %5944 = vmatpush1.bf16.msra.mxu0 0
    %5945 = vmatprep.subr.bf16.mxu0 0
    %5946 = vmatpush1.bf16.msra.mxu0 0
    %5947 = vmatprep.subr.bf16.mxu0 0
    %5948 = vmatpush1.bf16.msra.mxu0 0
    %5949 = vmatprep.subr.bf16.mxu0 0
    %5950 = vmatpush1.bf16.msra.mxu0 0
    %5951 = vmatprep.mubr.bf16.mxu0 0
    %5952 = vmatmul.mubr.bf16.gmra.mrb[0].mxu0 %v5791
    %v5953 = vpop.f32.mrb[0].mxu0
    %v5954 = vadd.f32 0.0, %v5953
    %v5955 = vpop.f32.mrb[0].mxu0
    %v5956 = vadd.f32 0.0, %v5955
    %v5957 = vpop.f32.mrb[0].mxu0
    %v5958 = vadd.f32 0.0, %v5957
    %v5959 = vpop.f32.mrb[0].mxu0
    %v5960 = vadd.f32 0.0, %v5959
    %5961 = vmatprep.mubr.bf16.mxu0 0
    %5962 = vmatmul.mubr.bf16.gmra.mrb[0].mxu0 %v5792
    %v5963 = vpop.f32.mrb[0].mxu0
    %v5964 = vadd.f32 0.0, %v5963
    %v5965 = vpop.f32.mrb[0].mxu0
    %v5966 = vadd.f32 0.0, %v5965
    %v5967 = vpop.f32.mrb[0].mxu0
    %v5968 = vadd.f32 0.0, %v5967
    %v5969 = vpop.f32.mrb[0].mxu0
    %v5970 = vadd.f32 0.0, %v5969
    %5971 = vmatprep.mubr.bf16.mxu0 0
    %5972 = vmatmul.mubr.bf16.gmra.mrb[0].mxu0 %v5793
    %v5973 = vpop.f32.mrb[0].mxu0
    %v5974 = vadd.f32 0.0, %v5973
    %v5975 = vpop.f32.mrb[0].mxu0
    %v5976 = vadd.f32 0.0, %v5975
    %v5977 = vpop.f32.mrb[0].mxu0
    %v5978 = vadd.f32 0.0, %v5977
    %v5979 = vpop.f32.mrb[0].mxu0
    %v5980 = vadd.f32 0.0, %v5979
    %5981 = vmatprep.mubr.bf16.mxu0 0
    %5982 = vmatmul.mubr.bf16.gmra.mrb[0].mxu0 %v5794
    %v5983 = vpop.f32.mrb[0].mxu0
    %v5984 = vadd.f32 0.0, %v5983
    %v5985 = vpop.f32.mrb[0].mxu0
    %v5986 = vadd.f32 0.0, %v5985
    %v5987 = vpop.f32.mrb[0].mxu0
    %v5988 = vadd.f32 0.0, %v5987
    %v5989 = vpop.f32.mrb[0].mxu0
    %v5990 = vadd.f32 0.0, %v5989
    %5991 = vmatprep.mubr.bf16.mxu0 0
    %5992 = vmatmul.mubr.bf16.gmra.mrb[0].mxu0 %v5795
    %v5993 = vpop.f32.mrb[0].mxu0
    %v5994 = vadd.f32 0.0, %v5993
    %v5995 = vpop.f32.mrb[0].mxu0
    %v5996 = vadd.f32 0.0, %v5995
    %v5997 = vpop.f32.mrb[0].mxu0
    %v5998 = vadd.f32 0.0, %v5997
    %v5999 = vpop.f32.mrb[0].mxu0
    %v6000 = vadd.f32 0.0, %v5999
    %6001 = vmatprep.mubr.bf16.mxu0 0
    %6002 = vmatmul.mubr.bf16.gmra.mrb[0].mxu0 %v5796
    %v6003 = vpop.f32.mrb[0].mxu0
    %v6004 = vadd.f32 0.0, %v6003
    %v6005 = vpop.f32.mrb[0].mxu0
    %v6006 = vadd.f32 0.0, %v6005
    %v6007 = vpop.f32.mrb[0].mxu0
    %v6008 = vadd.f32 0.0, %v6007
    %v6009 = vpop.f32.mrb[0].mxu0
    %v6010 = vadd.f32 0.0, %v6009
    %6011 = vmatprep.mubr.bf16.mxu0 0
    %6012 = vmatmul.mubr.bf16.gmra.mrb[0].mxu0 %v5797
    %v6013 = vpop.f32.mrb[0].mxu0
    %v6014 = vadd.f32 0.0, %v6013
    %v6015 = vpop.f32.mrb[0].mxu0
    %v6016 = vadd.f32 0.0, %v6015
    %v6017 = vpop.f32.mrb[0].mxu0
    %v6018 = vadd.f32 0.0, %v6017
    %v6019 = vpop.f32.mrb[0].mxu0
    %v6020 = vadd.f32 0.0, %v6019
    %6021 = vmatprep.mubr.bf16.mxu0 0
    %6022 = vmatmul.mubr.bf16.gmra.mrb[0].mxu0 %v5798
    %v6023 = vpop.f32.mrb[0].mxu0
    %v6024 = vadd.f32 0.0, %v6023
    %v6025 = vpop.f32.mrb[0].mxu0
    %v6026 = vadd.f32 0.0, %v6025
    %v6027 = vpop.f32.mrb[0].mxu0
    %v6028 = vadd.f32 0.0, %v6027
    %v6029 = vpop.f32.mrb[0].mxu0
    %v6030 = vadd.f32 0.0, %v6029
    %6031 = vmatprep.mubr.bf16.mxu0 0
    %6032 = vmatmul.mubr.bf16.gmra.mrb[0].mxu0 %v5799
    %v6033 = vpop.f32.mrb[0].mxu0
    %v6034 = vadd.f32 0.0, %v6033
    %v6035 = vpop.f32.mrb[0].mxu0
    %v6036 = vadd.f32 0.0, %v6035
    %v6037 = vpop.f32.mrb[0].mxu0
    %v6038 = vadd.f32 0.0, %v6037
    %v6039 = vpop.f32.mrb[0].mxu0
    %v6040 = vadd.f32 0.0, %v6039
    %6041 = vmatprep.mubr.bf16.mxu0 0
    %6042 = vmatmul.mubr.bf16.gmra.mrb[0].mxu0 %v5800
    %v6043 = vpop.f32.mrb[0].mxu0
    %v6044 = vadd.f32 0.0, %v6043
    %v6045 = vpop.f32.mrb[0].mxu0
    %v6046 = vadd.f32 0.0, %v6045
    %v6047 = vpop.f32.mrb[0].mxu0
    %v6048 = vadd.f32 0.0, %v6047
    %v6049 = vpop.f32.mrb[0].mxu0
    %v6050 = vadd.f32 0.0, %v6049
    %6051 = vmatprep.mubr.bf16.mxu0 0
    %6052 = vmatmul.mubr.bf16.gmra.mrb[0].mxu0 %v5801
    %v6053 = vpop.f32.mrb[0].mxu0
    %v6054 = vadd.f32 0.0, %v6053
    %v6055 = vpop.f32.mrb[0].mxu0
    %v6056 = vadd.f32 0.0, %v6055
    %v6057 = vpop.f32.mrb[0].mxu0
    %v6058 = vadd.f32 0.0, %v6057
    %v6059 = vpop.f32.mrb[0].mxu0
    %v6060 = vadd.f32 0.0, %v6059
    %6061 = vmatprep.mubr.bf16.mxu0 0
    %6062 = vmatmul.mubr.bf16.gmra.mrb[0].mxu0 %v5802
    %v6063 = vpop.f32.mrb[0].mxu0
    %v6064 = vadd.f32 0.0, %v6063
    %v6065 = vpop.f32.mrb[0].mxu0
    %v6066 = vadd.f32 0.0, %v6065
    %v6067 = vpop.f32.mrb[0].mxu0
    %v6068 = vadd.f32 0.0, %v6067
    %v6069 = vpop.f32.mrb[0].mxu0
    %v6070 = vadd.f32 0.0, %v6069
    %6071 = vmatprep.mubr.bf16.mxu0 0
    %6072 = vmatmul.mubr.bf16.gmra.mrb[0].mxu0 %v5803
    %v6073 = vpop.f32.mrb[0].mxu0
    %v6074 = vadd.f32 0.0, %v6073
    %v6075 = vpop.f32.mrb[0].mxu0
    %v6076 = vadd.f32 0.0, %v6075
    %v6077 = vpop.f32.mrb[0].mxu0
    %v6078 = vadd.f32 0.0, %v6077
    %v6079 = vpop.f32.mrb[0].mxu0
    %v6080 = vadd.f32 0.0, %v6079
    %6081 = vmatprep.mubr.bf16.mxu0 0
    %6082 = vmatmul.mubr.bf16.gmra.mrb[0].mxu0 %v5804
    %v6083 = vpop.f32.mrb[0].mxu0
    %v6084 = vadd.f32 0.0, %v6083
    %v6085 = vpop.f32.mrb[0].mxu0
    %v6086 = vadd.f32 0.0, %v6085
    %v6087 = vpop.f32.mrb[0].mxu0
    %v6088 = vadd.f32 0.0, %v6087
    %v6089 = vpop.f32.mrb[0].mxu0
    %v6090 = vadd.f32 0.0, %v6089
    %6091 = vmatprep.mubr.bf16.mxu0 0
    %6092 = vmatmul.mubr.bf16.gmra.mrb[0].mxu0 %v5805
    %v6093 = vpop.f32.mrb[0].mxu0
    %v6094 = vadd.f32 0.0, %v6093
    %v6095 = vpop.f32.mrb[0].mxu0
    %v6096 = vadd.f32 0.0, %v6095
    %v6097 = vpop.f32.mrb[0].mxu0
    %v6098 = vadd.f32 0.0, %v6097
    %v6099 = vpop.f32.mrb[0].mxu0
    %v6100 = vadd.f32 0.0, %v6099
    %6101 = vmatprep.mubr.bf16.mxu0 0
    %6102 = vmatmul.mubr.bf16.gmra.mrb[0].mxu0 %v5806
    %v6103 = vpop.f32.mrb[0].mxu0
    %v6104 = vadd.f32 0.0, %v6103
    %v6105 = vpop.f32.mrb[0].mxu0
    %v6106 = vadd.f32 0.0, %v6105
    %v6107 = vpop.f32.mrb[0].mxu0
    %v6108 = vadd.f32 0.0, %v6107
    %v6109 = vpop.f32.mrb[0].mxu0
    %v6110 = vadd.f32 0.0, %v6109
    %6111 = vmatprep.mubr.bf16.mxu0 0
    %6112 = vmatmul.mubr.bf16.gmra.mrb[0].mxu0 %v5807
    %v6113 = vpop.f32.mrb[0].mxu0
    %v6114 = vadd.f32 0.0, %v6113
    %v6115 = vpop.f32.mrb[0].mxu0
    %v6116 = vadd.f32 0.0, %v6115
    %v6117 = vpop.f32.mrb[0].mxu0
    %v6118 = vadd.f32 0.0, %v6117
    %v6119 = vpop.f32.mrb[0].mxu0
    %v6120 = vadd.f32 0.0, %v6119
    %6121 = vmatprep.mubr.bf16.mxu0 0
    %6122 = vmatmul.mubr.bf16.gmra.mrb[0].mxu0 %v5808
    %v6123 = vpop.f32.mrb[0].mxu0
    %v6124 = vadd.f32 0.0, %v6123
    %v6125 = vpop.f32.mrb[0].mxu0
    %v6126 = vadd.f32 0.0, %v6125
    %v6127 = vpop.f32.mrb[0].mxu0
    %v6128 = vadd.f32 0.0, %v6127
    %v6129 = vpop.f32.mrb[0].mxu0
    %v6130 = vadd.f32 0.0, %v6129
    %6131 = vmatprep.mubr.bf16.mxu0 0
    %6132 = vmatmul.mubr.bf16.gmra.mrb[0].mxu0 %v5809
    %v6133 = vpop.f32.mrb[0].mxu0
    %v6134 = vadd.f32 0.0, %v6133
    %v6135 = vpop.f32.mrb[0].mxu0
    %v6136 = vadd.f32 0.0, %v6135
    %v6137 = vpop.f32.mrb[0].mxu0
    %v6138 = vadd.f32 0.0, %v6137
    %v6139 = vpop.f32.mrb[0].mxu0
    %v6140 = vadd.f32 0.0, %v6139
    %6141 = vmatprep.mubr.bf16.mxu0 0
    %6142 = vmatmul.mubr.bf16.gmra.mrb[0].mxu0 %v5810
    %v6143 = vpop.f32.mrb[0].mxu0
    %v6144 = vadd.f32 0.0, %v6143
    %v6145 = vpop.f32.mrb[0].mxu0
    %v6146 = vadd.f32 0.0, %v6145
    %v6147 = vpop.f32.mrb[0].mxu0
    %v6148 = vadd.f32 0.0, %v6147
    %v6149 = vpop.f32.mrb[0].mxu0
    %v6150 = vadd.f32 0.0, %v6149
    %6151 = vmatprep.mubr.bf16.mxu0 0
    %6152 = vmatmul.mubr.bf16.gmra.mrb[0].mxu0 %v5811
    %v6153 = vpop.f32.mrb[0].mxu0
    %v6154 = vadd.f32 0.0, %v6153
    %v6155 = vpop.f32.mrb[0].mxu0
    %v6156 = vadd.f32 0.0, %v6155
    %v6157 = vpop.f32.mrb[0].mxu0
    %v6158 = vadd.f32 0.0, %v6157
    %v6159 = vpop.f32.mrb[0].mxu0
    %v6160 = vadd.f32 0.0, %v6159
    %6161 = vmatprep.mubr.bf16.mxu0 0
    %6162 = vmatmul.mubr.bf16.gmra.mrb[0].mxu0 %v5812
    %v6163 = vpop.f32.mrb[0].mxu0
    %v6164 = vadd.f32 0.0, %v6163
    %v6165 = vpop.f32.mrb[0].mxu0
    %v6166 = vadd.f32 0.0, %v6165
    %v6167 = vpop.f32.mrb[0].mxu0
    %v6168 = vadd.f32 0.0, %v6167
    %v6169 = vpop.f32.mrb[0].mxu0
    %v6170 = vadd.f32 0.0, %v6169
    %6171 = vmatprep.mubr.bf16.mxu0 0
    %6172 = vmatmul.mubr.bf16.gmra.mrb[0].mxu0 %v5813
    %v6173 = vpop.f32.mrb[0].mxu0
    %v6174 = vadd.f32 0.0, %v6173
    %v6175 = vpop.f32.mrb[0].mxu0
    %v6176 = vadd.f32 0.0, %v6175
    %v6177 = vpop.f32.mrb[0].mxu0
    %v6178 = vadd.f32 0.0, %v6177
    %v6179 = vpop.f32.mrb[0].mxu0
    %v6180 = vadd.f32 0.0, %v6179
    %6181 = vmatprep.mubr.bf16.mxu0 0
    %6182 = vmatmul.mubr.bf16.gmra.mrb[0].mxu0 %v5814
    %v6183 = vpop.f32.mrb[0].mxu0
    %v6184 = vadd.f32 0.0, %v6183
    %v6185 = vpop.f32.mrb[0].mxu0
    %v6186 = vadd.f32 0.0, %v6185
    %v6187 = vpop.f32.mrb[0].mxu0
    %v6188 = vadd.f32 0.0, %v6187
    %v6189 = vpop.f32.mrb[0].mxu0
    %v6190 = vadd.f32 0.0, %v6189
    %6191 = vmatprep.mubr.bf16.mxu0 0
    %6192 = vmatmul.mubr.bf16.gmra.mrb[0].mxu0 %v5815
    %v6193 = vpop.f32.mrb[0].mxu0
    %v6194 = vadd.f32 0.0, %v6193
    %v6195 = vpop.f32.mrb[0].mxu0
    %v6196 = vadd.f32 0.0, %v6195
    %v6197 = vpop.f32.mrb[0].mxu0
    %v6198 = vadd.f32 0.0, %v6197
    %v6199 = vpop.f32.mrb[0].mxu0
    %v6200 = vadd.f32 0.0, %v6199
    %6201 = vmatprep.mubr.bf16.mxu0 0
    %6202 = vmatmul.mubr.bf16.gmra.mrb[0].mxu0 %v5816
    %v6203 = vpop.f32.mrb[0].mxu0
    %v6204 = vadd.f32 0.0, %v6203
    %v6205 = vpop.f32.mrb[0].mxu0
    %v6206 = vadd.f32 0.0, %v6205
    %v6207 = vpop.f32.mrb[0].mxu0
    %v6208 = vadd.f32 0.0, %v6207
    %v6209 = vpop.f32.mrb[0].mxu0
    %v6210 = vadd.f32 0.0, %v6209
    %6211 = vmatprep.mubr.bf16.mxu0 0
    %6212 = vmatmul.mubr.bf16.gmra.mrb[0].mxu0 %v5817
    %v6213 = vpop.f32.mrb[0].mxu0
    %v6214 = vadd.f32 0.0, %v6213
    %v6215 = vpop.f32.mrb[0].mxu0
    %v6216 = vadd.f32 0.0, %v6215
    %v6217 = vpop.f32.mrb[0].mxu0
    %v6218 = vadd.f32 0.0, %v6217
    %v6219 = vpop.f32.mrb[0].mxu0
    %v6220 = vadd.f32 0.0, %v6219
    %6221 = vmatprep.mubr.bf16.mxu0 0
    %6222 = vmatmul.mubr.bf16.gmra.mrb[0].mxu0 %v5818
    %v6223 = vpop.f32.mrb[0].mxu0
    %v6224 = vadd.f32 0.0, %v6223
    %v6225 = vpop.f32.mrb[0].mxu0
    %v6226 = vadd.f32 0.0, %v6225
    %v6227 = vpop.f32.mrb[0].mxu0
    %v6228 = vadd.f32 0.0, %v6227
    %v6229 = vpop.f32.mrb[0].mxu0
    %v6230 = vadd.f32 0.0, %v6229
    %6231 = vmatprep.mubr.bf16.mxu0 0
    %6232 = vmatmul.mubr.bf16.gmra.mrb[0].mxu0 %v5819
    %v6233 = vpop.f32.mrb[0].mxu0
    %v6234 = vadd.f32 0.0, %v6233
    %v6235 = vpop.f32.mrb[0].mxu0
    %v6236 = vadd.f32 0.0, %v6235
    %v6237 = vpop.f32.mrb[0].mxu0
    %v6238 = vadd.f32 0.0, %v6237
    %v6239 = vpop.f32.mrb[0].mxu0
    %v6240 = vadd.f32 0.0, %v6239
    %6241 = vmatprep.mubr.bf16.mxu0 0
    %6242 = vmatmul.mubr.bf16.gmra.mrb[0].mxu0 %v5820
    %v6243 = vpop.f32.mrb[0].mxu0
    %v6244 = vadd.f32 0.0, %v6243
    %v6245 = vpop.f32.mrb[0].mxu0
    %v6246 = vadd.f32 0.0, %v6245
    %v6247 = vpop.f32.mrb[0].mxu0
    %v6248 = vadd.f32 0.0, %v6247
    %v6249 = vpop.f32.mrb[0].mxu0
    %v6250 = vadd.f32 0.0, %v6249
    %6251 = vmatprep.mubr.bf16.mxu0 0
    %6252 = vmatmul.mubr.bf16.gmra.mrb[0].mxu0 %v5821
    %v6253 = vpop.f32.mrb[0].mxu0
    %v6254 = vadd.f32 0.0, %v6253
    %v6255 = vpop.f32.mrb[0].mxu0
    %v6256 = vadd.f32 0.0, %v6255
    %v6257 = vpop.f32.mrb[0].mxu0
    %v6258 = vadd.f32 0.0, %v6257
    %v6259 = vpop.f32.mrb[0].mxu0
    %v6260 = vadd.f32 0.0, %v6259
    %6261 = vmatprep.mubr.bf16.mxu0 0
    %6262 = vmatmul.mubr.bf16.gmra.mrb[0].mxu0 %v5822
    %v6263 = vpop.f32.mrb[0].mxu0
    %v6264 = vadd.f32 0.0, %v6263
    %v6265 = vpop.f32.mrb[0].mxu0
    %v6266 = vadd.f32 0.0, %v6265
    %v6267 = vpop.f32.mrb[0].mxu0
    %v6268 = vadd.f32 0.0, %v6267
    %v6269 = vpop.f32.mrb[0].mxu0
    %v6270 = vadd.f32 0.0, %v6269
    %6271 = vdwg.mxu0
    %v6272 = vunpack.c.l.bf16 %v74
    %v6273 = vunpack.c.h.bf16 %v74
    %v6274 = vunpack.c.l.bf16 %v75
    %v6275 = vunpack.c.h.bf16 %v75
    %v6276 = vunpack.c.l.bf16 %v76
    %v6277 = vunpack.c.h.bf16 %v76
    %v6278 = vunpack.c.l.bf16 %v77
    %v6279 = vunpack.c.h.bf16 %v77
    %v6280 = vunpack.c.l.bf16 %v78
    %v6281 = vunpack.c.h.bf16 %v78
    %v6282 = vunpack.c.l.bf16 %v79
    %v6283 = vunpack.c.h.bf16 %v79
    %v6284 = vunpack.c.l.bf16 %v80
    %v6285 = vunpack.c.h.bf16 %v80
    %v6286 = vunpack.c.l.bf16 %v81
    %v6287 = vunpack.c.h.bf16 %v81
    %v6288 = vunpack.c.l.bf16 %v82
    %v6289 = vunpack.c.h.bf16 %v82
    %v6290 = vunpack.c.l.bf16 %v83
    %v6291 = vunpack.c.h.bf16 %v83
    %v6292 = vunpack.c.l.bf16 %v84
    %v6293 = vunpack.c.h.bf16 %v84
    %v6294 = vunpack.c.l.bf16 %v85
    %v6295 = vunpack.c.h.bf16 %v85
    %v6296 = vunpack.c.l.bf16 %v86
    %v6297 = vunpack.c.h.bf16 %v86
    %v6298 = vunpack.c.l.bf16 %v87
    %v6299 = vunpack.c.h.bf16 %v87
    %v6300 = vunpack.c.l.bf16 %v88
    %v6301 = vunpack.c.h.bf16 %v88
    %v6302 = vunpack.c.l.bf16 %v89
    %v6303 = vunpack.c.h.bf16 %v89
    %v6304 = vunpack.c.l.bf16 %v90
    %v6305 = vunpack.c.h.bf16 %v90
    %v6306 = vunpack.c.l.bf16 %v91
    %v6307 = vunpack.c.h.bf16 %v91
    %v6308 = vunpack.c.l.bf16 %v92
    %v6309 = vunpack.c.h.bf16 %v92
    %v6310 = vunpack.c.l.bf16 %v93
    %v6311 = vunpack.c.h.bf16 %v93
    %v6312 = vunpack.c.l.bf16 %v94
    %v6313 = vunpack.c.h.bf16 %v94
    %v6314 = vunpack.c.l.bf16 %v95
    %v6315 = vunpack.c.h.bf16 %v95
    %v6316 = vunpack.c.l.bf16 %v96
    %v6317 = vunpack.c.h.bf16 %v96
    %v6318 = vunpack.c.l.bf16 %v97
    %v6319 = vunpack.c.h.bf16 %v97
    %v6320 = vunpack.c.l.bf16 %v98
    %v6321 = vunpack.c.h.bf16 %v98
    %v6322 = vunpack.c.l.bf16 %v99
    %v6323 = vunpack.c.h.bf16 %v99
    %v6324 = vunpack.c.l.bf16 %v100
    %v6325 = vunpack.c.h.bf16 %v100
    %v6326 = vunpack.c.l.bf16 %v101
    %v6327 = vunpack.c.h.bf16 %v101
    %v6328 = vunpack.c.l.bf16 %v102
    %v6329 = vunpack.c.h.bf16 %v102
    %v6330 = vunpack.c.l.bf16 %v103
    %v6331 = vunpack.c.h.bf16 %v103
    %v6332 = vunpack.c.l.bf16 %v104
    %v6333 = vunpack.c.h.bf16 %v104
    %v6334 = vunpack.c.l.bf16 %v105
    %v6335 = vunpack.c.h.bf16 %v105
    %v6336 = vunpack.c.l.bf16 %v106
    %v6337 = vunpack.c.h.bf16 %v106
    %v6338 = vunpack.c.l.bf16 %v107
    %v6339 = vunpack.c.h.bf16 %v107
    %v6340 = vunpack.c.l.bf16 %v108
    %v6341 = vunpack.c.h.bf16 %v108
    %v6342 = vunpack.c.l.bf16 %v109
    %v6343 = vunpack.c.h.bf16 %v109
    %v6344 = vunpack.c.l.bf16 %v110
    %v6345 = vunpack.c.h.bf16 %v110
    %v6346 = vunpack.c.l.bf16 %v111
    %v6347 = vunpack.c.h.bf16 %v111
    %v6348 = vunpack.c.l.bf16 %v112
    %v6349 = vunpack.c.h.bf16 %v112
    %v6350 = vunpack.c.l.bf16 %v113
    %v6351 = vunpack.c.h.bf16 %v113
    %v6352 = vunpack.c.l.bf16 %v114
    %v6353 = vunpack.c.h.bf16 %v114
    %v6354 = vunpack.c.l.bf16 %v115
    %v6355 = vunpack.c.h.bf16 %v115
    %v6356 = vunpack.c.l.bf16 %v116
    %v6357 = vunpack.c.h.bf16 %v116
    %v6358 = vunpack.c.l.bf16 %v117
    %v6359 = vunpack.c.h.bf16 %v117
    %v6360 = vunpack.c.l.bf16 %v118
    %v6361 = vunpack.c.h.bf16 %v118
    %v6362 = vunpack.c.l.bf16 %v119
    %v6363 = vunpack.c.h.bf16 %v119
    %v6364 = vunpack.c.l.bf16 %v120
    %v6365 = vunpack.c.h.bf16 %v120
    %v6366 = vunpack.c.l.bf16 %v121
    %v6367 = vunpack.c.h.bf16 %v121
    %v6368 = vunpack.c.l.bf16 %v122
    %v6369 = vunpack.c.h.bf16 %v122
    %v6370 = vunpack.c.l.bf16 %v123
    %v6371 = vunpack.c.h.bf16 %v123
    %v6372 = vunpack.c.l.bf16 %v124
    %v6373 = vunpack.c.h.bf16 %v124
    %v6374 = vunpack.c.l.bf16 %v125
    %v6375 = vunpack.c.h.bf16 %v125
    %v6376 = vunpack.c.l.bf16 %v126
    %v6377 = vunpack.c.h.bf16 %v126
    %v6378 = vunpack.c.l.bf16 %v127
    %v6379 = vunpack.c.h.bf16 %v127
    %v6380 = vunpack.c.l.bf16 %v128
    %v6381 = vunpack.c.h.bf16 %v128
    %v6382 = vunpack.c.l.bf16 %v129
    %v6383 = vunpack.c.h.bf16 %v129
    %v6384 = vunpack.c.l.bf16 %v130
    %v6385 = vunpack.c.h.bf16 %v130
    %v6386 = vunpack.c.l.bf16 %v131
    %v6387 = vunpack.c.h.bf16 %v131
    %v6388 = vunpack.c.l.bf16 %v132
    %v6389 = vunpack.c.h.bf16 %v132
    %v6390 = vunpack.c.l.bf16 %v133
    %v6391 = vunpack.c.h.bf16 %v133
    %v6392 = vunpack.c.l.bf16 %v134
    %v6393 = vunpack.c.h.bf16 %v134
    %v6394 = vunpack.c.l.bf16 %v135
    %v6395 = vunpack.c.h.bf16 %v135
    %v6396 = vunpack.c.l.bf16 %v136
    %v6397 = vunpack.c.h.bf16 %v136
    %v6398 = vunpack.c.l.bf16 %v137
    %v6399 = vunpack.c.h.bf16 %v137
    %v6400 = vadd.f32 %v6272, %v5954
    %v6401 = vadd.f32 %v6273, %v5956
    %v6402 = vadd.f32 %v6274, %v5958
    %v6403 = vadd.f32 %v6275, %v5960
    %v6404 = vadd.f32 %v6276, %v5964
    %v6405 = vadd.f32 %v6277, %v5966
    %v6406 = vadd.f32 %v6278, %v5968
    %v6407 = vadd.f32 %v6279, %v5970
    %v6408 = vadd.f32 %v6280, %v5974
    %v6409 = vadd.f32 %v6281, %v5976
    %v6410 = vadd.f32 %v6282, %v5978
    %v6411 = vadd.f32 %v6283, %v5980
    %v6412 = vadd.f32 %v6284, %v5984
    %v6413 = vadd.f32 %v6285, %v5986
    %v6414 = vadd.f32 %v6286, %v5988
    %v6415 = vadd.f32 %v6287, %v5990
    %v6416 = vadd.f32 %v6288, %v5994
    %v6417 = vadd.f32 %v6289, %v5996
    %v6418 = vadd.f32 %v6290, %v5998
    %v6419 = vadd.f32 %v6291, %v6000
    %v6420 = vadd.f32 %v6292, %v6004
    %v6421 = vadd.f32 %v6293, %v6006
    %v6422 = vadd.f32 %v6294, %v6008
    %v6423 = vadd.f32 %v6295, %v6010
    %v6424 = vadd.f32 %v6296, %v6014
    %v6425 = vadd.f32 %v6297, %v6016
    %v6426 = vadd.f32 %v6298, %v6018
    %v6427 = vadd.f32 %v6299, %v6020
    %v6428 = vadd.f32 %v6300, %v6024
    %v6429 = vadd.f32 %v6301, %v6026
    %v6430 = vadd.f32 %v6302, %v6028
    %v6431 = vadd.f32 %v6303, %v6030
    %v6432 = vadd.f32 %v6304, %v6034
    %v6433 = vadd.f32 %v6305, %v6036
    %v6434 = vadd.f32 %v6306, %v6038
    %v6435 = vadd.f32 %v6307, %v6040
    %v6436 = vadd.f32 %v6308, %v6044
    %v6437 = vadd.f32 %v6309, %v6046
    %v6438 = vadd.f32 %v6310, %v6048
    %v6439 = vadd.f32 %v6311, %v6050
    %v6440 = vadd.f32 %v6312, %v6054
    %v6441 = vadd.f32 %v6313, %v6056
    %v6442 = vadd.f32 %v6314, %v6058
    %v6443 = vadd.f32 %v6315, %v6060
    %v6444 = vadd.f32 %v6316, %v6064
    %v6445 = vadd.f32 %v6317, %v6066
    %v6446 = vadd.f32 %v6318, %v6068
    %v6447 = vadd.f32 %v6319, %v6070
    %v6448 = vadd.f32 %v6320, %v6074
    %v6449 = vadd.f32 %v6321, %v6076
    %v6450 = vadd.f32 %v6322, %v6078
    %v6451 = vadd.f32 %v6323, %v6080
    %v6452 = vadd.f32 %v6324, %v6084
    %v6453 = vadd.f32 %v6325, %v6086
    %v6454 = vadd.f32 %v6326, %v6088
    %v6455 = vadd.f32 %v6327, %v6090
    %v6456 = vadd.f32 %v6328, %v6094
    %v6457 = vadd.f32 %v6329, %v6096
    %v6458 = vadd.f32 %v6330, %v6098
    %v6459 = vadd.f32 %v6331, %v6100
    %v6460 = vadd.f32 %v6332, %v6104
    %v6461 = vadd.f32 %v6333, %v6106
    %v6462 = vadd.f32 %v6334, %v6108
    %v6463 = vadd.f32 %v6335, %v6110
    %v6464 = vadd.f32 %v6336, %v6114
    %v6465 = vadd.f32 %v6337, %v6116
    %v6466 = vadd.f32 %v6338, %v6118
    %v6467 = vadd.f32 %v6339, %v6120
    %v6468 = vadd.f32 %v6340, %v6124
    %v6469 = vadd.f32 %v6341, %v6126
    %v6470 = vadd.f32 %v6342, %v6128
    %v6471 = vadd.f32 %v6343, %v6130
    %v6472 = vadd.f32 %v6344, %v6134
    %v6473 = vadd.f32 %v6345, %v6136
    %v6474 = vadd.f32 %v6346, %v6138
    %v6475 = vadd.f32 %v6347, %v6140
    %v6476 = vadd.f32 %v6348, %v6144
    %v6477 = vadd.f32 %v6349, %v6146
    %v6478 = vadd.f32 %v6350, %v6148
    %v6479 = vadd.f32 %v6351, %v6150
    %v6480 = vadd.f32 %v6352, %v6154
    %v6481 = vadd.f32 %v6353, %v6156
    %v6482 = vadd.f32 %v6354, %v6158
    %v6483 = vadd.f32 %v6355, %v6160
    %v6484 = vadd.f32 %v6356, %v6164
    %v6485 = vadd.f32 %v6357, %v6166
    %v6486 = vadd.f32 %v6358, %v6168
    %v6487 = vadd.f32 %v6359, %v6170
    %v6488 = vadd.f32 %v6360, %v6174
    %v6489 = vadd.f32 %v6361, %v6176
    %v6490 = vadd.f32 %v6362, %v6178
    %v6491 = vadd.f32 %v6363, %v6180
    %v6492 = vadd.f32 %v6364, %v6184
    %v6493 = vadd.f32 %v6365, %v6186
    %v6494 = vadd.f32 %v6366, %v6188
    %v6495 = vadd.f32 %v6367, %v6190
    %v6496 = vadd.f32 %v6368, %v6194
    %v6497 = vadd.f32 %v6369, %v6196
    %v6498 = vadd.f32 %v6370, %v6198
    %v6499 = vadd.f32 %v6371, %v6200
    %v6500 = vadd.f32 %v6372, %v6204
    %v6501 = vadd.f32 %v6373, %v6206
    %v6502 = vadd.f32 %v6374, %v6208
    %v6503 = vadd.f32 %v6375, %v6210
    %v6504 = vadd.f32 %v6376, %v6214
    %v6505 = vadd.f32 %v6377, %v6216
    %v6506 = vadd.f32 %v6378, %v6218
    %v6507 = vadd.f32 %v6379, %v6220
    %v6508 = vadd.f32 %v6380, %v6224
    %v6509 = vadd.f32 %v6381, %v6226
    %v6510 = vadd.f32 %v6382, %v6228
    %v6511 = vadd.f32 %v6383, %v6230
    %v6512 = vadd.f32 %v6384, %v6234
    %v6513 = vadd.f32 %v6385, %v6236
    %v6514 = vadd.f32 %v6386, %v6238
    %v6515 = vadd.f32 %v6387, %v6240
    %v6516 = vadd.f32 %v6388, %v6244
    %v6517 = vadd.f32 %v6389, %v6246
    %v6518 = vadd.f32 %v6390, %v6248
    %v6519 = vadd.f32 %v6391, %v6250
    %v6520 = vadd.f32 %v6392, %v6254
    %v6521 = vadd.f32 %v6393, %v6256
    %v6522 = vadd.f32 %v6394, %v6258
    %v6523 = vadd.f32 %v6395, %v6260
    %v6524 = vadd.f32 %v6396, %v6264
    %v6525 = vadd.f32 %v6397, %v6266
    %v6526 = vadd.f32 %v6398, %v6268
    %v6527 = vadd.f32 %v6399, %v6270
    %v6528 = vpack.c.bf16 %v6402, %v6400
    %v6529 = vpack.c.bf16 %v6403, %v6401
    %v6530 = vpack.c.bf16 %v6406, %v6404
    %v6531 = vpack.c.bf16 %v6407, %v6405
    %v6532 = vpack.c.bf16 %v6410, %v6408
    %v6533 = vpack.c.bf16 %v6411, %v6409
    %v6534 = vpack.c.bf16 %v6414, %v6412
    %v6535 = vpack.c.bf16 %v6415, %v6413
    %v6536 = vpack.c.bf16 %v6418, %v6416
    %v6537 = vpack.c.bf16 %v6419, %v6417
    %v6538 = vpack.c.bf16 %v6422, %v6420
    %v6539 = vpack.c.bf16 %v6423, %v6421
    %v6540 = vpack.c.bf16 %v6426, %v6424
    %v6541 = vpack.c.bf16 %v6427, %v6425
    %v6542 = vpack.c.bf16 %v6430, %v6428
    %v6543 = vpack.c.bf16 %v6431, %v6429
    %v6544 = vpack.c.bf16 %v6434, %v6432
    %v6545 = vpack.c.bf16 %v6435, %v6433
    %v6546 = vpack.c.bf16 %v6438, %v6436
    %v6547 = vpack.c.bf16 %v6439, %v6437
    %v6548 = vpack.c.bf16 %v6442, %v6440
    %v6549 = vpack.c.bf16 %v6443, %v6441
    %v6550 = vpack.c.bf16 %v6446, %v6444
    %v6551 = vpack.c.bf16 %v6447, %v6445
    %v6552 = vpack.c.bf16 %v6450, %v6448
    %v6553 = vpack.c.bf16 %v6451, %v6449
    %v6554 = vpack.c.bf16 %v6454, %v6452
    %v6555 = vpack.c.bf16 %v6455, %v6453
    %v6556 = vpack.c.bf16 %v6458, %v6456
    %v6557 = vpack.c.bf16 %v6459, %v6457
    %v6558 = vpack.c.bf16 %v6462, %v6460
    %v6559 = vpack.c.bf16 %v6463, %v6461
    %v6560 = vpack.c.bf16 %v6466, %v6464
    %v6561 = vpack.c.bf16 %v6467, %v6465
    %v6562 = vpack.c.bf16 %v6470, %v6468
    %v6563 = vpack.c.bf16 %v6471, %v6469
    %v6564 = vpack.c.bf16 %v6474, %v6472
    %v6565 = vpack.c.bf16 %v6475, %v6473
    %v6566 = vpack.c.bf16 %v6478, %v6476
    %v6567 = vpack.c.bf16 %v6479, %v6477
    %v6568 = vpack.c.bf16 %v6482, %v6480
    %v6569 = vpack.c.bf16 %v6483, %v6481
    %v6570 = vpack.c.bf16 %v6486, %v6484
    %v6571 = vpack.c.bf16 %v6487, %v6485
    %v6572 = vpack.c.bf16 %v6490, %v6488
    %v6573 = vpack.c.bf16 %v6491, %v6489
    %v6574 = vpack.c.bf16 %v6494, %v6492
    %v6575 = vpack.c.bf16 %v6495, %v6493
    %v6576 = vpack.c.bf16 %v6498, %v6496
    %v6577 = vpack.c.bf16 %v6499, %v6497
    %v6578 = vpack.c.bf16 %v6502, %v6500
    %v6579 = vpack.c.bf16 %v6503, %v6501
    %v6580 = vpack.c.bf16 %v6506, %v6504
    %v6581 = vpack.c.bf16 %v6507, %v6505
    %v6582 = vpack.c.bf16 %v6510, %v6508
    %v6583 = vpack.c.bf16 %v6511, %v6509
    %v6584 = vpack.c.bf16 %v6514, %v6512
    %v6585 = vpack.c.bf16 %v6515, %v6513
    %v6586 = vpack.c.bf16 %v6518, %v6516
    %v6587 = vpack.c.bf16 %v6519, %v6517
    %v6588 = vpack.c.bf16 %v6522, %v6520
    %v6589 = vpack.c.bf16 %v6523, %v6521
    %v6590 = vpack.c.bf16 %v6526, %v6524
    %v6591 = vpack.c.bf16 %v6527, %v6525
    %v6656 = vunpack.c.l.b16 %v6528
    %v6657 = vunpack.c.l.b16 %v6529
    %v6658 = vunpack.c.h.b16 %v6528
    %v6659 = vunpack.c.h.b16 %v6529
    %v6660 = vunpack.c.l.b16 %v6530
    %v6661 = vunpack.c.l.b16 %v6531
    %v6662 = vunpack.c.h.b16 %v6530
    %v6663 = vunpack.c.h.b16 %v6531
    %v6664 = vunpack.c.l.b16 %v6532
    %v6665 = vunpack.c.l.b16 %v6533
    %v6666 = vunpack.c.h.b16 %v6532
    %v6667 = vunpack.c.h.b16 %v6533
    %v6668 = vunpack.c.l.b16 %v6534
    %v6669 = vunpack.c.l.b16 %v6535
    %v6670 = vunpack.c.h.b16 %v6534
    %v6671 = vunpack.c.h.b16 %v6535
    %v6672 = vunpack.c.l.b16 %v6536
    %v6673 = vunpack.c.l.b16 %v6537
    %v6674 = vunpack.c.h.b16 %v6536
    %v6675 = vunpack.c.h.b16 %v6537
    %v6676 = vunpack.c.l.b16 %v6538
    %v6677 = vunpack.c.l.b16 %v6539
    %v6678 = vunpack.c.h.b16 %v6538
    %v6679 = vunpack.c.h.b16 %v6539
    %v6680 = vunpack.c.l.b16 %v6540
    %v6681 = vunpack.c.l.b16 %v6541
    %v6682 = vunpack.c.h.b16 %v6540
    %v6683 = vunpack.c.h.b16 %v6541
    %v6684 = vunpack.c.l.b16 %v6542
    %v6685 = vunpack.c.l.b16 %v6543
    %v6686 = vunpack.c.h.b16 %v6542
    %v6687 = vunpack.c.h.b16 %v6543
    %v6688 = vunpack.c.l.b16 %v6544
    %v6689 = vunpack.c.l.b16 %v6545
    %v6690 = vunpack.c.h.b16 %v6544
    %v6691 = vunpack.c.h.b16 %v6545
    %v6692 = vunpack.c.l.b16 %v6546
    %v6693 = vunpack.c.l.b16 %v6547
    %v6694 = vunpack.c.h.b16 %v6546
    %v6695 = vunpack.c.h.b16 %v6547
    %v6696 = vunpack.c.l.b16 %v6548
    %v6697 = vunpack.c.l.b16 %v6549
    %v6698 = vunpack.c.h.b16 %v6548
    %v6699 = vunpack.c.h.b16 %v6549
    %v6700 = vunpack.c.l.b16 %v6550
    %v6701 = vunpack.c.l.b16 %v6551
    %v6702 = vunpack.c.h.b16 %v6550
    %v6703 = vunpack.c.h.b16 %v6551
    %v6704 = vunpack.c.l.b16 %v6552
    %v6705 = vunpack.c.l.b16 %v6553
    %v6706 = vunpack.c.h.b16 %v6552
    %v6707 = vunpack.c.h.b16 %v6553
    %v6708 = vunpack.c.l.b16 %v6554
    %v6709 = vunpack.c.l.b16 %v6555
    %v6710 = vunpack.c.h.b16 %v6554
    %v6711 = vunpack.c.h.b16 %v6555
    %v6712 = vunpack.c.l.b16 %v6556
    %v6713 = vunpack.c.l.b16 %v6557
    %v6714 = vunpack.c.h.b16 %v6556
    %v6715 = vunpack.c.h.b16 %v6557
    %v6716 = vunpack.c.l.b16 %v6558
    %v6717 = vunpack.c.l.b16 %v6559
    %v6718 = vunpack.c.h.b16 %v6558
    %v6719 = vunpack.c.h.b16 %v6559
    %v6720 = vunpack.c.l.b16 %v6560
    %v6721 = vunpack.c.l.b16 %v6561
    %v6722 = vunpack.c.h.b16 %v6560
    %v6723 = vunpack.c.h.b16 %v6561
    %v6724 = vunpack.c.l.b16 %v6562
    %v6725 = vunpack.c.l.b16 %v6563
    %v6726 = vunpack.c.h.b16 %v6562
    %v6727 = vunpack.c.h.b16 %v6563
    %v6728 = vunpack.c.l.b16 %v6564
    %v6729 = vunpack.c.l.b16 %v6565
    %v6730 = vunpack.c.h.b16 %v6564
    %v6731 = vunpack.c.h.b16 %v6565
    %v6732 = vunpack.c.l.b16 %v6566
    %v6733 = vunpack.c.l.b16 %v6567
    %v6734 = vunpack.c.h.b16 %v6566
    %v6735 = vunpack.c.h.b16 %v6567
    %v6736 = vunpack.c.l.b16 %v6568
    %v6737 = vunpack.c.l.b16 %v6569
    %v6738 = vunpack.c.h.b16 %v6568
    %v6739 = vunpack.c.h.b16 %v6569
    %v6740 = vunpack.c.l.b16 %v6570
    %v6741 = vunpack.c.l.b16 %v6571
    %v6742 = vunpack.c.h.b16 %v6570
    %v6743 = vunpack.c.h.b16 %v6571
    %v6744 = vunpack.c.l.b16 %v6572
    %v6745 = vunpack.c.l.b16 %v6573
    %v6746 = vunpack.c.h.b16 %v6572
    %v6747 = vunpack.c.h.b16 %v6573
    %v6748 = vunpack.c.l.b16 %v6574
    %v6749 = vunpack.c.l.b16 %v6575
    %v6750 = vunpack.c.h.b16 %v6574
    %v6751 = vunpack.c.h.b16 %v6575
    %v6752 = vunpack.c.l.b16 %v6576
    %v6753 = vunpack.c.l.b16 %v6577
    %v6754 = vunpack.c.h.b16 %v6576
    %v6755 = vunpack.c.h.b16 %v6577
    %v6756 = vunpack.c.l.b16 %v6578
    %v6757 = vunpack.c.l.b16 %v6579
    %v6758 = vunpack.c.h.b16 %v6578
    %v6759 = vunpack.c.h.b16 %v6579
    %v6760 = vunpack.c.l.b16 %v6580
    %v6761 = vunpack.c.l.b16 %v6581
    %v6762 = vunpack.c.h.b16 %v6580
    %v6763 = vunpack.c.h.b16 %v6581
    %v6764 = vunpack.c.l.b16 %v6582
    %v6765 = vunpack.c.l.b16 %v6583
    %v6766 = vunpack.c.h.b16 %v6582
    %v6767 = vunpack.c.h.b16 %v6583
    %v6768 = vunpack.c.l.b16 %v6584
    %v6769 = vunpack.c.l.b16 %v6585
    %v6770 = vunpack.c.h.b16 %v6584
    %v6771 = vunpack.c.h.b16 %v6585
    %v6772 = vunpack.c.l.b16 %v6586
    %v6773 = vunpack.c.l.b16 %v6587
    %v6774 = vunpack.c.h.b16 %v6586
    %v6775 = vunpack.c.h.b16 %v6587
    %v6776 = vunpack.c.l.b16 %v6588
    %v6777 = vunpack.c.l.b16 %v6589
    %v6778 = vunpack.c.h.b16 %v6588
    %v6779 = vunpack.c.h.b16 %v6589
    %v6780 = vunpack.c.l.b16 %v6590
    %v6781 = vunpack.c.l.b16 %v6591
    %v6782 = vunpack.c.h.b16 %v6590
    %v6783 = vunpack.c.h.b16 %v6591
    %v6784 = vpack.c.b16 %v6657, %v6656
    %v6785 = vpack.c.b16 %v6659, %v6658
    %v6786 = vpack.c.b16 %v6661, %v6660
    %v6787 = vpack.c.b16 %v6663, %v6662
    %v6788 = vpack.c.b16 %v6665, %v6664
    %v6789 = vpack.c.b16 %v6667, %v6666
    %v6790 = vpack.c.b16 %v6669, %v6668
    %v6791 = vpack.c.b16 %v6671, %v6670
    %v6792 = vpack.c.b16 %v6673, %v6672
    %v6793 = vpack.c.b16 %v6675, %v6674
    %v6794 = vpack.c.b16 %v6677, %v6676
    %v6795 = vpack.c.b16 %v6679, %v6678
    %v6796 = vpack.c.b16 %v6681, %v6680
    %v6797 = vpack.c.b16 %v6683, %v6682
    %v6798 = vpack.c.b16 %v6685, %v6684
    %v6799 = vpack.c.b16 %v6687, %v6686
    %v6800 = vpack.c.b16 %v6689, %v6688
    %v6801 = vpack.c.b16 %v6691, %v6690
    %v6802 = vpack.c.b16 %v6693, %v6692
    %v6803 = vpack.c.b16 %v6695, %v6694
    %v6804 = vpack.c.b16 %v6697, %v6696
    %v6805 = vpack.c.b16 %v6699, %v6698
    %v6806 = vpack.c.b16 %v6701, %v6700
    %v6807 = vpack.c.b16 %v6703, %v6702
    %v6808 = vpack.c.b16 %v6705, %v6704
    %v6809 = vpack.c.b16 %v6707, %v6706
    %v6810 = vpack.c.b16 %v6709, %v6708
    %v6811 = vpack.c.b16 %v6711, %v6710
    %v6812 = vpack.c.b16 %v6713, %v6712
    %v6813 = vpack.c.b16 %v6715, %v6714
    %v6814 = vpack.c.b16 %v6717, %v6716
    %v6815 = vpack.c.b16 %v6719, %v6718
    %v6816 = vpack.c.b16 %v6721, %v6720
    %v6817 = vpack.c.b16 %v6723, %v6722
    %v6818 = vpack.c.b16 %v6725, %v6724
    %v6819 = vpack.c.b16 %v6727, %v6726
    %v6820 = vpack.c.b16 %v6729, %v6728
    %v6821 = vpack.c.b16 %v6731, %v6730
    %v6822 = vpack.c.b16 %v6733, %v6732
    %v6823 = vpack.c.b16 %v6735, %v6734
    %v6824 = vpack.c.b16 %v6737, %v6736
    %v6825 = vpack.c.b16 %v6739, %v6738
    %v6826 = vpack.c.b16 %v6741, %v6740
    %v6827 = vpack.c.b16 %v6743, %v6742
    %v6828 = vpack.c.b16 %v6745, %v6744
    %v6829 = vpack.c.b16 %v6747, %v6746
    %v6830 = vpack.c.b16 %v6749, %v6748
    %v6831 = vpack.c.b16 %v6751, %v6750
    %v6832 = vpack.c.b16 %v6753, %v6752
    %v6833 = vpack.c.b16 %v6755, %v6754
    %v6834 = vpack.c.b16 %v6757, %v6756
    %v6835 = vpack.c.b16 %v6759, %v6758
    %v6836 = vpack.c.b16 %v6761, %v6760
    %v6837 = vpack.c.b16 %v6763, %v6762
    %v6838 = vpack.c.b16 %v6765, %v6764
    %v6839 = vpack.c.b16 %v6767, %v6766
    %v6840 = vpack.c.b16 %v6769, %v6768
    %v6841 = vpack.c.b16 %v6771, %v6770
    %v6842 = vpack.c.b16 %v6773, %v6772
    %v6843 = vpack.c.b16 %v6775, %v6774
    %v6844 = vpack.c.b16 %v6777, %v6776
    %v6845 = vpack.c.b16 %v6779, %v6778
    %v6846 = vpack.c.b16 %v6781, %v6780
    %v6847 = vpack.c.b16 %v6783, %v6782
    %6912 = vst [vmem:[#allocation10] sm:$0xff] %v6784
    %6913 = vst [vmem:[#allocation10 + $0x8] sm:$0xff] %v6785
    %6914 = vst [vmem:[#allocation10 + $0x10] sm:$0xff] %v6786
    %6915 = vst [vmem:[#allocation10 + $0x18] sm:$0xff] %v6787
    %6916 = vst [vmem:[#allocation10 + $0x20] sm:$0xff] %v6788
    %6917 = vst [vmem:[#allocation10 + $0x28] sm:$0xff] %v6789
    %6918 = vst [vmem:[#allocation10 + $0x30] sm:$0xff] %v6790
    %6919 = vst [vmem:[#allocation10 + $0x38] sm:$0xff] %v6791
    %6920 = vst [vmem:[#allocation10 + $0x40] sm:$0xff] %v6792
    %6921 = vst [vmem:[#allocation10 + $0x48] sm:$0xff] %v6793
    %6922 = vst [vmem:[#allocation10 + $0x50] sm:$0xff] %v6794
    %6923 = vst [vmem:[#allocation10 + $0x58] sm:$0xff] %v6795
    %6924 = vst [vmem:[#allocation10 + $0x60] sm:$0xff] %v6796
    %6925 = vst [vmem:[#allocation10 + $0x68] sm:$0xff] %v6797
    %6926 = vst [vmem:[#allocation10 + $0x70] sm:$0xff] %v6798
    %6927 = vst [vmem:[#allocation10 + $0x78] sm:$0xff] %v6799
    %6928 = vst [vmem:[#allocation10 + $0x80] sm:$0xff] %v6800
    %6929 = vst [vmem:[#allocation10 + $0x88] sm:$0xff] %v6801
    %6930 = vst [vmem:[#allocation10 + $0x90] sm:$0xff] %v6802
    %6931 = vst [vmem:[#allocation10 + $0x98] sm:$0xff] %v6803
    %6932 = vst [vmem:[#allocation10 + $0xa0] sm:$0xff] %v6804
    %6933 = vst [vmem:[#allocation10 + $0xa8] sm:$0xff] %v6805
    %6934 = vst [vmem:[#allocation10 + $0xb0] sm:$0xff] %v6806
    %6935 = vst [vmem:[#allocation10 + $0xb8] sm:$0xff] %v6807
    %6936 = vst [vmem:[#allocation10 + $0xc0] sm:$0xff] %v6808
    %6937 = vst [vmem:[#allocation10 + $0xc8] sm:$0xff] %v6809
    %6938 = vst [vmem:[#allocation10 + $0xd0] sm:$0xff] %v6810
    %6939 = vst [vmem:[#allocation10 + $0xd8] sm:$0xff] %v6811
    %6940 = vst [vmem:[#allocation10 + $0xe0] sm:$0xff] %v6812
    %6941 = vst [vmem:[#allocation10 + $0xe8] sm:$0xff] %v6813
    %6942 = vst [vmem:[#allocation10 + $0xf0] sm:$0xff] %v6814
    %6943 = vst [vmem:[#allocation10 + $0xf8] sm:$0xff] %v6815
    %6944 = vst [vmem:[#allocation10 + $0x100] sm:$0xff] %v6816
    %6945 = vst [vmem:[#allocation10 + $0x108] sm:$0xff] %v6817
    %6946 = vst [vmem:[#allocation10 + $0x110] sm:$0xff] %v6818
    %6947 = vst [vmem:[#allocation10 + $0x118] sm:$0xff] %v6819
    %6948 = vst [vmem:[#allocation10 + $0x120] sm:$0xff] %v6820
    %6949 = vst [vmem:[#allocation10 + $0x128] sm:$0xff] %v6821
    %6950 = vst [vmem:[#allocation10 + $0x130] sm:$0xff] %v6822
    %6951 = vst [vmem:[#allocation10 + $0x138] sm:$0xff] %v6823
    %6952 = vst [vmem:[#allocation10 + $0x140] sm:$0xff] %v6824
    %6953 = vst [vmem:[#allocation10 + $0x148] sm:$0xff] %v6825
    %6954 = vst [vmem:[#allocation10 + $0x150] sm:$0xff] %v6826
    %6955 = vst [vmem:[#allocation10 + $0x158] sm:$0xff] %v6827
    %6956 = vst [vmem:[#allocation10 + $0x160] sm:$0xff] %v6828
    %6957 = vst [vmem:[#allocation10 + $0x168] sm:$0xff] %v6829
    %6958 = vst [vmem:[#allocation10 + $0x170] sm:$0xff] %v6830
    %6959 = vst [vmem:[#allocation10 + $0x178] sm:$0xff] %v6831
    %6960 = vst [vmem:[#allocation10 + $0x180] sm:$0xff] %v6832
    %6961 = vst [vmem:[#allocation10 + $0x188] sm:$0xff] %v6833
    %6962 = vst [vmem:[#allocation10 + $0x190] sm:$0xff] %v6834
    %6963 = vst [vmem:[#allocation10 + $0x198] sm:$0xff] %v6835
    %6964 = vst [vmem:[#allocation10 + $0x1a0] sm:$0xff] %v6836
    %6965 = vst [vmem:[#allocation10 + $0x1a8] sm:$0xff] %v6837
    %6966 = vst [vmem:[#allocation10 + $0x1b0] sm:$0xff] %v6838
    %6967 = vst [vmem:[#allocation10 + $0x1b8] sm:$0xff] %v6839
    %6968 = vst [vmem:[#allocation10 + $0x1c0] sm:$0xff] %v6840
    %6969 = vst [vmem:[#allocation10 + $0x1c8] sm:$0xff] %v6841
    %6970 = vst [vmem:[#allocation10 + $0x1d0] sm:$0xff] %v6842
    %6971 = vst [vmem:[#allocation10 + $0x1d8] sm:$0xff] %v6843
    %6972 = vst [vmem:[#allocation10 + $0x1e0] sm:$0xff] %v6844
    %6973 = vst [vmem:[#allocation10 + $0x1e8] sm:$0xff] %v6845
    %6974 = vst [vmem:[#allocation10 + $0x1f0] sm:$0xff] %v6846
    %6975 = vst [vmem:[#allocation10 + $0x1f8] sm:$0xff] %v6847
    // Predicated region
    $region34: #{tpu_custom_call.1} parent=1 // pred_check
      _
    $region35: #{tpu_custom_call.1} parent=1 // pred_check_branch
      %6977 = sbr.rel (0) target = $region37
    $region36: #{tpu_custom_call.1} parent=1 // pred_region
      %s6979 = ssub.s32 8192, 8192
      %6980 = vsyncadd [#allocation4], %s6979
      %s6981 = sshll.u32 [#allocation10], 4
      %s6982 = int_to_ptr.vmem [resolvable:$true] %s6981
      %6987 = dma.vmem_to_hbm [thread:$0]  %s6982, 8192, %s4, [#allocation4], 128, 128, 8
    $region37: #{tpu_custom_call.1} parent=1 // pred_fallthru
      _
    // Predicated region
    $region38: #{tpu_custom_call.1} parent=1 // pred_check
      _
    $region39: #{tpu_custom_call.1} parent=1 // pred_check_branch
      %6989 = sbr.rel (0) target = $region41
    $region40: #{tpu_custom_call.1} parent=1 // pred_region
      %6990 = dma.done [#allocation4], 8192
    $region41: #{tpu_custom_call.1} parent=1 // pred_fallthru
      _
    %6991 = vsyncpa [#allocation3], 1
    %6992 = vsyncpa [#allocation6], 1
    %6993 = vsyncpa [#allocation9], 1
    %6994 = vsyncpa [#allocation4], 1

</llo_original>
